<compile_context>
chip_gen: v7x
topology: tpu7x:2x2x1
jax: 0.10.0
libtpu: 0.0.40
codegen_flags: <defaults>
</compile_context>

<pallas_src>
import functools
import math

import jax
import jax.numpy as jnp
import numpy as np
from jax.experimental import pallas as pl
from jax.experimental.pallas import tpu as pltpu


_PARAM_ORDER = (
    "wq", "bq", "wk", "bk", "wv", "bv", "wo", "bo",
    "g1", "be1", "w1", "bf1", "w2", "bf2", "g2", "be2",
)
_MATMUL_WEIGHTS = ("wq", "wk", "wv", "wo", "w1", "w2")

# Lazily probed: does this JAX/TPU accept single-buffered (pl.Buffered(1))
# grid-invariant weight BlockSpecs?  None = unknown, True/False after probe.
_WEIGHT_SINGLE_BUFFER_OK = None


def _vmem_limit_bytes():
    # Raise the scoped-VMEM limit (defaults are well below physical on
    # v5e/v6e) while leaving headroom below physical capacity (64 MiB on v7x).
    try:
        return int(pltpu.get_tpu_info().vmem_capacity_bytes) * 3 // 4
    except Exception:
        return 64 * 1024 * 1024


def _weight_spec(shape, single_buffer):
    ndim = len(shape)
    index_map = lambda b, j: (0,) * ndim  # grid-invariant (broadcast over grid)
    if single_buffer:
        # Constant index_map => no need to double-buffer; keep one resident copy.
        return pl.BlockSpec(shape, index_map, pipeline_mode=pl.Buffered(buffer_count=1))
    return pl.BlockSpec(shape, index_map)


# ----------------------------------------------------------------------------
# Pallas kernel: one transformer block, one (batch, query-row-tile) grid step.
# ----------------------------------------------------------------------------
def _transformer_block_kernel(
    xq_ref,                       # (1, tq, H)  query-row tile (also residual stream)
    xf_ref,                       # (1, S,  H)  full sequence (keys / values)
    wq_ref, bq_ref, wk_ref, bk_ref, wv_ref, bv_ref, wo_ref, bo_ref,
    g1_ref, be1_ref,
    w1_ref, bf1_ref, w2_ref, bf2_ref,
    g2_ref, be2_ref,
    o_ref,                        # (1, tq, H)
    *, num_heads, eps,
):
    f32 = jnp.float32
    cd = wq_ref.dtype             # MXU operand dtype (bf16); accumulation is f32

    xq = xq_ref[0].astype(f32)    # (tq, H)
    xf = xf_ref[0].astype(f32)    # (S,  H)
    tq, H = xq.shape
    S = xf.shape[0]
    hd = H // num_heads
    scale = 1.0 / math.sqrt(hd)

    def layer_norm(v, gamma, beta):
        mean = jnp.mean(v, axis=-1, keepdims=True)
        # torch.std default is unbiased (divide by H-1); eps added to std.
        var = jnp.sum((v - mean) ** 2, axis=-1, keepdims=True) * (1.0 / (H - 1))
        inv_std = pl.reciprocal(jnp.sqrt(var) + eps, approx=True)
        return gamma * (v - mean) * inv_std + beta

    # ---- sublayer 1: multi-head self-attention (pre-LN residual) ----
    g1, be1 = g1_ref[0], be1_ref[0]
    xnq = layer_norm(xq, g1, be1)               # (tq, H) queries
    xnf = layer_norm(xf, g1, be1)               # (S,  H) keys / values

    q = jnp.dot(xnq.astype(cd), wq_ref[...], preferred_element_type=f32) + bq_ref[0]
    k = jnp.dot(xnf.astype(cd), wk_ref[...], preferred_element_type=f32) + bk_ref[0]
    v = jnp.dot(xnf.astype(cd), wv_ref[...], preferred_element_type=f32) + bv_ref[0]

    # Split heads onto a leading batch axis (cheap major-axis concat of lane
    # slices), then run ONE batched MXU contraction per attention matmul.
    def split_heads(t):                          # (rows, H) -> (nh, rows, hd)
        return jnp.concatenate(
            [t[None, :, h * hd:(h + 1) * hd] for h in range(num_heads)], axis=0)

    qh = split_heads(q).astype(cd)               # (nh, tq, hd)
    kh = split_heads(k).astype(cd)               # (nh, S,  hd)
    vh = split_heads(v).astype(cd)               # (nh, S,  hd)

    s = jnp.einsum("hqd,hkd->hqk", qh, kh, preferred_element_type=f32) * scale
    s = s - jnp.max(s, axis=-1, keepdims=True)
    p = jnp.exp(s)
    p = p * pl.reciprocal(jnp.sum(p, axis=-1, keepdims=True), approx=True)
    ctx = jnp.einsum("hqk,hkd->hqd", p.astype(cd), vh, preferred_element_type=f32)

    # merge heads back to (tq, H) and apply the output projection
    attn = jnp.concatenate([ctx[h] for h in range(num_heads)], axis=-1)
    attn = jnp.dot(attn.astype(cd), wo_ref[...], preferred_element_type=f32) + bo_ref[0]

    x1 = xq + attn                               # dropout rate 0.0 -> identity

    # ---- sublayer 2: position-wise feed-forward (pre-LN residual) ----
    xn2 = layer_norm(x1, g2_ref[0], be2_ref[0])
    h1 = jnp.dot(xn2.astype(cd), w1_ref[...], preferred_element_type=f32) + bf1_ref[0]
    # BERT tanh-approx GELU (f32 on the VPU/EUP)
    h1 = 0.5 * h1 * (1.0 + jnp.tanh(0.7978845608028654 * (h1 + 0.044715 * h1 * h1 * h1)))
    ff = jnp.dot(h1.astype(cd), w2_ref[...], preferred_element_type=f32) + bf2_ref[0]

    o_ref[0] = (x1 + ff).astype(o_ref.dtype)     # final block dropout is identity


# ----------------------------------------------------------------------------
# Wrapper: one pallas_call per transformer block; Python loop over layers.
# ----------------------------------------------------------------------------
def transformer_block(x, params, *, num_heads, eps=1e-6, seq_block=None,
                      compute_dtype=jnp.bfloat16):
    global _WEIGHT_SINGLE_BUFFER_OK
    B, S, H = x.shape
    assert H % num_heads == 0

    if seq_block is None:
        seq_block = min(S, 256)                  # bound per-step VMEM at large S
    assert S % seq_block == 0
    assert seq_block == S or seq_block % 8 == 0  # sublane alignment for partial tiles
    n_q = S // seq_block

    # bf16 matmul weights (halves weight DMA/VMEM); f32 biases & LN params.
    args = [params[name].astype(compute_dtype if name in _MATMUL_WEIGHTS
                                else jnp.float32)
            for name in _PARAM_ORDER]

    kernel = functools.partial(_transformer_block_kernel, num_heads=num_heads, eps=eps)

    def build(single_buffer_weights):
        in_specs = (
            [pl.BlockSpec((1, seq_block, H), lambda b, j: (b, j, 0)),   # query tile
             pl.BlockSpec((1, S, H), lambda b, j: (b, 0, 0))]           # full seq (K/V)
            + [_weight_spec(a.shape, single_buffer_weights) for a in args]
        )
        return pl.pallas_call(
            kernel,
            out_shape=jax.ShapeDtypeStruct((B, S, H), x.dtype),
            grid=(B, n_q),
            in_specs=in_specs,
            out_specs=pl.BlockSpec((1, seq_block, H), lambda b, j: (b, j, 0)),
            compiler_params=pltpu.CompilerParams(
                dimension_semantics=("parallel", "parallel"),
                vmem_limit_bytes=_vmem_limit_bytes(),
            ),
        )

    if _WEIGHT_SINGLE_BUFFER_OK is None:
        # Probe once: prefer single-buffered resident weights, fall back if the
        # installed JAX/Mosaic rejects pl.Buffered(1) on this pallas_call.
        try:
            out = jax.block_until_ready(build(True)(x, x, *args))
            _WEIGHT_SINGLE_BUFFER_OK = True
            return out
        except Exception:
            _WEIGHT_SINGLE_BUFFER_OK = False
    return build(_WEIGHT_SINGLE_BUFFER_OK)(x, x, *args)


def bert_forward(x, layer_params, *, num_heads, seq_block=None,
                 compute_dtype=jnp.bfloat16):
    # TODO(synk): prefetch layer l+1 weights (cross-call DMA future) while layer
    #             l computes, or fuse layers into one call with a layer grid axis.
    for params in layer_params:
        x = transformer_block(x, params, num_heads=num_heads,
                              seq_block=seq_block, compute_dtype=compute_dtype)
    return x


# ----------------------------------------------------------------------------
# Deterministic parameter init (synthetic, matches module shapes).
# ----------------------------------------------------------------------------
def init_layer_params(key, hidden):
    ff = 4 * hidden
    keys = jax.random.split(key, 6)
    s = 0.02

    def w(k, shape):
        return (s * jax.random.normal(k, shape)).astype(jnp.float32)

    return {
        "wq": w(keys[0], (hidden, hidden)), "bq": jnp.zeros((1, hidden), jnp.float32),
        "wk": w(keys[1], (hidden, hidden)), "bk": jnp.zeros((1, hidden), jnp.float32),
        "wv": w(keys[2], (hidden, hidden)), "bv": jnp.zeros((1, hidden), jnp.float32),
        "wo": w(keys[3], (hidden, hidden)), "bo": jnp.zeros((1, hidden), jnp.float32),
        "g1": jnp.ones((1, hidden), jnp.float32), "be1": jnp.zeros((1, hidden), jnp.float32),
        "w1": w(keys[4], (hidden, ff)), "bf1": jnp.zeros((1, ff), jnp.float32),
        "w2": w(keys[5], (ff, hidden)), "bf2": jnp.zeros((1, hidden), jnp.float32),
        "g2": jnp.ones((1, hidden), jnp.float32), "be2": jnp.zeros((1, hidden), jnp.float32),
    }


# ----------------------------------------------------------------------------
# Pure-JAX f32 reference (original module math) for the correctness check.
# ----------------------------------------------------------------------------
def _ref_block(x, p, num_heads, eps=1e-6):
    B, S, H = x.shape
    hd = H // num_heads

    def ln(v, g, b):
        m = jnp.mean(v, -1, keepdims=True)
        var = jnp.sum((v - m) ** 2, -1, keepdims=True) / (H - 1)
        return g * (v - m) / (jnp.sqrt(var) + eps) + b

    xn = ln(x, p["g1"], p["be1"])
    q = xn @ p["wq"] + p["bq"]
    k = xn @ p["wk"] + p["bk"]
    v = xn @ p["wv"] + p["bv"]
    q = q.reshape(B, S, num_heads, hd).transpose(0, 2, 1, 3)
    k = k.reshape(B, S, num_heads, hd).transpose(0, 2, 1, 3)
    v = v.reshape(B, S, num_heads, hd).transpose(0, 2, 1, 3)
    sc = jnp.einsum("bhqd,bhkd->bhqk", q, k) / math.sqrt(hd)
    pr = jax.nn.softmax(sc, axis=-1)
    a = jnp.einsum("bhqk,bhkd->bhqd", pr, v).transpose(0, 2, 1, 3).reshape(B, S, H)
    a = a @ p["wo"] + p["bo"]
    x = x + a
    xn2 = ln(x, p["g2"], p["be2"])
    h = xn2 @ p["w1"] + p["bf1"]
    h = 0.5 * h * (1.0 + jnp.tanh(0.7978845608028654 * (h + 0.044715 * h ** 3)))
    return x + (h @ p["w2"] + p["bf2"])


if __name__ == "__main__":
    hidden = 32
    n_layers = 2
    attn_heads = 4
    dropout = 0.0  # dropout rate 0.0 -> identity in the forward pass
    B, S = 2, 8

    key = jax.random.PRNGKey(0)
    kx, *kls = jax.random.split(key, 1 + n_layers)
    x = jax.random.normal(kx, (B, S, hidden), jnp.float32)
    layer_params = [init_layer_params(k, hidden) for k in kls]

    out = bert_forward(x, layer_params, num_heads=attn_heads)
    out = jax.block_until_ready(out)

    ref = x
    for p in layer_params:
        ref = _ref_block(ref, p, attn_heads)
    # bf16 MXU operands + EUP approx reciprocals => compare against the exact
    # f32 reference with a correspondingly relaxed tolerance.
    np.testing.assert_allclose(np.asarray(out), np.asarray(ref), rtol=2e-2, atol=2e-2)

    print("KERNEL_OK")
</pallas_src>

<mosaic_0001>
module attributes {stable_mosaic.version = 11 : i64} {
  func.func @_transformer_block_kernel(%arg0: i32, %arg1: i32, %arg2: memref<1x8x32xf32, #tpu.memory_space<vmem>>, %arg3: memref<1x8x32xf32, #tpu.memory_space<vmem>>, %arg4: memref<32x32xbf16, #tpu.memory_space<vmem>>, %arg5: memref<1x32xf32, #tpu.memory_space<vmem>>, %arg6: memref<32x32xbf16, #tpu.memory_space<vmem>>, %arg7: memref<1x32xf32, #tpu.memory_space<vmem>>, %arg8: memref<32x32xbf16, #tpu.memory_space<vmem>>, %arg9: memref<1x32xf32, #tpu.memory_space<vmem>>, %arg10: memref<32x32xbf16, #tpu.memory_space<vmem>>, %arg11: memref<1x32xf32, #tpu.memory_space<vmem>>, %arg12: memref<1x32xf32, #tpu.memory_space<vmem>>, %arg13: memref<1x32xf32, #tpu.memory_space<vmem>>, %arg14: memref<32x128xbf16, #tpu.memory_space<vmem>>, %arg15: memref<1x128xf32, #tpu.memory_space<vmem>>, %arg16: memref<128x32xbf16, #tpu.memory_space<vmem>>, %arg17: memref<1x32xf32, #tpu.memory_space<vmem>>, %arg18: memref<1x32xf32, #tpu.memory_space<vmem>>, %arg19: memref<1x32xf32, #tpu.memory_space<vmem>>, %arg20: memref<1x8x32xf32, #tpu.memory_space<vmem>>) attributes {dimension_semantics = [#tpu.dimension_semantics<parallel>, #tpu.dimension_semantics<parallel>], iteration_bounds = array<i64: 2, 1>, scalar_prefetch = 0 : i64, scratch_operands = 0 : i64, tpu.core_type = #tpu.core_type<tc>, window_params = [{transform_indices = @transform_0, window_bounds = array<i64: 1, 8, 32>}, {transform_indices = @transform_1, window_bounds = array<i64: 1, 8, 32>}, {pipeline_mode = #tpu.pipeline_mode<synchronous>, transform_indices = @transform_2, window_bounds = array<i64: 32, 32>}, {pipeline_mode = #tpu.pipeline_mode<synchronous>, transform_indices = @transform_3, window_bounds = array<i64: 1, 32>}, {pipeline_mode = #tpu.pipeline_mode<synchronous>, transform_indices = @transform_4, window_bounds = array<i64: 32, 32>}, {pipeline_mode = #tpu.pipeline_mode<synchronous>, transform_indices = @transform_5, window_bounds = array<i64: 1, 32>}, {pipeline_mode = #tpu.pipeline_mode<synchronous>, transform_indices = @transform_6, window_bounds = array<i64: 32, 32>}, {pipeline_mode = #tpu.pipeline_mode<synchronous>, transform_indices = @transform_7, window_bounds = array<i64: 1, 32>}, {pipeline_mode = #tpu.pipeline_mode<synchronous>, transform_indices = @transform_8, window_bounds = array<i64: 32, 32>}, {pipeline_mode = #tpu.pipeline_mode<synchronous>, transform_indices = @transform_9, window_bounds = array<i64: 1, 32>}, {pipeline_mode = #tpu.pipeline_mode<synchronous>, transform_indices = @transform_10, window_bounds = array<i64: 1, 32>}, {pipeline_mode = #tpu.pipeline_mode<synchronous>, transform_indices = @transform_11, window_bounds = array<i64: 1, 32>}, {pipeline_mode = #tpu.pipeline_mode<synchronous>, transform_indices = @transform_12, window_bounds = array<i64: 32, 128>}, {pipeline_mode = #tpu.pipeline_mode<synchronous>, transform_indices = @transform_13, window_bounds = array<i64: 1, 128>}, {pipeline_mode = #tpu.pipeline_mode<synchronous>, transform_indices = @transform_14, window_bounds = array<i64: 128, 32>}, {pipeline_mode = #tpu.pipeline_mode<synchronous>, transform_indices = @transform_15, window_bounds = array<i64: 1, 32>}, {pipeline_mode = #tpu.pipeline_mode<synchronous>, transform_indices = @transform_16, window_bounds = array<i64: 1, 32>}, {pipeline_mode = #tpu.pipeline_mode<synchronous>, transform_indices = @transform_17, window_bounds = array<i64: 1, 32>}, {transform_indices = @transform_18, window_bounds = array<i64: 1, 8, 32>}]} {
    %c0 = arith.constant 0 : index
    %c0_0 = arith.constant 0 : index
    %c0_1 = arith.constant 0 : index
    %0 = vector.load %arg2[%c0, %c0_0, %c0_1] : memref<1x8x32xf32, #tpu.memory_space<vmem>>, vector<1x8x32xf32>
    %1 = vector.shape_cast %0 : vector<1x8x32xf32> to vector<8x32xf32>
    %c0_2 = arith.constant 0 : index
    %c0_3 = arith.constant 0 : index
    %c0_4 = arith.constant 0 : index
    %2 = vector.load %arg3[%c0_2, %c0_3, %c0_4] : memref<1x8x32xf32, #tpu.memory_space<vmem>>, vector<1x8x32xf32>
    %3 = vector.shape_cast %2 : vector<1x8x32xf32> to vector<8x32xf32>
    %c0_5 = arith.constant 0 : index
    %c0_6 = arith.constant 0 : index
    %4 = vector.load %arg12[%c0_5, %c0_6] : memref<1x32xf32, #tpu.memory_space<vmem>>, vector<1x32xf32>
    %5 = vector.shape_cast %4 : vector<1x32xf32> to vector<32xf32>
    %c0_7 = arith.constant 0 : index
    %c0_8 = arith.constant 0 : index
    %6 = vector.load %arg13[%c0_7, %c0_8] : memref<1x32xf32, #tpu.memory_space<vmem>>, vector<1x32xf32>
    %7 = vector.shape_cast %6 : vector<1x32xf32> to vector<32xf32>
    %cst = arith.constant dense<0.000000e+00> : vector<8xf32>
    %8 = vector.multi_reduction <add>, %1, %cst [1] : vector<8x32xf32> to vector<8xf32>
    %9 = vector.shape_cast %8 : vector<8xf32> to vector<8x1xf32>
    %cst_9 = arith.constant 3.200000e+01 : f32
    %10 = vector.broadcast %cst_9 : f32 to vector<8x1xf32>
    %11 = arith.divf %9, %10 : vector<8x1xf32>
    %12 = vector.broadcast %11 : vector<8x1xf32> to vector<8x32xf32>
    %13 = arith.subf %1, %12 : vector<8x32xf32>
    %14 = arith.mulf %13, %13 : vector<8x32xf32>
    %cst_10 = arith.constant dense<0.000000e+00> : vector<8xf32>
    %15 = vector.multi_reduction <add>, %14, %cst_10 [1] : vector<8x32xf32> to vector<8xf32>
    %16 = vector.shape_cast %15 : vector<8xf32> to vector<8x1xf32>
    %cst_11 = arith.constant 0.0322580636 : f32
    %17 = vector.broadcast %cst_11 : f32 to vector<8x1xf32>
    %18 = arith.mulf %16, %17 : vector<8x1xf32>
    %19 = math.sqrt %18 : vector<8x1xf32>
    %cst_12 = arith.constant 9.99999997E-7 : f32
    %20 = vector.broadcast %cst_12 : f32 to vector<8x1xf32>
    %21 = arith.addf %19, %20 : vector<8x1xf32>
    %22 = tpu.reciprocal %21 {approx = true} : vector<8x1xf32> -> vector<8x1xf32>
    %23 = vector.broadcast %11 : vector<8x1xf32> to vector<8x32xf32>
    %24 = arith.subf %1, %23 : vector<8x32xf32>
    %25 = vector.shape_cast %5 : vector<32xf32> to vector<1x32xf32>
    %26 = vector.broadcast %25 : vector<1x32xf32> to vector<8x32xf32>
    %27 = arith.mulf %26, %24 : vector<8x32xf32>
    %28 = vector.broadcast %22 : vector<8x1xf32> to vector<8x32xf32>
    %29 = arith.mulf %27, %28 : vector<8x32xf32>
    %30 = vector.shape_cast %7 : vector<32xf32> to vector<1x32xf32>
    %31 = vector.broadcast %30 : vector<1x32xf32> to vector<8x32xf32>
    %32 = arith.addf %29, %31 : vector<8x32xf32>
    %cst_13 = arith.constant dense<0.000000e+00> : vector<8xf32>
    %33 = vector.multi_reduction <add>, %3, %cst_13 [1] : vector<8x32xf32> to vector<8xf32>
    %34 = vector.shape_cast %33 : vector<8xf32> to vector<8x1xf32>
    %cst_14 = arith.constant 3.200000e+01 : f32
    %35 = vector.broadcast %cst_14 : f32 to vector<8x1xf32>
    %36 = arith.divf %34, %35 : vector<8x1xf32>
    %37 = vector.broadcast %36 : vector<8x1xf32> to vector<8x32xf32>
    %38 = arith.subf %3, %37 : vector<8x32xf32>
    %39 = arith.mulf %38, %38 : vector<8x32xf32>
    %cst_15 = arith.constant dense<0.000000e+00> : vector<8xf32>
    %40 = vector.multi_reduction <add>, %39, %cst_15 [1] : vector<8x32xf32> to vector<8xf32>
    %41 = vector.shape_cast %40 : vector<8xf32> to vector<8x1xf32>
    %cst_16 = arith.constant 0.0322580636 : f32
    %42 = vector.broadcast %cst_16 : f32 to vector<8x1xf32>
    %43 = arith.mulf %41, %42 : vector<8x1xf32>
    %44 = math.sqrt %43 : vector<8x1xf32>
    %cst_17 = arith.constant 9.99999997E-7 : f32
    %45 = vector.broadcast %cst_17 : f32 to vector<8x1xf32>
    %46 = arith.addf %44, %45 : vector<8x1xf32>
    %47 = tpu.reciprocal %46 {approx = true} : vector<8x1xf32> -> vector<8x1xf32>
    %48 = vector.broadcast %36 : vector<8x1xf32> to vector<8x32xf32>
    %49 = arith.subf %3, %48 : vector<8x32xf32>
    %50 = vector.shape_cast %5 : vector<32xf32> to vector<1x32xf32>
    %51 = vector.broadcast %50 : vector<1x32xf32> to vector<8x32xf32>
    %52 = arith.mulf %51, %49 : vector<8x32xf32>
    %53 = vector.broadcast %47 : vector<8x1xf32> to vector<8x32xf32>
    %54 = arith.mulf %52, %53 : vector<8x32xf32>
    %55 = vector.shape_cast %7 : vector<32xf32> to vector<1x32xf32>
    %56 = vector.broadcast %55 : vector<1x32xf32> to vector<8x32xf32>
    %57 = arith.addf %54, %56 : vector<8x32xf32>
    %58 = arith.truncf %32 : vector<8x32xf32> to vector<8x32xbf16>
    %c0_18 = arith.constant 0 : index
    %c0_19 = arith.constant 0 : index
    %59 = vector.load %arg4[%c0_18, %c0_19] : memref<32x32xbf16, #tpu.memory_space<vmem>>, vector<32x32xbf16>
    %cst_20 = arith.constant dense<0.000000e+00> : vector<8x32xf32>
    %60 = tpu.matmul %58, %59, %cst_20 {dimension_numbers = #tpu.dot_dimension_numbers<[1], [0], [0], [1], [0, 0, 1, 1], [], []>} : vector<8x32xbf16>, vector<32x32xbf16>, vector<8x32xf32> -> vector<8x32xf32>
    %c0_21 = arith.constant 0 : index
    %c0_22 = arith.constant 0 : index
    %61 = vector.load %arg5[%c0_21, %c0_22] : memref<1x32xf32, #tpu.memory_space<vmem>>, vector<1x32xf32>
    %62 = vector.shape_cast %61 : vector<1x32xf32> to vector<32xf32>
    %63 = vector.shape_cast %62 : vector<32xf32> to vector<1x32xf32>
    %64 = vector.broadcast %63 : vector<1x32xf32> to vector<8x32xf32>
    %65 = arith.addf %60, %64 : vector<8x32xf32>
    %66 = arith.truncf %57 : vector<8x32xf32> to vector<8x32xbf16>
    %c0_23 = arith.constant 0 : index
    %c0_24 = arith.constant 0 : index
    %67 = vector.load %arg6[%c0_23, %c0_24] : memref<32x32xbf16, #tpu.memory_space<vmem>>, vector<32x32xbf16>
    %cst_25 = arith.constant dense<0.000000e+00> : vector<8x32xf32>
    %68 = tpu.matmul %66, %67, %cst_25 {dimension_numbers = #tpu.dot_dimension_numbers<[1], [0], [0], [1], [0, 0, 1, 1], [], []>} : vector<8x32xbf16>, vector<32x32xbf16>, vector<8x32xf32> -> vector<8x32xf32>
    %c0_26 = arith.constant 0 : index
    %c0_27 = arith.constant 0 : index
    %69 = vector.load %arg7[%c0_26, %c0_27] : memref<1x32xf32, #tpu.memory_space<vmem>>, vector<1x32xf32>
    %70 = vector.shape_cast %69 : vector<1x32xf32> to vector<32xf32>
    %71 = vector.shape_cast %70 : vector<32xf32> to vector<1x32xf32>
    %72 = vector.broadcast %71 : vector<1x32xf32> to vector<8x32xf32>
    %73 = arith.addf %68, %72 : vector<8x32xf32>
    %74 = arith.truncf %57 : vector<8x32xf32> to vector<8x32xbf16>
    %c0_28 = arith.constant 0 : index
    %c0_29 = arith.constant 0 : index
    %75 = vector.load %arg8[%c0_28, %c0_29] : memref<32x32xbf16, #tpu.memory_space<vmem>>, vector<32x32xbf16>
    %cst_30 = arith.constant dense<0.000000e+00> : vector<8x32xf32>
    %76 = tpu.matmul %74, %75, %cst_30 {dimension_numbers = #tpu.dot_dimension_numbers<[1], [0], [0], [1], [0, 0, 1, 1], [], []>} : vector<8x32xbf16>, vector<32x32xbf16>, vector<8x32xf32> -> vector<8x32xf32>
    %c0_31 = arith.constant 0 : index
    %c0_32 = arith.constant 0 : index
    %77 = vector.load %arg9[%c0_31, %c0_32] : memref<1x32xf32, #tpu.memory_space<vmem>>, vector<1x32xf32>
    %78 = vector.shape_cast %77 : vector<1x32xf32> to vector<32xf32>
    %79 = vector.shape_cast %78 : vector<32xf32> to vector<1x32xf32>
    %80 = vector.broadcast %79 : vector<1x32xf32> to vector<8x32xf32>
    %81 = arith.addf %76, %80 : vector<8x32xf32>
    %82 = vector.extract_strided_slice %65 {offsets = [0, 0], sizes = [8, 8], strides = [1, 1]} : vector<8x32xf32> to vector<8x8xf32>
    %83 = vector.shape_cast %82 : vector<8x8xf32> to vector<1x8x8xf32>
    %84 = vector.extract_strided_slice %65 {offsets = [0, 8], sizes = [8, 8], strides = [1, 1]} : vector<8x32xf32> to vector<8x8xf32>
    %85 = vector.shape_cast %84 : vector<8x8xf32> to vector<1x8x8xf32>
    %86 = vector.extract_strided_slice %65 {offsets = [0, 16], sizes = [8, 8], strides = [1, 1]} : vector<8x32xf32> to vector<8x8xf32>
    %87 = vector.shape_cast %86 : vector<8x8xf32> to vector<1x8x8xf32>
    %88 = vector.extract_strided_slice %65 {offsets = [0, 24], sizes = [8, 8], strides = [1, 1]} : vector<8x32xf32> to vector<8x8xf32>
    %89 = vector.shape_cast %88 : vector<8x8xf32> to vector<1x8x8xf32>
    %90 = tpu.concatenate %83, %85, %87, %89 in 0 : vector<1x8x8xf32>, vector<1x8x8xf32>, vector<1x8x8xf32>, vector<1x8x8xf32> -> vector<4x8x8xf32>
    %91 = arith.truncf %90 : vector<4x8x8xf32> to vector<4x8x8xbf16>
    %92 = vector.extract_strided_slice %73 {offsets = [0, 0], sizes = [8, 8], strides = [1, 1]} : vector<8x32xf32> to vector<8x8xf32>
    %93 = vector.shape_cast %92 : vector<8x8xf32> to vector<1x8x8xf32>
    %94 = vector.extract_strided_slice %73 {offsets = [0, 8], sizes = [8, 8], strides = [1, 1]} : vector<8x32xf32> to vector<8x8xf32>
    %95 = vector.shape_cast %94 : vector<8x8xf32> to vector<1x8x8xf32>
    %96 = vector.extract_strided_slice %73 {offsets = [0, 16], sizes = [8, 8], strides = [1, 1]} : vector<8x32xf32> to vector<8x8xf32>
    %97 = vector.shape_cast %96 : vector<8x8xf32> to vector<1x8x8xf32>
    %98 = vector.extract_strided_slice %73 {offsets = [0, 24], sizes = [8, 8], strides = [1, 1]} : vector<8x32xf32> to vector<8x8xf32>
    %99 = vector.shape_cast %98 : vector<8x8xf32> to vector<1x8x8xf32>
    %100 = tpu.concatenate %93, %95, %97, %99 in 0 : vector<1x8x8xf32>, vector<1x8x8xf32>, vector<1x8x8xf32>, vector<1x8x8xf32> -> vector<4x8x8xf32>
    %101 = arith.truncf %100 : vector<4x8x8xf32> to vector<4x8x8xbf16>
    %102 = vector.extract_strided_slice %81 {offsets = [0, 0], sizes = [8, 8], strides = [1, 1]} : vector<8x32xf32> to vector<8x8xf32>
    %103 = vector.shape_cast %102 : vector<8x8xf32> to vector<1x8x8xf32>
    %104 = vector.extract_strided_slice %81 {offsets = [0, 8], sizes = [8, 8], strides = [1, 1]} : vector<8x32xf32> to vector<8x8xf32>
    %105 = vector.shape_cast %104 : vector<8x8xf32> to vector<1x8x8xf32>
    %106 = vector.extract_strided_slice %81 {offsets = [0, 16], sizes = [8, 8], strides = [1, 1]} : vector<8x32xf32> to vector<8x8xf32>
    %107 = vector.shape_cast %106 : vector<8x8xf32> to vector<1x8x8xf32>
    %108 = vector.extract_strided_slice %81 {offsets = [0, 24], sizes = [8, 8], strides = [1, 1]} : vector<8x32xf32> to vector<8x8xf32>
    %109 = vector.shape_cast %108 : vector<8x8xf32> to vector<1x8x8xf32>
    %110 = tpu.concatenate %103, %105, %107, %109 in 0 : vector<1x8x8xf32>, vector<1x8x8xf32>, vector<1x8x8xf32>, vector<1x8x8xf32> -> vector<4x8x8xf32>
    %111 = arith.truncf %110 : vector<4x8x8xf32> to vector<4x8x8xbf16>
    "tpu.trace_start"() <{level = 10 : i32, message = "hqd,hkd->hqk"}> : () -> ()
    %cst_33 = arith.constant dense<0.000000e+00> : vector<4x8x8xf32>
    %112 = tpu.matmul %91, %101, %cst_33 {dimension_numbers = #tpu.dot_dimension_numbers<[2], [2], [1], [1], [0, 0, 0, 1, 1, 1], [0], [0]>} : vector<4x8x8xbf16>, vector<4x8x8xbf16>, vector<4x8x8xf32> -> vector<4x8x8xf32>
    "tpu.trace_stop"() : () -> ()
    %cst_34 = arith.constant 0.353553385 : f32
    %113 = vector.broadcast %cst_34 : f32 to vector<4x8x8xf32>
    %114 = arith.mulf %112, %113 : vector<4x8x8xf32>
    %cst_35 = arith.constant dense<0xFF800000> : vector<4x8xf32>
    %115 = vector.multi_reduction <maximumf>, %114, %cst_35 [2] : vector<4x8x8xf32> to vector<4x8xf32>
    %116 = vector.shape_cast %115 : vector<4x8xf32> to vector<4x8x1xf32>
    %117 = vector.broadcast %116 : vector<4x8x1xf32> to vector<4x8x8xf32>
    %118 = arith.subf %114, %117 : vector<4x8x8xf32>
    %119 = math.exp %118 : vector<4x8x8xf32>
    %cst_36 = arith.constant dense<0.000000e+00> : vector<4x8xf32>
    %120 = vector.multi_reduction <add>, %119, %cst_36 [2] : vector<4x8x8xf32> to vector<4x8xf32>
    %121 = vector.shape_cast %120 : vector<4x8xf32> to vector<4x8x1xf32>
    %122 = tpu.reciprocal %121 {approx = true} : vector<4x8x1xf32> -> vector<4x8x1xf32>
    %123 = vector.broadcast %122 : vector<4x8x1xf32> to vector<4x8x8xf32>
    %124 = arith.mulf %119, %123 : vector<4x8x8xf32>
    %125 = arith.truncf %124 : vector<4x8x8xf32> to vector<4x8x8xbf16>
    "tpu.trace_start"() <{level = 10 : i32, message = "hqk,hkd->hqd"}> : () -> ()
    %cst_37 = arith.constant dense<0.000000e+00> : vector<4x8x8xf32>
    %126 = tpu.matmul %125, %111, %cst_37 {dimension_numbers = #tpu.dot_dimension_numbers<[2], [1], [1], [2], [0, 0, 0, 1, 1, 2], [0], [0]>} : vector<4x8x8xbf16>, vector<4x8x8xbf16>, vector<4x8x8xf32> -> vector<4x8x8xf32>
    "tpu.trace_stop"() : () -> ()
    %127 = vector.extract_strided_slice %126 {offsets = [0, 0, 0], sizes = [1, 8, 8], strides = [1, 1, 1]} : vector<4x8x8xf32> to vector<1x8x8xf32>
    %128 = vector.shape_cast %127 : vector<1x8x8xf32> to vector<8x8xf32>
    %129 = vector.extract_strided_slice %126 {offsets = [1, 0, 0], sizes = [1, 8, 8], strides = [1, 1, 1]} : vector<4x8x8xf32> to vector<1x8x8xf32>
    %130 = vector.shape_cast %129 : vector<1x8x8xf32> to vector<8x8xf32>
    %131 = vector.extract_strided_slice %126 {offsets = [2, 0, 0], sizes = [1, 8, 8], strides = [1, 1, 1]} : vector<4x8x8xf32> to vector<1x8x8xf32>
    %132 = vector.shape_cast %131 : vector<1x8x8xf32> to vector<8x8xf32>
    %133 = vector.extract_strided_slice %126 {offsets = [3, 0, 0], sizes = [1, 8, 8], strides = [1, 1, 1]} : vector<4x8x8xf32> to vector<1x8x8xf32>
    %134 = vector.shape_cast %133 : vector<1x8x8xf32> to vector<8x8xf32>
    %135 = tpu.concatenate %128, %130, %132, %134 in 1 : vector<8x8xf32>, vector<8x8xf32>, vector<8x8xf32>, vector<8x8xf32> -> vector<8x32xf32>
    %136 = arith.truncf %135 : vector<8x32xf32> to vector<8x32xbf16>
    %c0_38 = arith.constant 0 : index
    %c0_39 = arith.constant 0 : index
    %137 = vector.load %arg10[%c0_38, %c0_39] : memref<32x32xbf16, #tpu.memory_space<vmem>>, vector<32x32xbf16>
    %cst_40 = arith.constant dense<0.000000e+00> : vector<8x32xf32>
    %138 = tpu.matmul %136, %137, %cst_40 {dimension_numbers = #tpu.dot_dimension_numbers<[1], [0], [0], [1], [0, 0, 1, 1], [], []>} : vector<8x32xbf16>, vector<32x32xbf16>, vector<8x32xf32> -> vector<8x32xf32>
    %c0_41 = arith.constant 0 : index
    %c0_42 = arith.constant 0 : index
    %139 = vector.load %arg11[%c0_41, %c0_42] : memref<1x32xf32, #tpu.memory_space<vmem>>, vector<1x32xf32>
    %140 = vector.shape_cast %139 : vector<1x32xf32> to vector<32xf32>
    %141 = vector.shape_cast %140 : vector<32xf32> to vector<1x32xf32>
    %142 = vector.broadcast %141 : vector<1x32xf32> to vector<8x32xf32>
    %143 = arith.addf %138, %142 : vector<8x32xf32>
    %144 = arith.addf %1, %143 : vector<8x32xf32>
    %c0_43 = arith.constant 0 : index
    %c0_44 = arith.constant 0 : index
    %145 = vector.load %arg18[%c0_43, %c0_44] : memref<1x32xf32, #tpu.memory_space<vmem>>, vector<1x32xf32>
    %146 = vector.shape_cast %145 : vector<1x32xf32> to vector<32xf32>
    %c0_45 = arith.constant 0 : index
    %c0_46 = arith.constant 0 : index
    %147 = vector.load %arg19[%c0_45, %c0_46] : memref<1x32xf32, #tpu.memory_space<vmem>>, vector<1x32xf32>
    %148 = vector.shape_cast %147 : vector<1x32xf32> to vector<32xf32>
    %cst_47 = arith.constant dense<0.000000e+00> : vector<8xf32>
    %149 = vector.multi_reduction <add>, %144, %cst_47 [1] : vector<8x32xf32> to vector<8xf32>
    %150 = vector.shape_cast %149 : vector<8xf32> to vector<8x1xf32>
    %cst_48 = arith.constant 3.200000e+01 : f32
    %151 = vector.broadcast %cst_48 : f32 to vector<8x1xf32>
    %152 = arith.divf %150, %151 : vector<8x1xf32>
    %153 = vector.broadcast %152 : vector<8x1xf32> to vector<8x32xf32>
    %154 = arith.subf %144, %153 : vector<8x32xf32>
    %155 = arith.mulf %154, %154 : vector<8x32xf32>
    %cst_49 = arith.constant dense<0.000000e+00> : vector<8xf32>
    %156 = vector.multi_reduction <add>, %155, %cst_49 [1] : vector<8x32xf32> to vector<8xf32>
    %157 = vector.shape_cast %156 : vector<8xf32> to vector<8x1xf32>
    %cst_50 = arith.constant 0.0322580636 : f32
    %158 = vector.broadcast %cst_50 : f32 to vector<8x1xf32>
    %159 = arith.mulf %157, %158 : vector<8x1xf32>
    %160 = math.sqrt %159 : vector<8x1xf32>
    %cst_51 = arith.constant 9.99999997E-7 : f32
    %161 = vector.broadcast %cst_51 : f32 to vector<8x1xf32>
    %162 = arith.addf %160, %161 : vector<8x1xf32>
    %163 = tpu.reciprocal %162 {approx = true} : vector<8x1xf32> -> vector<8x1xf32>
    %164 = vector.broadcast %152 : vector<8x1xf32> to vector<8x32xf32>
    %165 = arith.subf %144, %164 : vector<8x32xf32>
    %166 = vector.shape_cast %146 : vector<32xf32> to vector<1x32xf32>
    %167 = vector.broadcast %166 : vector<1x32xf32> to vector<8x32xf32>
    %168 = arith.mulf %167, %165 : vector<8x32xf32>
    %169 = vector.broadcast %163 : vector<8x1xf32> to vector<8x32xf32>
    %170 = arith.mulf %168, %169 : vector<8x32xf32>
    %171 = vector.shape_cast %148 : vector<32xf32> to vector<1x32xf32>
    %172 = vector.broadcast %171 : vector<1x32xf32> to vector<8x32xf32>
    %173 = arith.addf %170, %172 : vector<8x32xf32>
    %174 = arith.truncf %173 : vector<8x32xf32> to vector<8x32xbf16>
    %c0_52 = arith.constant 0 : index
    %c0_53 = arith.constant 0 : index
    %175 = vector.load %arg14[%c0_52, %c0_53] : memref<32x128xbf16, #tpu.memory_space<vmem>>, vector<32x128xbf16>
    %cst_54 = arith.constant dense<0.000000e+00> : vector<8x128xf32>
    %176 = tpu.matmul %174, %175, %cst_54 {dimension_numbers = #tpu.dot_dimension_numbers<[1], [0], [0], [1], [0, 0, 1, 1], [], []>} : vector<8x32xbf16>, vector<32x128xbf16>, vector<8x128xf32> -> vector<8x128xf32>
    %c0_55 = arith.constant 0 : index
    %c0_56 = arith.constant 0 : index
    %177 = vector.load %arg15[%c0_55, %c0_56] : memref<1x128xf32, #tpu.memory_space<vmem>>, vector<1x128xf32>
    %178 = vector.shape_cast %177 : vector<1x128xf32> to vector<128xf32>
    %179 = vector.shape_cast %178 : vector<128xf32> to vector<1x128xf32>
    %180 = vector.broadcast %179 : vector<1x128xf32> to vector<8x128xf32>
    %181 = arith.addf %176, %180 : vector<8x128xf32>
    %cst_57 = arith.constant 5.000000e-01 : f32
    %182 = vector.broadcast %cst_57 : f32 to vector<8x128xf32>
    %183 = arith.mulf %182, %181 : vector<8x128xf32>
    %cst_58 = arith.constant 4.471500e-02 : f32
    %184 = vector.broadcast %cst_58 : f32 to vector<8x128xf32>
    %185 = arith.mulf %184, %181 : vector<8x128xf32>
    %186 = arith.mulf %185, %181 : vector<8x128xf32>
    %187 = arith.mulf %186, %181 : vector<8x128xf32>
    %188 = arith.addf %181, %187 : vector<8x128xf32>
    %cst_59 = arith.constant 0.797884583 : f32
    %189 = vector.broadcast %cst_59 : f32 to vector<8x128xf32>
    %190 = arith.mulf %189, %188 : vector<8x128xf32>
    %191 = math.tanh %190 : vector<8x128xf32>
    %cst_60 = arith.constant 1.000000e+00 : f32
    %192 = vector.broadcast %cst_60 : f32 to vector<8x128xf32>
    %193 = arith.addf %192, %191 : vector<8x128xf32>
    %194 = arith.mulf %183, %193 : vector<8x128xf32>
    %195 = arith.truncf %194 : vector<8x128xf32> to vector<8x128xbf16>
    %c0_61 = arith.constant 0 : index
    %c0_62 = arith.constant 0 : index
    %196 = vector.load %arg16[%c0_61, %c0_62] : memref<128x32xbf16, #tpu.memory_space<vmem>>, vector<128x32xbf16>
    %cst_63 = arith.constant dense<0.000000e+00> : vector<8x32xf32>
    %197 = tpu.matmul %195, %196, %cst_63 {dimension_numbers = #tpu.dot_dimension_numbers<[1], [0], [0], [1], [0, 0, 1, 1], [], []>} : vector<8x128xbf16>, vector<128x32xbf16>, vector<8x32xf32> -> vector<8x32xf32>
    %c0_64 = arith.constant 0 : index
    %c0_65 = arith.constant 0 : index
    %198 = vector.load %arg17[%c0_64, %c0_65] : memref<1x32xf32, #tpu.memory_space<vmem>>, vector<1x32xf32>
    %199 = vector.shape_cast %198 : vector<1x32xf32> to vector<32xf32>
    %200 = vector.shape_cast %199 : vector<32xf32> to vector<1x32xf32>
    %201 = vector.broadcast %200 : vector<1x32xf32> to vector<8x32xf32>
    %202 = arith.addf %197, %201 : vector<8x32xf32>
    %203 = arith.addf %144, %202 : vector<8x32xf32>
    %c0_66 = arith.constant 0 : index
    %c0_67 = arith.constant 0 : index
    %c0_68 = arith.constant 0 : index
    %204 = vector.load %arg20[%c0_66, %c0_67, %c0_68] : memref<1x8x32xf32, #tpu.memory_space<vmem>>, vector<1x8x32xf32>
    %205 = vector.shape_cast %204 : vector<1x8x32xf32> to vector<8x32xf32>
    %206 = vector.shape_cast %203 : vector<8x32xf32> to vector<1x8x32xf32>
    tpu.vector_store %arg20[%c0_66, %c0_67, %c0_68], %206 {strides = array<i32>} : memref<1x8x32xf32, #tpu.memory_space<vmem>>, vector<1x8x32xf32>,
    return
  }
  func.func @transform_0(%arg0: i32, %arg1: i32) -> (i32, i32, i32) {
    %c0_i32 = arith.constant 0 : i32
    %c0_i32_0 = arith.constant 0 : i32
    return %arg0, %arg1, %c0_i32 : i32, i32, i32
  }
  func.func @transform_1(%arg0: i32, %arg1: i32) -> (i32, i32, i32) {
    %c0_i32 = arith.constant 0 : i32
    %c0_i32_0 = arith.constant 0 : i32
    %c0_i32_1 = arith.constant 0 : i32
    return %arg0, %c0_i32, %c0_i32_0 : i32, i32, i32
  }
  func.func @transform_2(%arg0: i32, %arg1: i32) -> (i32, i32) {
    %c0_i32 = arith.constant 0 : i32
    %c0_i32_0 = arith.constant 0 : i32
    %c0_i32_1 = arith.constant 0 : i32
    return %c0_i32, %c0_i32_0 : i32, i32
  }
  func.func @transform_3(%arg0: i32, %arg1: i32) -> (i32, i32) {
    %c0_i32 = arith.constant 0 : i32
    %c0_i32_0 = arith.constant 0 : i32
    %c0_i32_1 = arith.constant 0 : i32
    return %c0_i32, %c0_i32_0 : i32, i32
  }
  func.func @transform_4(%arg0: i32, %arg1: i32) -> (i32, i32) {
    %c0_i32 = arith.constant 0 : i32
    %c0_i32_0 = arith.constant 0 : i32
    %c0_i32_1 = arith.constant 0 : i32
    return %c0_i32, %c0_i32_0 : i32, i32
  }
  func.func @transform_5(%arg0: i32, %arg1: i32) -> (i32, i32) {
    %c0_i32 = arith.constant 0 : i32
    %c0_i32_0 = arith.constant 0 : i32
    %c0_i32_1 = arith.constant 0 : i32
    return %c0_i32, %c0_i32_0 : i32, i32
  }
  func.func @transform_6(%arg0: i32, %arg1: i32) -> (i32, i32) {
    %c0_i32 = arith.constant 0 : i32
    %c0_i32_0 = arith.constant 0 : i32
    %c0_i32_1 = arith.constant 0 : i32
    return %c0_i32, %c0_i32_0 : i32, i32
  }
  func.func @transform_7(%arg0: i32, %arg1: i32) -> (i32, i32) {
    %c0_i32 = arith.constant 0 : i32
    %c0_i32_0 = arith.constant 0 : i32
    %c0_i32_1 = arith.constant 0 : i32
    return %c0_i32, %c0_i32_0 : i32, i32
  }
  func.func @transform_8(%arg0: i32, %arg1: i32) -> (i32, i32) {
    %c0_i32 = arith.constant 0 : i32
    %c0_i32_0 = arith.constant 0 : i32
    %c0_i32_1 = arith.constant 0 : i32
    return %c0_i32, %c0_i32_0 : i32, i32
  }
  func.func @transform_9(%arg0: i32, %arg1: i32) -> (i32, i32) {
    %c0_i32 = arith.constant 0 : i32
    %c0_i32_0 = arith.constant 0 : i32
    %c0_i32_1 = arith.constant 0 : i32
    return %c0_i32, %c0_i32_0 : i32, i32
  }
  func.func @transform_10(%arg0: i32, %arg1: i32) -> (i32, i32) {
    %c0_i32 = arith.constant 0 : i32
    %c0_i32_0 = arith.constant 0 : i32
    %c0_i32_1 = arith.constant 0 : i32
    return %c0_i32, %c0_i32_0 : i32, i32
  }
  func.func @transform_11(%arg0: i32, %arg1: i32) -> (i32, i32) {
    %c0_i32 = arith.constant 0 : i32
    %c0_i32_0 = arith.constant 0 : i32
    %c0_i32_1 = arith.constant 0 : i32
    return %c0_i32, %c0_i32_0 : i32, i32
  }
  func.func @transform_12(%arg0: i32, %arg1: i32) -> (i32, i32) {
    %c0_i32 = arith.constant 0 : i32
    %c0_i32_0 = arith.constant 0 : i32
    %c0_i32_1 = arith.constant 0 : i32
    return %c0_i32, %c0_i32_0 : i32, i32
  }
  func.func @transform_13(%arg0: i32, %arg1: i32) -> (i32, i32) {
    %c0_i32 = arith.constant 0 : i32
    %c0_i32_0 = arith.constant 0 : i32
    %c0_i32_1 = arith.constant 0 : i32
    return %c0_i32, %c0_i32_0 : i32, i32
  }
  func.func @transform_14(%arg0: i32, %arg1: i32) -> (i32, i32) {
    %c0_i32 = arith.constant 0 : i32
    %c0_i32_0 = arith.constant 0 : i32
    %c0_i32_1 = arith.constant 0 : i32
    return %c0_i32, %c0_i32_0 : i32, i32
  }
  func.func @transform_15(%arg0: i32, %arg1: i32) -> (i32, i32) {
    %c0_i32 = arith.constant 0 : i32
    %c0_i32_0 = arith.constant 0 : i32
    %c0_i32_1 = arith.constant 0 : i32
    return %c0_i32, %c0_i32_0 : i32, i32
  }
  func.func @transform_16(%arg0: i32, %arg1: i32) -> (i32, i32) {
    %c0_i32 = arith.constant 0 : i32
    %c0_i32_0 = arith.constant 0 : i32
    %c0_i32_1 = arith.constant 0 : i32
    return %c0_i32, %c0_i32_0 : i32, i32
  }
  func.func @transform_17(%arg0: i32, %arg1: i32) -> (i32, i32) {
    %c0_i32 = arith.constant 0 : i32
    %c0_i32_0 = arith.constant 0 : i32
    %c0_i32_1 = arith.constant 0 : i32
    return %c0_i32, %c0_i32_0 : i32, i32
  }
  func.func @transform_18(%arg0: i32, %arg1: i32) -> (i32, i32, i32) {
    %c0_i32 = arith.constant 0 : i32
    %c0_i32_0 = arith.constant 0 : i32
    return %arg0, %arg1, %c0_i32 : i32, i32, i32
  }
}

module attributes {stable_mosaic.version = 11 : i64} {
  func.func @_transformer_block_kernel(%arg0: i32, %arg1: i32, %arg2: memref<1x8x32xf32, #tpu.memory_space<vmem>>, %arg3: memref<1x8x32xf32, #tpu.memory_space<vmem>>, %arg4: memref<32x32xbf16, #tpu.memory_space<vmem>>, %arg5: memref<1x32xf32, #tpu.memory_space<vmem>>, %arg6: memref<32x32xbf16, #tpu.memory_space<vmem>>, %arg7: memref<1x32xf32, #tpu.memory_space<vmem>>, %arg8: memref<32x32xbf16, #tpu.memory_space<vmem>>, %arg9: memref<1x32xf32, #tpu.memory_space<vmem>>, %arg10: memref<32x32xbf16, #tpu.memory_space<vmem>>, %arg11: memref<1x32xf32, #tpu.memory_space<vmem>>, %arg12: memref<1x32xf32, #tpu.memory_space<vmem>>, %arg13: memref<1x32xf32, #tpu.memory_space<vmem>>, %arg14: memref<32x128xbf16, #tpu.memory_space<vmem>>, %arg15: memref<1x128xf32, #tpu.memory_space<vmem>>, %arg16: memref<128x32xbf16, #tpu.memory_space<vmem>>, %arg17: memref<1x32xf32, #tpu.memory_space<vmem>>, %arg18: memref<1x32xf32, #tpu.memory_space<vmem>>, %arg19: memref<1x32xf32, #tpu.memory_space<vmem>>, %arg20: memref<1x8x32xf32, #tpu.memory_space<vmem>>) attributes {dimension_semantics = [#tpu.dimension_semantics<parallel>, #tpu.dimension_semantics<parallel>], iteration_bounds = array<i64: 2, 1>, scalar_prefetch = 0 : i64, scratch_operands = 0 : i64, tpu.core_type = #tpu.core_type<tc>, window_params = [{transform_indices = @transform_0, window_bounds = array<i64: 1, 8, 32>}, {transform_indices = @transform_1, window_bounds = array<i64: 1, 8, 32>}, {pipeline_mode = #tpu.pipeline_mode<synchronous>, transform_indices = @transform_2, window_bounds = array<i64: 32, 32>}, {pipeline_mode = #tpu.pipeline_mode<synchronous>, transform_indices = @transform_3, window_bounds = array<i64: 1, 32>}, {pipeline_mode = #tpu.pipeline_mode<synchronous>, transform_indices = @transform_4, window_bounds = array<i64: 32, 32>}, {pipeline_mode = #tpu.pipeline_mode<synchronous>, transform_indices = @transform_5, window_bounds = array<i64: 1, 32>}, {pipeline_mode = #tpu.pipeline_mode<synchronous>, transform_indices = @transform_6, window_bounds = array<i64: 32, 32>}, {pipeline_mode = #tpu.pipeline_mode<synchronous>, transform_indices = @transform_7, window_bounds = array<i64: 1, 32>}, {pipeline_mode = #tpu.pipeline_mode<synchronous>, transform_indices = @transform_8, window_bounds = array<i64: 32, 32>}, {pipeline_mode = #tpu.pipeline_mode<synchronous>, transform_indices = @transform_9, window_bounds = array<i64: 1, 32>}, {pipeline_mode = #tpu.pipeline_mode<synchronous>, transform_indices = @transform_10, window_bounds = array<i64: 1, 32>}, {pipeline_mode = #tpu.pipeline_mode<synchronous>, transform_indices = @transform_11, window_bounds = array<i64: 1, 32>}, {pipeline_mode = #tpu.pipeline_mode<synchronous>, transform_indices = @transform_12, window_bounds = array<i64: 32, 128>}, {pipeline_mode = #tpu.pipeline_mode<synchronous>, transform_indices = @transform_13, window_bounds = array<i64: 1, 128>}, {pipeline_mode = #tpu.pipeline_mode<synchronous>, transform_indices = @transform_14, window_bounds = array<i64: 128, 32>}, {pipeline_mode = #tpu.pipeline_mode<synchronous>, transform_indices = @transform_15, window_bounds = array<i64: 1, 32>}, {pipeline_mode = #tpu.pipeline_mode<synchronous>, transform_indices = @transform_16, window_bounds = array<i64: 1, 32>}, {pipeline_mode = #tpu.pipeline_mode<synchronous>, transform_indices = @transform_17, window_bounds = array<i64: 1, 32>}, {transform_indices = @transform_18, window_bounds = array<i64: 1, 8, 32>}]} {
    %c0 = arith.constant 0 : index
    %c0_0 = arith.constant 0 : index
    %c0_1 = arith.constant 0 : index
    %0 = vector.load %arg2[%c0, %c0_0, %c0_1] : memref<1x8x32xf32, #tpu.memory_space<vmem>>, vector<1x8x32xf32>
    %1 = vector.shape_cast %0 : vector<1x8x32xf32> to vector<8x32xf32>
    %c0_2 = arith.constant 0 : index
    %c0_3 = arith.constant 0 : index
    %c0_4 = arith.constant 0 : index
    %2 = vector.load %arg3[%c0_2, %c0_3, %c0_4] : memref<1x8x32xf32, #tpu.memory_space<vmem>>, vector<1x8x32xf32>
    %3 = vector.shape_cast %2 : vector<1x8x32xf32> to vector<8x32xf32>
    %c0_5 = arith.constant 0 : index
    %c0_6 = arith.constant 0 : index
    %4 = vector.load %arg12[%c0_5, %c0_6] : memref<1x32xf32, #tpu.memory_space<vmem>>, vector<1x32xf32>
    %5 = vector.shape_cast %4 : vector<1x32xf32> to vector<32xf32>
    %c0_7 = arith.constant 0 : index
    %c0_8 = arith.constant 0 : index
    %6 = vector.load %arg13[%c0_7, %c0_8] : memref<1x32xf32, #tpu.memory_space<vmem>>, vector<1x32xf32>
    %7 = vector.shape_cast %6 : vector<1x32xf32> to vector<32xf32>
    %cst = arith.constant dense<0.000000e+00> : vector<8xf32>
    %8 = vector.multi_reduction <add>, %1, %cst [1] : vector<8x32xf32> to vector<8xf32>
    %9 = vector.shape_cast %8 : vector<8xf32> to vector<8x1xf32>
    %cst_9 = arith.constant 3.200000e+01 : f32
    %10 = vector.broadcast %cst_9 : f32 to vector<8x1xf32>
    %11 = arith.divf %9, %10 : vector<8x1xf32>
    %12 = vector.broadcast %11 : vector<8x1xf32> to vector<8x32xf32>
    %13 = arith.subf %1, %12 : vector<8x32xf32>
    %14 = arith.mulf %13, %13 : vector<8x32xf32>
    %cst_10 = arith.constant dense<0.000000e+00> : vector<8xf32>
    %15 = vector.multi_reduction <add>, %14, %cst_10 [1] : vector<8x32xf32> to vector<8xf32>
    %16 = vector.shape_cast %15 : vector<8xf32> to vector<8x1xf32>
    %cst_11 = arith.constant 0.0322580636 : f32
    %17 = vector.broadcast %cst_11 : f32 to vector<8x1xf32>
    %18 = arith.mulf %16, %17 : vector<8x1xf32>
    %19 = math.sqrt %18 : vector<8x1xf32>
    %cst_12 = arith.constant 9.99999997E-7 : f32
    %20 = vector.broadcast %cst_12 : f32 to vector<8x1xf32>
    %21 = arith.addf %19, %20 : vector<8x1xf32>
    %22 = tpu.reciprocal %21 {approx = true} : vector<8x1xf32> -> vector<8x1xf32>
    %23 = vector.broadcast %11 : vector<8x1xf32> to vector<8x32xf32>
    %24 = arith.subf %1, %23 : vector<8x32xf32>
    %25 = vector.shape_cast %5 : vector<32xf32> to vector<1x32xf32>
    %26 = vector.broadcast %25 : vector<1x32xf32> to vector<8x32xf32>
    %27 = arith.mulf %26, %24 : vector<8x32xf32>
    %28 = vector.broadcast %22 : vector<8x1xf32> to vector<8x32xf32>
    %29 = arith.mulf %27, %28 : vector<8x32xf32>
    %30 = vector.shape_cast %7 : vector<32xf32> to vector<1x32xf32>
    %31 = vector.broadcast %30 : vector<1x32xf32> to vector<8x32xf32>
    %32 = arith.addf %29, %31 : vector<8x32xf32>
    %cst_13 = arith.constant dense<0.000000e+00> : vector<8xf32>
    %33 = vector.multi_reduction <add>, %3, %cst_13 [1] : vector<8x32xf32> to vector<8xf32>
    %34 = vector.shape_cast %33 : vector<8xf32> to vector<8x1xf32>
    %cst_14 = arith.constant 3.200000e+01 : f32
    %35 = vector.broadcast %cst_14 : f32 to vector<8x1xf32>
    %36 = arith.divf %34, %35 : vector<8x1xf32>
    %37 = vector.broadcast %36 : vector<8x1xf32> to vector<8x32xf32>
    %38 = arith.subf %3, %37 : vector<8x32xf32>
    %39 = arith.mulf %38, %38 : vector<8x32xf32>
    %cst_15 = arith.constant dense<0.000000e+00> : vector<8xf32>
    %40 = vector.multi_reduction <add>, %39, %cst_15 [1] : vector<8x32xf32> to vector<8xf32>
    %41 = vector.shape_cast %40 : vector<8xf32> to vector<8x1xf32>
    %cst_16 = arith.constant 0.0322580636 : f32
    %42 = vector.broadcast %cst_16 : f32 to vector<8x1xf32>
    %43 = arith.mulf %41, %42 : vector<8x1xf32>
    %44 = math.sqrt %43 : vector<8x1xf32>
    %cst_17 = arith.constant 9.99999997E-7 : f32
    %45 = vector.broadcast %cst_17 : f32 to vector<8x1xf32>
    %46 = arith.addf %44, %45 : vector<8x1xf32>
    %47 = tpu.reciprocal %46 {approx = true} : vector<8x1xf32> -> vector<8x1xf32>
    %48 = vector.broadcast %36 : vector<8x1xf32> to vector<8x32xf32>
    %49 = arith.subf %3, %48 : vector<8x32xf32>
    %50 = vector.shape_cast %5 : vector<32xf32> to vector<1x32xf32>
    %51 = vector.broadcast %50 : vector<1x32xf32> to vector<8x32xf32>
    %52 = arith.mulf %51, %49 : vector<8x32xf32>
    %53 = vector.broadcast %47 : vector<8x1xf32> to vector<8x32xf32>
    %54 = arith.mulf %52, %53 : vector<8x32xf32>
    %55 = vector.shape_cast %7 : vector<32xf32> to vector<1x32xf32>
    %56 = vector.broadcast %55 : vector<1x32xf32> to vector<8x32xf32>
    %57 = arith.addf %54, %56 : vector<8x32xf32>
    %58 = arith.truncf %32 : vector<8x32xf32> to vector<8x32xbf16>
    %c0_18 = arith.constant 0 : index
    %c0_19 = arith.constant 0 : index
    %59 = vector.load %arg4[%c0_18, %c0_19] : memref<32x32xbf16, #tpu.memory_space<vmem>>, vector<32x32xbf16>
    %cst_20 = arith.constant dense<0.000000e+00> : vector<8x32xf32>
    %60 = tpu.matmul %58, %59, %cst_20 {dimension_numbers = #tpu.dot_dimension_numbers<[1], [0], [0], [1], [0, 0, 1, 1], [], []>} : vector<8x32xbf16>, vector<32x32xbf16>, vector<8x32xf32> -> vector<8x32xf32>
    %c0_21 = arith.constant 0 : index
    %c0_22 = arith.constant 0 : index
    %61 = vector.load %arg5[%c0_21, %c0_22] : memref<1x32xf32, #tpu.memory_space<vmem>>, vector<1x32xf32>
    %62 = vector.shape_cast %61 : vector<1x32xf32> to vector<32xf32>
    %63 = vector.shape_cast %62 : vector<32xf32> to vector<1x32xf32>
    %64 = vector.broadcast %63 : vector<1x32xf32> to vector<8x32xf32>
    %65 = arith.addf %60, %64 : vector<8x32xf32>
    %66 = arith.truncf %57 : vector<8x32xf32> to vector<8x32xbf16>
    %c0_23 = arith.constant 0 : index
    %c0_24 = arith.constant 0 : index
    %67 = vector.load %arg6[%c0_23, %c0_24] : memref<32x32xbf16, #tpu.memory_space<vmem>>, vector<32x32xbf16>
    %cst_25 = arith.constant dense<0.000000e+00> : vector<8x32xf32>
    %68 = tpu.matmul %66, %67, %cst_25 {dimension_numbers = #tpu.dot_dimension_numbers<[1], [0], [0], [1], [0, 0, 1, 1], [], []>} : vector<8x32xbf16>, vector<32x32xbf16>, vector<8x32xf32> -> vector<8x32xf32>
    %c0_26 = arith.constant 0 : index
    %c0_27 = arith.constant 0 : index
    %69 = vector.load %arg7[%c0_26, %c0_27] : memref<1x32xf32, #tpu.memory_space<vmem>>, vector<1x32xf32>
    %70 = vector.shape_cast %69 : vector<1x32xf32> to vector<32xf32>
    %71 = vector.shape_cast %70 : vector<32xf32> to vector<1x32xf32>
    %72 = vector.broadcast %71 : vector<1x32xf32> to vector<8x32xf32>
    %73 = arith.addf %68, %72 : vector<8x32xf32>
    %74 = arith.truncf %57 : vector<8x32xf32> to vector<8x32xbf16>
    %c0_28 = arith.constant 0 : index
    %c0_29 = arith.constant 0 : index
    %75 = vector.load %arg8[%c0_28, %c0_29] : memref<32x32xbf16, #tpu.memory_space<vmem>>, vector<32x32xbf16>
    %cst_30 = arith.constant dense<0.000000e+00> : vector<8x32xf32>
    %76 = tpu.matmul %74, %75, %cst_30 {dimension_numbers = #tpu.dot_dimension_numbers<[1], [0], [0], [1], [0, 0, 1, 1], [], []>} : vector<8x32xbf16>, vector<32x32xbf16>, vector<8x32xf32> -> vector<8x32xf32>
    %c0_31 = arith.constant 0 : index
    %c0_32 = arith.constant 0 : index
    %77 = vector.load %arg9[%c0_31, %c0_32] : memref<1x32xf32, #tpu.memory_space<vmem>>, vector<1x32xf32>
    %78 = vector.shape_cast %77 : vector<1x32xf32> to vector<32xf32>
    %79 = vector.shape_cast %78 : vector<32xf32> to vector<1x32xf32>
    %80 = vector.broadcast %79 : vector<1x32xf32> to vector<8x32xf32>
    %81 = arith.addf %76, %80 : vector<8x32xf32>
    %82 = vector.extract_strided_slice %65 {offsets = [0, 0], sizes = [8, 8], strides = [1, 1]} : vector<8x32xf32> to vector<8x8xf32>
    %83 = vector.shape_cast %82 : vector<8x8xf32> to vector<1x8x8xf32>
    %84 = vector.extract_strided_slice %65 {offsets = [0, 8], sizes = [8, 8], strides = [1, 1]} : vector<8x32xf32> to vector<8x8xf32>
    %85 = vector.shape_cast %84 : vector<8x8xf32> to vector<1x8x8xf32>
    %86 = vector.extract_strided_slice %65 {offsets = [0, 16], sizes = [8, 8], strides = [1, 1]} : vector<8x32xf32> to vector<8x8xf32>
    %87 = vector.shape_cast %86 : vector<8x8xf32> to vector<1x8x8xf32>
    %88 = vector.extract_strided_slice %65 {offsets = [0, 24], sizes = [8, 8], strides = [1, 1]} : vector<8x32xf32> to vector<8x8xf32>
    %89 = vector.shape_cast %88 : vector<8x8xf32> to vector<1x8x8xf32>
    %90 = tpu.concatenate %83, %85, %87, %89 in 0 : vector<1x8x8xf32>, vector<1x8x8xf32>, vector<1x8x8xf32>, vector<1x8x8xf32> -> vector<4x8x8xf32>
    %91 = arith.truncf %90 : vector<4x8x8xf32> to vector<4x8x8xbf16>
    %92 = vector.extract_strided_slice %73 {offsets = [0, 0], sizes = [8, 8], strides = [1, 1]} : vector<8x32xf32> to vector<8x8xf32>
    %93 = vector.shape_cast %92 : vector<8x8xf32> to vector<1x8x8xf32>
    %94 = vector.extract_strided_slice %73 {offsets = [0, 8], sizes = [8, 8], strides = [1, 1]} : vector<8x32xf32> to vector<8x8xf32>
    %95 = vector.shape_cast %94 : vector<8x8xf32> to vector<1x8x8xf32>
    %96 = vector.extract_strided_slice %73 {offsets = [0, 16], sizes = [8, 8], strides = [1, 1]} : vector<8x32xf32> to vector<8x8xf32>
    %97 = vector.shape_cast %96 : vector<8x8xf32> to vector<1x8x8xf32>
    %98 = vector.extract_strided_slice %73 {offsets = [0, 24], sizes = [8, 8], strides = [1, 1]} : vector<8x32xf32> to vector<8x8xf32>
    %99 = vector.shape_cast %98 : vector<8x8xf32> to vector<1x8x8xf32>
    %100 = tpu.concatenate %93, %95, %97, %99 in 0 : vector<1x8x8xf32>, vector<1x8x8xf32>, vector<1x8x8xf32>, vector<1x8x8xf32> -> vector<4x8x8xf32>
    %101 = arith.truncf %100 : vector<4x8x8xf32> to vector<4x8x8xbf16>
    %102 = vector.extract_strided_slice %81 {offsets = [0, 0], sizes = [8, 8], strides = [1, 1]} : vector<8x32xf32> to vector<8x8xf32>
    %103 = vector.shape_cast %102 : vector<8x8xf32> to vector<1x8x8xf32>
    %104 = vector.extract_strided_slice %81 {offsets = [0, 8], sizes = [8, 8], strides = [1, 1]} : vector<8x32xf32> to vector<8x8xf32>
    %105 = vector.shape_cast %104 : vector<8x8xf32> to vector<1x8x8xf32>
    %106 = vector.extract_strided_slice %81 {offsets = [0, 16], sizes = [8, 8], strides = [1, 1]} : vector<8x32xf32> to vector<8x8xf32>
    %107 = vector.shape_cast %106 : vector<8x8xf32> to vector<1x8x8xf32>
    %108 = vector.extract_strided_slice %81 {offsets = [0, 24], sizes = [8, 8], strides = [1, 1]} : vector<8x32xf32> to vector<8x8xf32>
    %109 = vector.shape_cast %108 : vector<8x8xf32> to vector<1x8x8xf32>
    %110 = tpu.concatenate %103, %105, %107, %109 in 0 : vector<1x8x8xf32>, vector<1x8x8xf32>, vector<1x8x8xf32>, vector<1x8x8xf32> -> vector<4x8x8xf32>
    %111 = arith.truncf %110 : vector<4x8x8xf32> to vector<4x8x8xbf16>
    "tpu.trace_start"() <{level = 10 : i32, message = "hqd,hkd->hqk"}> : () -> ()
    %cst_33 = arith.constant dense<0.000000e+00> : vector<4x8x8xf32>
    %112 = tpu.matmul %91, %101, %cst_33 {dimension_numbers = #tpu.dot_dimension_numbers<[2], [2], [1], [1], [0, 0, 0, 1, 1, 1], [0], [0]>} : vector<4x8x8xbf16>, vector<4x8x8xbf16>, vector<4x8x8xf32> -> vector<4x8x8xf32>
    "tpu.trace_stop"() : () -> ()
    %cst_34 = arith.constant 0.353553385 : f32
    %113 = vector.broadcast %cst_34 : f32 to vector<4x8x8xf32>
    %114 = arith.mulf %112, %113 : vector<4x8x8xf32>
    %cst_35 = arith.constant dense<0xFF800000> : vector<4x8xf32>
    %115 = vector.multi_reduction <maximumf>, %114, %cst_35 [2] : vector<4x8x8xf32> to vector<4x8xf32>
    %116 = vector.shape_cast %115 : vector<4x8xf32> to vector<4x8x1xf32>
    %117 = vector.broadcast %116 : vector<4x8x1xf32> to vector<4x8x8xf32>
    %118 = arith.subf %114, %117 : vector<4x8x8xf32>
    %119 = math.exp %118 : vector<4x8x8xf32>
    %cst_36 = arith.constant dense<0.000000e+00> : vector<4x8xf32>
    %120 = vector.multi_reduction <add>, %119, %cst_36 [2] : vector<4x8x8xf32> to vector<4x8xf32>
    %121 = vector.shape_cast %120 : vector<4x8xf32> to vector<4x8x1xf32>
    %122 = tpu.reciprocal %121 {approx = true} : vector<4x8x1xf32> -> vector<4x8x1xf32>
    %123 = vector.broadcast %122 : vector<4x8x1xf32> to vector<4x8x8xf32>
    %124 = arith.mulf %119, %123 : vector<4x8x8xf32>
    %125 = arith.truncf %124 : vector<4x8x8xf32> to vector<4x8x8xbf16>
    "tpu.trace_start"() <{level = 10 : i32, message = "hqk,hkd->hqd"}> : () -> ()
    %cst_37 = arith.constant dense<0.000000e+00> : vector<4x8x8xf32>
    %126 = tpu.matmul %125, %111, %cst_37 {dimension_numbers = #tpu.dot_dimension_numbers<[2], [1], [1], [2], [0, 0, 0, 1, 1, 2], [0], [0]>} : vector<4x8x8xbf16>, vector<4x8x8xbf16>, vector<4x8x8xf32> -> vector<4x8x8xf32>
    "tpu.trace_stop"() : () -> ()
    %127 = vector.extract_strided_slice %126 {offsets = [0, 0, 0], sizes = [1, 8, 8], strides = [1, 1, 1]} : vector<4x8x8xf32> to vector<1x8x8xf32>
    %128 = vector.shape_cast %127 : vector<1x8x8xf32> to vector<8x8xf32>
    %129 = vector.extract_strided_slice %126 {offsets = [1, 0, 0], sizes = [1, 8, 8], strides = [1, 1, 1]} : vector<4x8x8xf32> to vector<1x8x8xf32>
    %130 = vector.shape_cast %129 : vector<1x8x8xf32> to vector<8x8xf32>
    %131 = vector.extract_strided_slice %126 {offsets = [2, 0, 0], sizes = [1, 8, 8], strides = [1, 1, 1]} : vector<4x8x8xf32> to vector<1x8x8xf32>
    %132 = vector.shape_cast %131 : vector<1x8x8xf32> to vector<8x8xf32>
    %133 = vector.extract_strided_slice %126 {offsets = [3, 0, 0], sizes = [1, 8, 8], strides = [1, 1, 1]} : vector<4x8x8xf32> to vector<1x8x8xf32>
    %134 = vector.shape_cast %133 : vector<1x8x8xf32> to vector<8x8xf32>
    %135 = tpu.concatenate %128, %130, %132, %134 in 1 : vector<8x8xf32>, vector<8x8xf32>, vector<8x8xf32>, vector<8x8xf32> -> vector<8x32xf32>
    %136 = arith.truncf %135 : vector<8x32xf32> to vector<8x32xbf16>
    %c0_38 = arith.constant 0 : index
    %c0_39 = arith.constant 0 : index
    %137 = vector.load %arg10[%c0_38, %c0_39] : memref<32x32xbf16, #tpu.memory_space<vmem>>, vector<32x32xbf16>
    %cst_40 = arith.constant dense<0.000000e+00> : vector<8x32xf32>
    %138 = tpu.matmul %136, %137, %cst_40 {dimension_numbers = #tpu.dot_dimension_numbers<[1], [0], [0], [1], [0, 0, 1, 1], [], []>} : vector<8x32xbf16>, vector<32x32xbf16>, vector<8x32xf32> -> vector<8x32xf32>
    %c0_41 = arith.constant 0 : index
    %c0_42 = arith.constant 0 : index
    %139 = vector.load %arg11[%c0_41, %c0_42] : memref<1x32xf32, #tpu.memory_space<vmem>>, vector<1x32xf32>
    %140 = vector.shape_cast %139 : vector<1x32xf32> to vector<32xf32>
    %141 = vector.shape_cast %140 : vector<32xf32> to vector<1x32xf32>
    %142 = vector.broadcast %141 : vector<1x32xf32> to vector<8x32xf32>
    %143 = arith.addf %138, %142 : vector<8x32xf32>
    %144 = arith.addf %1, %143 : vector<8x32xf32>
    %c0_43 = arith.constant 0 : index
    %c0_44 = arith.constant 0 : index
    %145 = vector.load %arg18[%c0_43, %c0_44] : memref<1x32xf32, #tpu.memory_space<vmem>>, vector<1x32xf32>
    %146 = vector.shape_cast %145 : vector<1x32xf32> to vector<32xf32>
    %c0_45 = arith.constant 0 : index
    %c0_46 = arith.constant 0 : index
    %147 = vector.load %arg19[%c0_45, %c0_46] : memref<1x32xf32, #tpu.memory_space<vmem>>, vector<1x32xf32>
    %148 = vector.shape_cast %147 : vector<1x32xf32> to vector<32xf32>
    %cst_47 = arith.constant dense<0.000000e+00> : vector<8xf32>
    %149 = vector.multi_reduction <add>, %144, %cst_47 [1] : vector<8x32xf32> to vector<8xf32>
    %150 = vector.shape_cast %149 : vector<8xf32> to vector<8x1xf32>
    %cst_48 = arith.constant 3.200000e+01 : f32
    %151 = vector.broadcast %cst_48 : f32 to vector<8x1xf32>
    %152 = arith.divf %150, %151 : vector<8x1xf32>
    %153 = vector.broadcast %152 : vector<8x1xf32> to vector<8x32xf32>
    %154 = arith.subf %144, %153 : vector<8x32xf32>
    %155 = arith.mulf %154, %154 : vector<8x32xf32>
    %cst_49 = arith.constant dense<0.000000e+00> : vector<8xf32>
    %156 = vector.multi_reduction <add>, %155, %cst_49 [1] : vector<8x32xf32> to vector<8xf32>
    %157 = vector.shape_cast %156 : vector<8xf32> to vector<8x1xf32>
    %cst_50 = arith.constant 0.0322580636 : f32
    %158 = vector.broadcast %cst_50 : f32 to vector<8x1xf32>
    %159 = arith.mulf %157, %158 : vector<8x1xf32>
    %160 = math.sqrt %159 : vector<8x1xf32>
    %cst_51 = arith.constant 9.99999997E-7 : f32
    %161 = vector.broadcast %cst_51 : f32 to vector<8x1xf32>
    %162 = arith.addf %160, %161 : vector<8x1xf32>
    %163 = tpu.reciprocal %162 {approx = true} : vector<8x1xf32> -> vector<8x1xf32>
    %164 = vector.broadcast %152 : vector<8x1xf32> to vector<8x32xf32>
    %165 = arith.subf %144, %164 : vector<8x32xf32>
    %166 = vector.shape_cast %146 : vector<32xf32> to vector<1x32xf32>
    %167 = vector.broadcast %166 : vector<1x32xf32> to vector<8x32xf32>
    %168 = arith.mulf %167, %165 : vector<8x32xf32>
    %169 = vector.broadcast %163 : vector<8x1xf32> to vector<8x32xf32>
    %170 = arith.mulf %168, %169 : vector<8x32xf32>
    %171 = vector.shape_cast %148 : vector<32xf32> to vector<1x32xf32>
    %172 = vector.broadcast %171 : vector<1x32xf32> to vector<8x32xf32>
    %173 = arith.addf %170, %172 : vector<8x32xf32>
    %174 = arith.truncf %173 : vector<8x32xf32> to vector<8x32xbf16>
    %c0_52 = arith.constant 0 : index
    %c0_53 = arith.constant 0 : index
    %175 = vector.load %arg14[%c0_52, %c0_53] : memref<32x128xbf16, #tpu.memory_space<vmem>>, vector<32x128xbf16>
    %cst_54 = arith.constant dense<0.000000e+00> : vector<8x128xf32>
    %176 = tpu.matmul %174, %175, %cst_54 {dimension_numbers = #tpu.dot_dimension_numbers<[1], [0], [0], [1], [0, 0, 1, 1], [], []>} : vector<8x32xbf16>, vector<32x128xbf16>, vector<8x128xf32> -> vector<8x128xf32>
    %c0_55 = arith.constant 0 : index
    %c0_56 = arith.constant 0 : index
    %177 = vector.load %arg15[%c0_55, %c0_56] : memref<1x128xf32, #tpu.memory_space<vmem>>, vector<1x128xf32>
    %178 = vector.shape_cast %177 : vector<1x128xf32> to vector<128xf32>
    %179 = vector.shape_cast %178 : vector<128xf32> to vector<1x128xf32>
    %180 = vector.broadcast %179 : vector<1x128xf32> to vector<8x128xf32>
    %181 = arith.addf %176, %180 : vector<8x128xf32>
    %cst_57 = arith.constant 5.000000e-01 : f32
    %182 = vector.broadcast %cst_57 : f32 to vector<8x128xf32>
    %183 = arith.mulf %182, %181 : vector<8x128xf32>
    %cst_58 = arith.constant 4.471500e-02 : f32
    %184 = vector.broadcast %cst_58 : f32 to vector<8x128xf32>
    %185 = arith.mulf %184, %181 : vector<8x128xf32>
    %186 = arith.mulf %185, %181 : vector<8x128xf32>
    %187 = arith.mulf %186, %181 : vector<8x128xf32>
    %188 = arith.addf %181, %187 : vector<8x128xf32>
    %cst_59 = arith.constant 0.797884583 : f32
    %189 = vector.broadcast %cst_59 : f32 to vector<8x128xf32>
    %190 = arith.mulf %189, %188 : vector<8x128xf32>
    %191 = math.tanh %190 : vector<8x128xf32>
    %cst_60 = arith.constant 1.000000e+00 : f32
    %192 = vector.broadcast %cst_60 : f32 to vector<8x128xf32>
    %193 = arith.addf %192, %191 : vector<8x128xf32>
    %194 = arith.mulf %183, %193 : vector<8x128xf32>
    %195 = arith.truncf %194 : vector<8x128xf32> to vector<8x128xbf16>
    %c0_61 = arith.constant 0 : index
    %c0_62 = arith.constant 0 : index
    %196 = vector.load %arg16[%c0_61, %c0_62] : memref<128x32xbf16, #tpu.memory_space<vmem>>, vector<128x32xbf16>
    %cst_63 = arith.constant dense<0.000000e+00> : vector<8x32xf32>
    %197 = tpu.matmul %195, %196, %cst_63 {dimension_numbers = #tpu.dot_dimension_numbers<[1], [0], [0], [1], [0, 0, 1, 1], [], []>} : vector<8x128xbf16>, vector<128x32xbf16>, vector<8x32xf32> -> vector<8x32xf32>
    %c0_64 = arith.constant 0 : index
    %c0_65 = arith.constant 0 : index
    %198 = vector.load %arg17[%c0_64, %c0_65] : memref<1x32xf32, #tpu.memory_space<vmem>>, vector<1x32xf32>
    %199 = vector.shape_cast %198 : vector<1x32xf32> to vector<32xf32>
    %200 = vector.shape_cast %199 : vector<32xf32> to vector<1x32xf32>
    %201 = vector.broadcast %200 : vector<1x32xf32> to vector<8x32xf32>
    %202 = arith.addf %197, %201 : vector<8x32xf32>
    %203 = arith.addf %144, %202 : vector<8x32xf32>
    %c0_66 = arith.constant 0 : index
    %c0_67 = arith.constant 0 : index
    %c0_68 = arith.constant 0 : index
    %204 = vector.load %arg20[%c0_66, %c0_67, %c0_68] : memref<1x8x32xf32, #tpu.memory_space<vmem>>, vector<1x8x32xf32>
    %205 = vector.shape_cast %204 : vector<1x8x32xf32> to vector<8x32xf32>
    %206 = vector.shape_cast %203 : vector<8x32xf32> to vector<1x8x32xf32>
    tpu.vector_store %arg20[%c0_66, %c0_67, %c0_68], %206 {strides = array<i32>} : memref<1x8x32xf32, #tpu.memory_space<vmem>>, vector<1x8x32xf32>,
    return
  }
  func.func @transform_0(%arg0: i32, %arg1: i32) -> (i32, i32, i32) {
    %c0_i32 = arith.constant 0 : i32
    %c0_i32_0 = arith.constant 0 : i32
    return %arg0, %arg1, %c0_i32 : i32, i32, i32
  }
  func.func @transform_1(%arg0: i32, %arg1: i32) -> (i32, i32, i32) {
    %c0_i32 = arith.constant 0 : i32
    %c0_i32_0 = arith.constant 0 : i32
    %c0_i32_1 = arith.constant 0 : i32
    return %arg0, %c0_i32, %c0_i32_0 : i32, i32, i32
  }
  func.func @transform_2(%arg0: i32, %arg1: i32) -> (i32, i32) {
    %c0_i32 = arith.constant 0 : i32
    %c0_i32_0 = arith.constant 0 : i32
    %c0_i32_1 = arith.constant 0 : i32
    return %c0_i32, %c0_i32_0 : i32, i32
  }
  func.func @transform_3(%arg0: i32, %arg1: i32) -> (i32, i32) {
    %c0_i32 = arith.constant 0 : i32
    %c0_i32_0 = arith.constant 0 : i32
    %c0_i32_1 = arith.constant 0 : i32
    return %c0_i32, %c0_i32_0 : i32, i32
  }
  func.func @transform_4(%arg0: i32, %arg1: i32) -> (i32, i32) {
    %c0_i32 = arith.constant 0 : i32
    %c0_i32_0 = arith.constant 0 : i32
    %c0_i32_1 = arith.constant 0 : i32
    return %c0_i32, %c0_i32_0 : i32, i32
  }
  func.func @transform_5(%arg0: i32, %arg1: i32) -> (i32, i32) {
    %c0_i32 = arith.constant 0 : i32
    %c0_i32_0 = arith.constant 0 : i32
    %c0_i32_1 = arith.constant 0 : i32
    return %c0_i32, %c0_i32_0 : i32, i32
  }
  func.func @transform_6(%arg0: i32, %arg1: i32) -> (i32, i32) {
    %c0_i32 = arith.constant 0 : i32
    %c0_i32_0 = arith.constant 0 : i32
    %c0_i32_1 = arith.constant 0 : i32
    return %c0_i32, %c0_i32_0 : i32, i32
  }
  func.func @transform_7(%arg0: i32, %arg1: i32) -> (i32, i32) {
    %c0_i32 = arith.constant 0 : i32
    %c0_i32_0 = arith.constant 0 : i32
    %c0_i32_1 = arith.constant 0 : i32
    return %c0_i32, %c0_i32_0 : i32, i32
  }
  func.func @transform_8(%arg0: i32, %arg1: i32) -> (i32, i32) {
    %c0_i32 = arith.constant 0 : i32
    %c0_i32_0 = arith.constant 0 : i32
    %c0_i32_1 = arith.constant 0 : i32
    return %c0_i32, %c0_i32_0 : i32, i32
  }
  func.func @transform_9(%arg0: i32, %arg1: i32) -> (i32, i32) {
    %c0_i32 = arith.constant 0 : i32
    %c0_i32_0 = arith.constant 0 : i32
    %c0_i32_1 = arith.constant 0 : i32
    return %c0_i32, %c0_i32_0 : i32, i32
  }
  func.func @transform_10(%arg0: i32, %arg1: i32) -> (i32, i32) {
    %c0_i32 = arith.constant 0 : i32
    %c0_i32_0 = arith.constant 0 : i32
    %c0_i32_1 = arith.constant 0 : i32
    return %c0_i32, %c0_i32_0 : i32, i32
  }
  func.func @transform_11(%arg0: i32, %arg1: i32) -> (i32, i32) {
    %c0_i32 = arith.constant 0 : i32
    %c0_i32_0 = arith.constant 0 : i32
    %c0_i32_1 = arith.constant 0 : i32
    return %c0_i32, %c0_i32_0 : i32, i32
  }
  func.func @transform_12(%arg0: i32, %arg1: i32) -> (i32, i32) {
    %c0_i32 = arith.constant 0 : i32
    %c0_i32_0 = arith.constant 0 : i32
    %c0_i32_1 = arith.constant 0 : i32
    return %c0_i32, %c0_i32_0 : i32, i32
  }
  func.func @transform_13(%arg0: i32, %arg1: i32) -> (i32, i32) {
    %c0_i32 = arith.constant 0 : i32
    %c0_i32_0 = arith.constant 0 : i32
    %c0_i32_1 = arith.constant 0 : i32
    return %c0_i32, %c0_i32_0 : i32, i32
  }
  func.func @transform_14(%arg0: i32, %arg1: i32) -> (i32, i32) {
    %c0_i32 = arith.constant 0 : i32
    %c0_i32_0 = arith.constant 0 : i32
    %c0_i32_1 = arith.constant 0 : i32
    return %c0_i32, %c0_i32_0 : i32, i32
  }
  func.func @transform_15(%arg0: i32, %arg1: i32) -> (i32, i32) {
    %c0_i32 = arith.constant 0 : i32
    %c0_i32_0 = arith.constant 0 : i32
    %c0_i32_1 = arith.constant 0 : i32
    return %c0_i32, %c0_i32_0 : i32, i32
  }
  func.func @transform_16(%arg0: i32, %arg1: i32) -> (i32, i32) {
    %c0_i32 = arith.constant 0 : i32
    %c0_i32_0 = arith.constant 0 : i32
    %c0_i32_1 = arith.constant 0 : i32
    return %c0_i32, %c0_i32_0 : i32, i32
  }
  func.func @transform_17(%arg0: i32, %arg1: i32) -> (i32, i32) {
    %c0_i32 = arith.constant 0 : i32
    %c0_i32_0 = arith.constant 0 : i32
    %c0_i32_1 = arith.constant 0 : i32
    return %c0_i32, %c0_i32_0 : i32, i32
  }
  func.func @transform_18(%arg0: i32, %arg1: i32) -> (i32, i32, i32) {
    %c0_i32 = arith.constant 0 : i32
    %c0_i32_0 = arith.constant 0 : i32
    return %arg0, %arg1, %c0_i32 : i32, i32, i32
  }
}

</mosaic_0001>

<llo_original>
// kernel: tpu_custom_call.1
$region0: #{tpu_custom_call.1}
  #allocation0 [shape = 'u32[]', space=smem, size = 0x4, offset = 0x4, fixed_abs, tag = 'smem constant byte address 0x4 - core index']
  #allocation1 [shape = 'u32[144,128]{1,0:T(1,128)}', space=vmem, size = 0x12000, scoped, tag = 'internal scratch']
  %s0 = inlined_call_operand.hbm [shape: f32[2,8,32], index: 0, kind: input, shape index: {}]
  %s1 = inlined_call_operand.hbm [shape: f32[2,8,32], index: 1, kind: input, shape index: {}]
  %s2 = inlined_call_operand.hbm [shape: bf16[32,32], index: 2, kind: input, shape index: {}]
  %s3 = inlined_call_operand.hbm [shape: f32[1,32], index: 3, kind: input, shape index: {}]
  %s4 = inlined_call_operand.hbm [shape: bf16[32,32], index: 4, kind: input, shape index: {}]
  %s5 = inlined_call_operand.hbm [shape: f32[1,32], index: 5, kind: input, shape index: {}]
  %s6 = inlined_call_operand.hbm [shape: bf16[32,32], index: 6, kind: input, shape index: {}]
  %s7 = inlined_call_operand.hbm [shape: f32[1,32], index: 7, kind: input, shape index: {}]
  %s8 = inlined_call_operand.hbm [shape: bf16[32,32], index: 8, kind: input, shape index: {}]
  %s9 = inlined_call_operand.hbm [shape: f32[1,32], index: 9, kind: input, shape index: {}]
  %s10 = inlined_call_operand.hbm [shape: f32[1,32], index: 10, kind: input, shape index: {}]
  %s11 = inlined_call_operand.hbm [shape: f32[1,32], index: 11, kind: input, shape index: {}]
  %s12 = inlined_call_operand.hbm [shape: bf16[32,128], index: 12, kind: input, shape index: {}]
  %s13 = inlined_call_operand.hbm [shape: f32[1,128], index: 13, kind: input, shape index: {}]
  %s14 = inlined_call_operand.hbm [shape: bf16[128,32], index: 14, kind: input, shape index: {}]
  %s15 = inlined_call_operand.hbm [shape: f32[1,32], index: 15, kind: input, shape index: {}]
  %s16 = inlined_call_operand.hbm [shape: f32[1,32], index: 16, kind: input, shape index: {}]
  %s17 = inlined_call_operand.hbm [shape: f32[1,32], index: 17, kind: input, shape index: {}]
  %s18 = inlined_call_operand.hbm [shape: f32[2,8,32], index: 18, kind: output, shape index: {}]
  %s19 = sld [smem:[#allocation0]]
  $region177: #{tpu_custom_call.1} parent=0
    _
  %s21 = ssub.s32 1, %s19
  %s22 = scalar_select 0, %s21, %s19
  $region1: #{tpu_custom_call.1} parent=0
    #allocation2 [shape = 'u8[8192]{0}', space=vmem, size = 0x2000, scoped, tag = 'input window, operand 0']
    #allocation3 [shape = 's32[2]{0}', space=sflag, size = 0x8, scoped, tag = 'scoped memory for tpu_custom_call.1']
    #allocation4 [shape = 's32[2]{0}', space=sflag, size = 0x8, scoped, tag = 'scoped memory for tpu_custom_call.1']
    #allocation5 [shape = 'u8[8192]{0}', space=vmem, size = 0x2000, scoped, tag = 'input window, operand 1']
    #allocation6 [shape = 's32[2]{0}', space=sflag, size = 0x8, scoped, tag = 'scoped memory for tpu_custom_call.1']
    #allocation7 [shape = 'u8[8192]{0}', space=vmem, size = 0x2000, scoped, tag = 'input window, operand 2, single buffered']
    #allocation8 [shape = 'u8[512]{0}', space=vmem, size = 0x400, scoped, tag = 'input window, operand 3, single buffered']
    #allocation9 [shape = 's32[1]{0}', space=sflag, size = 0x4, scoped, tag = 'scoped memory for tpu_custom_call.1']
    #allocation10 [shape = 'u8[8192]{0}', space=vmem, size = 0x2000, scoped, tag = 'input window, operand 4, single buffered']
    #allocation11 [shape = 'u8[512]{0}', space=vmem, size = 0x400, scoped, tag = 'input window, operand 5, single buffered']
    #allocation12 [shape = 's32[1]{0}', space=sflag, size = 0x4, scoped, tag = 'scoped memory for tpu_custom_call.1']
    #allocation13 [shape = 'u8[8192]{0}', space=vmem, size = 0x2000, scoped, tag = 'input window, operand 6, single buffered']
    #allocation14 [shape = 'u8[512]{0}', space=vmem, size = 0x400, scoped, tag = 'input window, operand 7, single buffered']
    #allocation15 [shape = 's32[1]{0}', space=sflag, size = 0x4, scoped, tag = 'scoped memory for tpu_custom_call.1']
    #allocation16 [shape = 'u8[8192]{0}', space=vmem, size = 0x2000, scoped, tag = 'input window, operand 8, single buffered']
    #allocation17 [shape = 'u8[512]{0}', space=vmem, size = 0x400, scoped, tag = 'input window, operand 9, single buffered']
    #allocation18 [shape = 's32[1]{0}', space=sflag, size = 0x4, scoped, tag = 'scoped memory for tpu_custom_call.1']
    #allocation19 [shape = 'u8[512]{0}', space=vmem, size = 0x400, scoped, tag = 'input window, operand 10, single buffered']
    #allocation20 [shape = 'u8[512]{0}', space=vmem, size = 0x400, scoped, tag = 'input window, operand 11, single buffered']
    #allocation21 [shape = 's32[1]{0}', space=sflag, size = 0x4, scoped, tag = 'scoped memory for tpu_custom_call.1']
    #allocation22 [shape = 'u8[8192]{0}', space=vmem, size = 0x2000, scoped, tag = 'input window, operand 12, single buffered']
    #allocation23 [shape = 'u8[512]{0}', space=vmem, size = 0x400, scoped, tag = 'input window, operand 13, single buffered']
    #allocation24 [shape = 's32[1]{0}', space=sflag, size = 0x4, scoped, tag = 'scoped memory for tpu_custom_call.1']
    #allocation25 [shape = 'u8[32768]{0}', space=vmem, size = 0x8000, scoped, tag = 'input window, operand 14, single buffered']
    #allocation26 [shape = 'u8[512]{0}', space=vmem, size = 0x400, scoped, tag = 'input window, operand 15, single buffered']
    #allocation27 [shape = 's32[1]{0}', space=sflag, size = 0x4, scoped, tag = 'scoped memory for tpu_custom_call.1']
    #allocation28 [shape = 'u8[512]{0}', space=vmem, size = 0x400, scoped, tag = 'input window, operand 16, single buffered']
    #allocation29 [shape = 'u8[512]{0}', space=vmem, size = 0x400, scoped, tag = 'input window, operand 17, single buffered']
    #allocation30 [shape = 's32[1]{0}', space=sflag, size = 0x4, scoped, tag = 'scoped memory for tpu_custom_call.1']
    #allocation31 [shape = 'u8[8192]{0}', space=vmem, size = 0x2000, scoped, tag = 'output window, operand 0']
    %23 = vsyncpa [#allocation3], 0
    %s24 = scalar_lea.sflag [#allocation3], 1
    %25 = vsyncpa %s24, 0
    %26 = vsyncpa [#allocation6], 0
    %s27 = scalar_lea.sflag [#allocation6], 1
    %28 = vsyncpa %s27, 0
    %29 = vsyncpa [#allocation9], 0
    %30 = vsyncpa [#allocation12], 0
    %31 = vsyncpa [#allocation15], 0
    %32 = vsyncpa [#allocation18], 0
    %33 = vsyncpa [#allocation21], 0
    %34 = vsyncpa [#allocation24], 0
    %35 = vsyncpa [#allocation27], 0
    %36 = vsyncpa [#allocation30], 0
    %37 = vsyncpa [#allocation4], 0
    %s38 = scalar_lea.sflag [#allocation4], 1
    %39 = vsyncpa %s38, 0
    loop: start=0, step=1, limit=4
    $region2: #{tpu_custom_call.1} parent=1 // loop_pre_header
      _
    $region3: #{tpu_custom_call.1} parent=1 // loop_header
      %s41 = sphi 0, %s45
      %p42 = scmp.ge.s32.totalorder %s41, 4
      %s48 = sphi 0, %s60
      %s49 = sphi 0, %s56
      %s50 = sphi 0, %s48
      %s51 = sphi 0, %s49
      %s52 = sphi 0, %s50
      %s53 = sphi 0, %s51
      %s65 = sphi 0, %s67
      %s68 = sphi 0, %s65
      %s69 = sphi 0, %s68
      %s85 = sphi 0, %s69
      %s91 = sphi 0, %s93
      %s94 = sphi 0, %s91
      %s95 = sphi 0, %s94
      %s111 = sphi 0, %s95
      %s115 = sphi 0, %s115
      %s117 = sphi 0, %s115
      %s118 = sphi 0, %s117
      %s132 = sphi 0, %s118
      %s136 = sphi 0, %s136
      %s138 = sphi 0, %s136
      %s139 = sphi 0, %s138
      %s153 = sphi 0, %s139
      %s157 = sphi 0, %s157
      %s159 = sphi 0, %s157
      %s160 = sphi 0, %s159
      %s174 = sphi 0, %s160
      %s178 = sphi 0, %s178
      %s180 = sphi 0, %s178
      %s181 = sphi 0, %s180
      %s195 = sphi 0, %s181
      %s199 = sphi 0, %s199
      %s201 = sphi 0, %s199
      %s202 = sphi 0, %s201
      %s216 = sphi 0, %s202
      %s220 = sphi 0, %s220
      %s222 = sphi 0, %s220
      %s223 = sphi 0, %s222
      %s237 = sphi 0, %s223
      %s241 = sphi 0, %s241
      %s243 = sphi 0, %s241
      %s244 = sphi 0, %s243
      %s258 = sphi 0, %s244
      %s262 = sphi 0, %s262
      %s264 = sphi 0, %s262
      %s265 = sphi 0, %s264
      %s279 = sphi 0, %s265
      %s283 = sphi 0, %s283
      %s285 = sphi 0, %s283
      %s286 = sphi 0, %s285
      %s300 = sphi 0, %s286
      %s304 = sphi 0, %s304
      %s306 = sphi 0, %s304
      %s307 = sphi 0, %s306
      %s321 = sphi 0, %s307
      %s325 = sphi 0, %s325
      %s327 = sphi 0, %s325
      %s328 = sphi 0, %s327
      %s342 = sphi 0, %s328
      %s346 = sphi 0, %s346
      %s348 = sphi 0, %s346
      %s349 = sphi 0, %s348
      %s363 = sphi 0, %s349
      %s367 = sphi 0, %s367
      %s369 = sphi 0, %s367
      %s370 = sphi 0, %s369
      %s384 = sphi 0, %s370
      %s388 = sphi 0, %s388
      %s390 = sphi 0, %s388
      %s391 = sphi 0, %s390
      %s405 = sphi 0, %s391
      %s409 = sphi 0, %s409
      %s411 = sphi 0, %s409
      %s412 = sphi 0, %s411
      %s426 = sphi 0, %s412
      %s430 = sphi 0, %s430
      %s432 = sphi 0, %s430
      %s433 = sphi 0, %s432
      %s447 = sphi 0, %s433
      %s455 = sphi 0, %s457
      %s458 = sphi 0, %s455
      %s459 = sphi 0, %s458
      %s475 = sphi 0, %s459
    $region4: #{tpu_custom_call.1} parent=1 // loop_header_branch
      %44 = sbr.rel (%p42) target = $region8
    $region5: #{tpu_custom_call.1} parent=1 // loop_body
      %s46 = ssub.s32 %s41, 1
      %s47 = ssub.s32 %s41, 2
      %s54 = sadd.s32 1, %s49
      %p55 = scmp.ge.s32.totalorder %s54, 1
      %s56 = scalar_select %p55, 0, %s54
      %s57 = sadd.s32 1, %s48
      %s58 = scalar_select %p55, %s57, %s48
      %p59 = scmp.ge.s32.totalorder %s58, 2
      %s60 = scalar_select %p59, 0, %s58
      %s61 = ssub.s32 %s48, %s60
      %s62 = ssub.s32 %s49, %s56
      %s63 = sor.u32 %s61, %s62
      %p64 = scmp.eq.s32.totalorder %s63, 0
      %s66 = sadd.s32 %s65, 1
      %s67 = scalar_select %p64, %s65, %s66
      %p70 = pneg %p64
      %p71 = scmp.eq.s32.totalorder %s41, 1
      %p72 = por %p70, %p71
      %p73 = scmp.ne.s32.totalorder %s65, %s68
      %p74 = scmp.eq.s32.totalorder %s41, 0
      %p75 = por %p73, %p74
      %p76 = scmp.ne.s32.totalorder %s65, %s68
      %p77 = scmp.eq.s32.totalorder %s46, 1
      %p78 = por %p76, %p77
      %p79 = scmp.ne.s32.totalorder %s68, %s69
      %p80 = scmp.eq.s32.totalorder %s46, 0
      %p81 = por %p79, %p80
      %p82 = scmp.ne.s32.totalorder %s68, %s69
      %p83 = scmp.eq.s32.totalorder %s47, 1
      %p84 = por %p82, %p83
      %p86 = scmp.ne.s32.totalorder %s69, %s85
      %p87 = scmp.eq.s32.totalorder %s47, 0
      %p88 = por %p86, %p87
      %s89 = ssub.s32 %s48, %s60
      %p90 = scmp.eq.s32.totalorder %s89, 0
      %s92 = sadd.s32 %s91, 1
      %s93 = scalar_select %p90, %s91, %s92
      %p96 = pneg %p90
      %p97 = scmp.eq.s32.totalorder %s41, 1
      %p98 = por %p96, %p97
      %p99 = scmp.ne.s32.totalorder %s91, %s94
      %p100 = scmp.eq.s32.totalorder %s41, 0
      %p101 = por %p99, %p100
      %p102 = scmp.ne.s32.totalorder %s91, %s94
      %p103 = scmp.eq.s32.totalorder %s46, 1
      %p104 = por %p102, %p103
      %p105 = scmp.ne.s32.totalorder %s94, %s95
      %p106 = scmp.eq.s32.totalorder %s46, 0
      %p107 = por %p105, %p106
      %p108 = scmp.ne.s32.totalorder %s94, %s95
      %p109 = scmp.eq.s32.totalorder %s47, 1
      %p110 = por %p108, %p109
      %p112 = scmp.ne.s32.totalorder %s95, %s111
      %p113 = scmp.eq.s32.totalorder %s47, 0
      %p114 = por %p112, %p113
      %s116 = sadd.s32 %s115, 1
      %p119 = scmp.eq.s32.totalorder %s41, 1
      %p120 = scmp.ne.s32.totalorder %s115, %s117
      %p121 = scmp.eq.s32.totalorder %s41, 0
      %p122 = por %p120, %p121
      %p123 = scmp.ne.s32.totalorder %s115, %s117
      %p124 = scmp.eq.s32.totalorder %s46, 1
      %p125 = por %p123, %p124
      %p126 = scmp.ne.s32.totalorder %s117, %s118
      %p127 = scmp.eq.s32.totalorder %s46, 0
      %p128 = por %p126, %p127
      %p129 = scmp.ne.s32.totalorder %s117, %s118
      %p130 = scmp.eq.s32.totalorder %s47, 1
      %p131 = por %p129, %p130
      %p133 = scmp.ne.s32.totalorder %s118, %s132
      %p134 = scmp.eq.s32.totalorder %s47, 0
      %p135 = por %p133, %p134
      %s137 = sadd.s32 %s136, 1
      %p140 = scmp.eq.s32.totalorder %s41, 1
      %p141 = scmp.ne.s32.totalorder %s136, %s138
      %p142 = scmp.eq.s32.totalorder %s41, 0
      %p143 = por %p141, %p142
      %p144 = scmp.ne.s32.totalorder %s136, %s138
      %p145 = scmp.eq.s32.totalorder %s46, 1
      %p146 = por %p144, %p145
      %p147 = scmp.ne.s32.totalorder %s138, %s139
      %p148 = scmp.eq.s32.totalorder %s46, 0
      %p149 = por %p147, %p148
      %p150 = scmp.ne.s32.totalorder %s138, %s139
      %p151 = scmp.eq.s32.totalorder %s47, 1
      %p152 = por %p150, %p151
      %p154 = scmp.ne.s32.totalorder %s139, %s153
      %p155 = scmp.eq.s32.totalorder %s47, 0
      %p156 = por %p154, %p155
      %s158 = sadd.s32 %s157, 1
      %p161 = scmp.eq.s32.totalorder %s41, 1
      %p162 = scmp.ne.s32.totalorder %s157, %s159
      %p163 = scmp.eq.s32.totalorder %s41, 0
      %p164 = por %p162, %p163
      %p165 = scmp.ne.s32.totalorder %s157, %s159
      %p166 = scmp.eq.s32.totalorder %s46, 1
      %p167 = por %p165, %p166
      %p168 = scmp.ne.s32.totalorder %s159, %s160
      %p169 = scmp.eq.s32.totalorder %s46, 0
      %p170 = por %p168, %p169
      %p171 = scmp.ne.s32.totalorder %s159, %s160
      %p172 = scmp.eq.s32.totalorder %s47, 1
      %p173 = por %p171, %p172
      %p175 = scmp.ne.s32.totalorder %s160, %s174
      %p176 = scmp.eq.s32.totalorder %s47, 0
      %p177 = por %p175, %p176
      %s179 = sadd.s32 %s178, 1
      %p182 = scmp.eq.s32.totalorder %s41, 1
      %p183 = scmp.ne.s32.totalorder %s178, %s180
      %p184 = scmp.eq.s32.totalorder %s41, 0
      %p185 = por %p183, %p184
      %p186 = scmp.ne.s32.totalorder %s178, %s180
      %p187 = scmp.eq.s32.totalorder %s46, 1
      %p188 = por %p186, %p187
      %p189 = scmp.ne.s32.totalorder %s180, %s181
      %p190 = scmp.eq.s32.totalorder %s46, 0
      %p191 = por %p189, %p190
      %p192 = scmp.ne.s32.totalorder %s180, %s181
      %p193 = scmp.eq.s32.totalorder %s47, 1
      %p194 = por %p192, %p193
      %p196 = scmp.ne.s32.totalorder %s181, %s195
      %p197 = scmp.eq.s32.totalorder %s47, 0
      %p198 = por %p196, %p197
      %s200 = sadd.s32 %s199, 1
      %p203 = scmp.eq.s32.totalorder %s41, 1
      %p204 = scmp.ne.s32.totalorder %s199, %s201
      %p205 = scmp.eq.s32.totalorder %s41, 0
      %p206 = por %p204, %p205
      %p207 = scmp.ne.s32.totalorder %s199, %s201
      %p208 = scmp.eq.s32.totalorder %s46, 1
      %p209 = por %p207, %p208
      %p210 = scmp.ne.s32.totalorder %s201, %s202
      %p211 = scmp.eq.s32.totalorder %s46, 0
      %p212 = por %p210, %p211
      %p213 = scmp.ne.s32.totalorder %s201, %s202
      %p214 = scmp.eq.s32.totalorder %s47, 1
      %p215 = por %p213, %p214
      %p217 = scmp.ne.s32.totalorder %s202, %s216
      %p218 = scmp.eq.s32.totalorder %s47, 0
      %p219 = por %p217, %p218
      %s221 = sadd.s32 %s220, 1
      %p224 = scmp.eq.s32.totalorder %s41, 1
      %p225 = scmp.ne.s32.totalorder %s220, %s222
      %p226 = scmp.eq.s32.totalorder %s41, 0
      %p227 = por %p225, %p226
      %p228 = scmp.ne.s32.totalorder %s220, %s222
      %p229 = scmp.eq.s32.totalorder %s46, 1
      %p230 = por %p228, %p229
      %p231 = scmp.ne.s32.totalorder %s222, %s223
      %p232 = scmp.eq.s32.totalorder %s46, 0
      %p233 = por %p231, %p232
      %p234 = scmp.ne.s32.totalorder %s222, %s223
      %p235 = scmp.eq.s32.totalorder %s47, 1
      %p236 = por %p234, %p235
      %p238 = scmp.ne.s32.totalorder %s223, %s237
      %p239 = scmp.eq.s32.totalorder %s47, 0
      %p240 = por %p238, %p239
      %s242 = sadd.s32 %s241, 1
      %p245 = scmp.eq.s32.totalorder %s41, 1
      %p246 = scmp.ne.s32.totalorder %s241, %s243
      %p247 = scmp.eq.s32.totalorder %s41, 0
      %p248 = por %p246, %p247
      %p249 = scmp.ne.s32.totalorder %s241, %s243
      %p250 = scmp.eq.s32.totalorder %s46, 1
      %p251 = por %p249, %p250
      %p252 = scmp.ne.s32.totalorder %s243, %s244
      %p253 = scmp.eq.s32.totalorder %s46, 0
      %p254 = por %p252, %p253
      %p255 = scmp.ne.s32.totalorder %s243, %s244
      %p256 = scmp.eq.s32.totalorder %s47, 1
      %p257 = por %p255, %p256
      %p259 = scmp.ne.s32.totalorder %s244, %s258
      %p260 = scmp.eq.s32.totalorder %s47, 0
      %p261 = por %p259, %p260
      %s263 = sadd.s32 %s262, 1
      %p266 = scmp.eq.s32.totalorder %s41, 1
      %p267 = scmp.ne.s32.totalorder %s262, %s264
      %p268 = scmp.eq.s32.totalorder %s41, 0
      %p269 = por %p267, %p268
      %p270 = scmp.ne.s32.totalorder %s262, %s264
      %p271 = scmp.eq.s32.totalorder %s46, 1
      %p272 = por %p270, %p271
      %p273 = scmp.ne.s32.totalorder %s264, %s265
      %p274 = scmp.eq.s32.totalorder %s46, 0
      %p275 = por %p273, %p274
      %p276 = scmp.ne.s32.totalorder %s264, %s265
      %p277 = scmp.eq.s32.totalorder %s47, 1
      %p278 = por %p276, %p277
      %p280 = scmp.ne.s32.totalorder %s265, %s279
      %p281 = scmp.eq.s32.totalorder %s47, 0
      %p282 = por %p280, %p281
      %s284 = sadd.s32 %s283, 1
      %p287 = scmp.eq.s32.totalorder %s41, 1
      %p288 = scmp.ne.s32.totalorder %s283, %s285
      %p289 = scmp.eq.s32.totalorder %s41, 0
      %p290 = por %p288, %p289
      %p291 = scmp.ne.s32.totalorder %s283, %s285
      %p292 = scmp.eq.s32.totalorder %s46, 1
      %p293 = por %p291, %p292
      %p294 = scmp.ne.s32.totalorder %s285, %s286
      %p295 = scmp.eq.s32.totalorder %s46, 0
      %p296 = por %p294, %p295
      %p297 = scmp.ne.s32.totalorder %s285, %s286
      %p298 = scmp.eq.s32.totalorder %s47, 1
      %p299 = por %p297, %p298
      %p301 = scmp.ne.s32.totalorder %s286, %s300
      %p302 = scmp.eq.s32.totalorder %s47, 0
      %p303 = por %p301, %p302
      %s305 = sadd.s32 %s304, 1
      %p308 = scmp.eq.s32.totalorder %s41, 1
      %p309 = scmp.ne.s32.totalorder %s304, %s306
      %p310 = scmp.eq.s32.totalorder %s41, 0
      %p311 = por %p309, %p310
      %p312 = scmp.ne.s32.totalorder %s304, %s306
      %p313 = scmp.eq.s32.totalorder %s46, 1
      %p314 = por %p312, %p313
      %p315 = scmp.ne.s32.totalorder %s306, %s307
      %p316 = scmp.eq.s32.totalorder %s46, 0
      %p317 = por %p315, %p316
      %p318 = scmp.ne.s32.totalorder %s306, %s307
      %p319 = scmp.eq.s32.totalorder %s47, 1
      %p320 = por %p318, %p319
      %p322 = scmp.ne.s32.totalorder %s307, %s321
      %p323 = scmp.eq.s32.totalorder %s47, 0
      %p324 = por %p322, %p323
      %s326 = sadd.s32 %s325, 1
      %p329 = scmp.eq.s32.totalorder %s41, 1
      %p330 = scmp.ne.s32.totalorder %s325, %s327
      %p331 = scmp.eq.s32.totalorder %s41, 0
      %p332 = por %p330, %p331
      %p333 = scmp.ne.s32.totalorder %s325, %s327
      %p334 = scmp.eq.s32.totalorder %s46, 1
      %p335 = por %p333, %p334
      %p336 = scmp.ne.s32.totalorder %s327, %s328
      %p337 = scmp.eq.s32.totalorder %s46, 0
      %p338 = por %p336, %p337
      %p339 = scmp.ne.s32.totalorder %s327, %s328
      %p340 = scmp.eq.s32.totalorder %s47, 1
      %p341 = por %p339, %p340
      %p343 = scmp.ne.s32.totalorder %s328, %s342
      %p344 = scmp.eq.s32.totalorder %s47, 0
      %p345 = por %p343, %p344
      %s347 = sadd.s32 %s346, 1
      %p350 = scmp.eq.s32.totalorder %s41, 1
      %p351 = scmp.ne.s32.totalorder %s346, %s348
      %p352 = scmp.eq.s32.totalorder %s41, 0
      %p353 = por %p351, %p352
      %p354 = scmp.ne.s32.totalorder %s346, %s348
      %p355 = scmp.eq.s32.totalorder %s46, 1
      %p356 = por %p354, %p355
      %p357 = scmp.ne.s32.totalorder %s348, %s349
      %p358 = scmp.eq.s32.totalorder %s46, 0
      %p359 = por %p357, %p358
      %p360 = scmp.ne.s32.totalorder %s348, %s349
      %p361 = scmp.eq.s32.totalorder %s47, 1
      %p362 = por %p360, %p361
      %p364 = scmp.ne.s32.totalorder %s349, %s363
      %p365 = scmp.eq.s32.totalorder %s47, 0
      %p366 = por %p364, %p365
      %s368 = sadd.s32 %s367, 1
      %p371 = scmp.eq.s32.totalorder %s41, 1
      %p372 = scmp.ne.s32.totalorder %s367, %s369
      %p373 = scmp.eq.s32.totalorder %s41, 0
      %p374 = por %p372, %p373
      %p375 = scmp.ne.s32.totalorder %s367, %s369
      %p376 = scmp.eq.s32.totalorder %s46, 1
      %p377 = por %p375, %p376
      %p378 = scmp.ne.s32.totalorder %s369, %s370
      %p379 = scmp.eq.s32.totalorder %s46, 0
      %p380 = por %p378, %p379
      %p381 = scmp.ne.s32.totalorder %s369, %s370
      %p382 = scmp.eq.s32.totalorder %s47, 1
      %p383 = por %p381, %p382
      %p385 = scmp.ne.s32.totalorder %s370, %s384
      %p386 = scmp.eq.s32.totalorder %s47, 0
      %p387 = por %p385, %p386
      %s389 = sadd.s32 %s388, 1
      %p392 = scmp.eq.s32.totalorder %s41, 1
      %p393 = scmp.ne.s32.totalorder %s388, %s390
      %p394 = scmp.eq.s32.totalorder %s41, 0
      %p395 = por %p393, %p394
      %p396 = scmp.ne.s32.totalorder %s388, %s390
      %p397 = scmp.eq.s32.totalorder %s46, 1
      %p398 = por %p396, %p397
      %p399 = scmp.ne.s32.totalorder %s390, %s391
      %p400 = scmp.eq.s32.totalorder %s46, 0
      %p401 = por %p399, %p400
      %p402 = scmp.ne.s32.totalorder %s390, %s391
      %p403 = scmp.eq.s32.totalorder %s47, 1
      %p404 = por %p402, %p403
      %p406 = scmp.ne.s32.totalorder %s391, %s405
      %p407 = scmp.eq.s32.totalorder %s47, 0
      %p408 = por %p406, %p407
      %s410 = sadd.s32 %s409, 1
      %p413 = scmp.eq.s32.totalorder %s41, 1
      %p414 = scmp.ne.s32.totalorder %s409, %s411
      %p415 = scmp.eq.s32.totalorder %s41, 0
      %p416 = por %p414, %p415
      %p417 = scmp.ne.s32.totalorder %s409, %s411
      %p418 = scmp.eq.s32.totalorder %s46, 1
      %p419 = por %p417, %p418
      %p420 = scmp.ne.s32.totalorder %s411, %s412
      %p421 = scmp.eq.s32.totalorder %s46, 0
      %p422 = por %p420, %p421
      %p423 = scmp.ne.s32.totalorder %s411, %s412
      %p424 = scmp.eq.s32.totalorder %s47, 1
      %p425 = por %p423, %p424
      %p427 = scmp.ne.s32.totalorder %s412, %s426
      %p428 = scmp.eq.s32.totalorder %s47, 0
      %p429 = por %p427, %p428
      %s431 = sadd.s32 %s430, 1
      %p434 = scmp.eq.s32.totalorder %s41, 1
      %p435 = scmp.ne.s32.totalorder %s430, %s432
      %p436 = scmp.eq.s32.totalorder %s41, 0
      %p437 = por %p435, %p436
      %p438 = scmp.ne.s32.totalorder %s430, %s432
      %p439 = scmp.eq.s32.totalorder %s46, 1
      %p440 = por %p438, %p439
      %p441 = scmp.ne.s32.totalorder %s432, %s433
      %p442 = scmp.eq.s32.totalorder %s46, 0
      %p443 = por %p441, %p442
      %p444 = scmp.ne.s32.totalorder %s432, %s433
      %p445 = scmp.eq.s32.totalorder %s47, 1
      %p446 = por %p444, %p445
      %p448 = scmp.ne.s32.totalorder %s433, %s447
      %p449 = scmp.eq.s32.totalorder %s47, 0
      %p450 = por %p448, %p449
      %s451 = ssub.s32 %s48, %s60
      %s452 = ssub.s32 %s49, %s56
      %s453 = sor.u32 %s451, %s452
      %p454 = scmp.eq.s32.totalorder %s453, 0
      %s456 = sadd.s32 %s455, 1
      %s457 = scalar_select %p454, %s455, %s456
      %p460 = pneg %p454
      %p461 = scmp.eq.s32.totalorder %s41, 1
      %p462 = por %p460, %p461
      %p463 = scmp.ne.s32.totalorder %s455, %s458
      %p464 = scmp.eq.s32.totalorder %s41, 0
      %p465 = por %p463, %p464
      %p466 = scmp.ne.s32.totalorder %s455, %s458
      %p467 = scmp.eq.s32.totalorder %s46, 1
      %p468 = por %p466, %p467
      %p469 = scmp.ne.s32.totalorder %s458, %s459
      %p470 = scmp.eq.s32.totalorder %s46, 0
      %p471 = por %p469, %p470
      %p472 = scmp.ne.s32.totalorder %s458, %s459
      %p473 = scmp.eq.s32.totalorder %s47, 1
      %p474 = por %p472, %p473
      %p476 = scmp.ne.s32.totalorder %s459, %s475
      %p477 = scmp.eq.s32.totalorder %s47, 0
      %p478 = por %p476, %p477
      %p479 = scmp.le.s32.totalorder 1, %s41
      %p480 = scmp.lt.s32.totalorder %s41, 3
      %p481 = pnand %p479, %p480
      %p482 = pneg %p481
      // Predicated region
      $region9: #{tpu_custom_call.1} parent=5 // pred_check
        _
      $region10: #{tpu_custom_call.1} parent=5 // pred_check_branch
        %484 = sbr.rel (%p481) target = $region12
      $region11: #{tpu_custom_call.1} parent=5 // pred_region
        %s485 = ssub.s32 %s41, 1
        // Predicated region
        $region13: #{tpu_custom_call.1} parent=11 // pred_check
          %p486 = pneg %p128
        $region14: #{tpu_custom_call.1} parent=11 // pred_check_branch
          %488 = sbr.rel (%p486) target = $region16
        $region15: #{tpu_custom_call.1} parent=11 // pred_region
          %s490 = ssub.s32 256, 256
          %491 = vsyncadd [#allocation6], %s490
          %s492 = sshll.u32 [#allocation7], 4
          %s493 = int_to_ptr.vmem [resolvable:$true] %s492
          %498 = dma.hbm_to_vmem [thread:$0]  %s2, 256, %s493, [#allocation6], 64, 64, 4
        $region16: #{tpu_custom_call.1} parent=11 // pred_fallthru
          _
        // Predicated region
        $region17: #{tpu_custom_call.1} parent=11 // pred_check
          %p499 = pneg %p149
        $region18: #{tpu_custom_call.1} parent=11 // pred_check_branch
          %501 = sbr.rel (%p499) target = $region20
        $region19: #{tpu_custom_call.1} parent=11 // pred_region
          %s503 = ssub.s32 16, 16
          %504 = vsyncadd [#allocation9], %s503
          %s506 = sshll.u32 [#allocation8], 4
          %s507 = int_to_ptr.vmem [resolvable:$true] %s506
          %509 = dma.hbm_to_vmem [thread:$0]  %s3, 16, %s507, [#allocation9]
        $region20: #{tpu_custom_call.1} parent=11 // pred_fallthru
          _
        // Predicated region
        $region21: #{tpu_custom_call.1} parent=11 // pred_check
          %p510 = pneg %p170
        $region22: #{tpu_custom_call.1} parent=11 // pred_check_branch
          %512 = sbr.rel (%p510) target = $region24
        $region23: #{tpu_custom_call.1} parent=11 // pred_region
          %s514 = ssub.s32 256, 256
          %515 = vsyncadd [#allocation9], %s514
          %s516 = sshll.u32 [#allocation10], 4
          %s517 = int_to_ptr.vmem [resolvable:$true] %s516
          %522 = dma.hbm_to_vmem [thread:$0]  %s4, 256, %s517, [#allocation9], 64, 64, 4
        $region24: #{tpu_custom_call.1} parent=11 // pred_fallthru
          _
        // Predicated region
        $region25: #{tpu_custom_call.1} parent=11 // pred_check
          %p523 = pneg %p191
        $region26: #{tpu_custom_call.1} parent=11 // pred_check_branch
          %525 = sbr.rel (%p523) target = $region28
        $region27: #{tpu_custom_call.1} parent=11 // pred_region
          %s527 = ssub.s32 16, 16
          %528 = vsyncadd [#allocation12], %s527
          %s530 = sshll.u32 [#allocation11], 4
          %s531 = int_to_ptr.vmem [resolvable:$true] %s530
          %533 = dma.hbm_to_vmem [thread:$0]  %s5, 16, %s531, [#allocation12]
        $region28: #{tpu_custom_call.1} parent=11 // pred_fallthru
          _
        // Predicated region
        $region29: #{tpu_custom_call.1} parent=11 // pred_check
          %p534 = pneg %p212
        $region30: #{tpu_custom_call.1} parent=11 // pred_check_branch
          %536 = sbr.rel (%p534) target = $region32
        $region31: #{tpu_custom_call.1} parent=11 // pred_region
          %s538 = ssub.s32 256, 256
          %539 = vsyncadd [#allocation12], %s538
          %s540 = sshll.u32 [#allocation13], 4
          %s541 = int_to_ptr.vmem [resolvable:$true] %s540
          %546 = dma.hbm_to_vmem [thread:$0]  %s6, 256, %s541, [#allocation12], 64, 64, 4
        $region32: #{tpu_custom_call.1} parent=11 // pred_fallthru
          _
        // Predicated region
        $region33: #{tpu_custom_call.1} parent=11 // pred_check
          %p547 = pneg %p233
        $region34: #{tpu_custom_call.1} parent=11 // pred_check_branch
          %549 = sbr.rel (%p547) target = $region36
        $region35: #{tpu_custom_call.1} parent=11 // pred_region
          %s551 = ssub.s32 16, 16
          %552 = vsyncadd [#allocation15], %s551
          %s554 = sshll.u32 [#allocation14], 4
          %s555 = int_to_ptr.vmem [resolvable:$true] %s554
          %557 = dma.hbm_to_vmem [thread:$0]  %s7, 16, %s555, [#allocation15]
        $region36: #{tpu_custom_call.1} parent=11 // pred_fallthru
          _
        // Predicated region
        $region37: #{tpu_custom_call.1} parent=11 // pred_check
          %p558 = pneg %p254
        $region38: #{tpu_custom_call.1} parent=11 // pred_check_branch
          %560 = sbr.rel (%p558) target = $region40
        $region39: #{tpu_custom_call.1} parent=11 // pred_region
          %s562 = ssub.s32 256, 256
          %563 = vsyncadd [#allocation15], %s562
          %s564 = sshll.u32 [#allocation16], 4
          %s565 = int_to_ptr.vmem [resolvable:$true] %s564
          %570 = dma.hbm_to_vmem [thread:$0]  %s8, 256, %s565, [#allocation15], 64, 64, 4
        $region40: #{tpu_custom_call.1} parent=11 // pred_fallthru
          _
        // Predicated region
        $region41: #{tpu_custom_call.1} parent=11 // pred_check
          %p571 = pneg %p275
        $region42: #{tpu_custom_call.1} parent=11 // pred_check_branch
          %573 = sbr.rel (%p571) target = $region44
        $region43: #{tpu_custom_call.1} parent=11 // pred_region
          %s575 = ssub.s32 16, 16
          %576 = vsyncadd [#allocation18], %s575
          %s578 = sshll.u32 [#allocation17], 4
          %s579 = int_to_ptr.vmem [resolvable:$true] %s578
          %581 = dma.hbm_to_vmem [thread:$0]  %s9, 16, %s579, [#allocation18]
        $region44: #{tpu_custom_call.1} parent=11 // pred_fallthru
          _
        // Predicated region
        $region45: #{tpu_custom_call.1} parent=11 // pred_check
          %p582 = pneg %p296
        $region46: #{tpu_custom_call.1} parent=11 // pred_check_branch
          %584 = sbr.rel (%p582) target = $region48
        $region47: #{tpu_custom_call.1} parent=11 // pred_region
          %s586 = ssub.s32 16, 16
          %587 = vsyncadd [#allocation18], %s586
          %s589 = sshll.u32 [#allocation19], 4
          %s590 = int_to_ptr.vmem [resolvable:$true] %s589
          %592 = dma.hbm_to_vmem [thread:$0]  %s10, 16, %s590, [#allocation18]
        $region48: #{tpu_custom_call.1} parent=11 // pred_fallthru
          _
        // Predicated region
        $region49: #{tpu_custom_call.1} parent=11 // pred_check
          %p593 = pneg %p317
        $region50: #{tpu_custom_call.1} parent=11 // pred_check_branch
          %595 = sbr.rel (%p593) target = $region52
        $region51: #{tpu_custom_call.1} parent=11 // pred_region
          %s597 = ssub.s32 16, 16
          %598 = vsyncadd [#allocation21], %s597
          %s600 = sshll.u32 [#allocation20], 4
          %s601 = int_to_ptr.vmem [resolvable:$true] %s600
          %603 = dma.hbm_to_vmem [thread:$0]  %s11, 16, %s601, [#allocation21]
        $region52: #{tpu_custom_call.1} parent=11 // pred_fallthru
          _
        // Predicated region
        $region53: #{tpu_custom_call.1} parent=11 // pred_check
          %p604 = pneg %p338
        $region54: #{tpu_custom_call.1} parent=11 // pred_check_branch
          %606 = sbr.rel (%p604) target = $region56
        $region55: #{tpu_custom_call.1} parent=11 // pred_region
          %s608 = ssub.s32 256, 256
          %609 = vsyncadd [#allocation21], %s608
          %s610 = sshll.u32 [#allocation22], 4
          %s611 = int_to_ptr.vmem [resolvable:$true] %s610
          %616 = dma.hbm_to_vmem [thread:$0]  %s12, 256, %s611, [#allocation21], 64, 64, 4
        $region56: #{tpu_custom_call.1} parent=11 // pred_fallthru
          _
        // Predicated region
        $region57: #{tpu_custom_call.1} parent=11 // pred_check
          %p617 = pneg %p359
        $region58: #{tpu_custom_call.1} parent=11 // pred_check_branch
          %619 = sbr.rel (%p617) target = $region60
        $region59: #{tpu_custom_call.1} parent=11 // pred_region
          %s621 = ssub.s32 16, 16
          %622 = vsyncadd [#allocation24], %s621
          %s624 = sshll.u32 [#allocation23], 4
          %s625 = int_to_ptr.vmem [resolvable:$true] %s624
          %627 = dma.hbm_to_vmem [thread:$0]  %s13, 16, %s625, [#allocation24]
        $region60: #{tpu_custom_call.1} parent=11 // pred_fallthru
          _
        // Predicated region
        $region61: #{tpu_custom_call.1} parent=11 // pred_check
          %p628 = pneg %p380
        $region62: #{tpu_custom_call.1} parent=11 // pred_check_branch
          %630 = sbr.rel (%p628) target = $region64
        $region63: #{tpu_custom_call.1} parent=11 // pred_region
          %s632 = ssub.s32 1024, 1024
          %633 = vsyncadd [#allocation24], %s632
          %s634 = sshll.u32 [#allocation25], 4
          %s635 = int_to_ptr.vmem [resolvable:$true] %s634
          %640 = dma.hbm_to_vmem [thread:$0]  %s14, 1024, %s635, [#allocation24], 64, 64, 4
        $region64: #{tpu_custom_call.1} parent=11 // pred_fallthru
          _
        // Predicated region
        $region65: #{tpu_custom_call.1} parent=11 // pred_check
          %p641 = pneg %p401
        $region66: #{tpu_custom_call.1} parent=11 // pred_check_branch
          %643 = sbr.rel (%p641) target = $region68
        $region67: #{tpu_custom_call.1} parent=11 // pred_region
          %s645 = ssub.s32 16, 16
          %646 = vsyncadd [#allocation27], %s645
          %s648 = sshll.u32 [#allocation26], 4
          %s649 = int_to_ptr.vmem [resolvable:$true] %s648
          %651 = dma.hbm_to_vmem [thread:$0]  %s15, 16, %s649, [#allocation27]
        $region68: #{tpu_custom_call.1} parent=11 // pred_fallthru
          _
        // Predicated region
        $region69: #{tpu_custom_call.1} parent=11 // pred_check
          %p652 = pneg %p422
        $region70: #{tpu_custom_call.1} parent=11 // pred_check_branch
          %654 = sbr.rel (%p652) target = $region72
        $region71: #{tpu_custom_call.1} parent=11 // pred_region
          %s656 = ssub.s32 16, 16
          %657 = vsyncadd [#allocation27], %s656
          %s659 = sshll.u32 [#allocation28], 4
          %s660 = int_to_ptr.vmem [resolvable:$true] %s659
          %662 = dma.hbm_to_vmem [thread:$0]  %s16, 16, %s660, [#allocation27]
        $region72: #{tpu_custom_call.1} parent=11 // pred_fallthru
          _
        // Predicated region
        $region73: #{tpu_custom_call.1} parent=11 // pred_check
          %p663 = pneg %p443
        $region74: #{tpu_custom_call.1} parent=11 // pred_check_branch
          %665 = sbr.rel (%p663) target = $region76
        $region75: #{tpu_custom_call.1} parent=11 // pred_region
          %s667 = ssub.s32 16, 16
          %668 = vsyncadd [#allocation30], %s667
          %s670 = sshll.u32 [#allocation29], 4
          %s671 = int_to_ptr.vmem [resolvable:$true] %s670
          %673 = dma.hbm_to_vmem [thread:$0]  %s17, 16, %s671, [#allocation30]
        $region76: #{tpu_custom_call.1} parent=11 // pred_fallthru
          _
      $region12: #{tpu_custom_call.1} parent=5 // pred_fallthru
        _
      %p674 = scmp.lt.s32.totalorder %s41, 2
      // Predicated region
      $region77: #{tpu_custom_call.1} parent=5 // pred_check
        %p675 = pneg %p674
      $region78: #{tpu_custom_call.1} parent=5 // pred_check_branch
        %677 = sbr.rel (%p675) target = $region80
      $region79: #{tpu_custom_call.1} parent=5 // pred_region
        // Predicated region
        $region81: #{tpu_custom_call.1} parent=79 // pred_check
          %p678 = pneg %p75
        $region82: #{tpu_custom_call.1} parent=79 // pred_check_branch
          %680 = sbr.rel (%p678) target = $region84
        $region83: #{tpu_custom_call.1} parent=79 // pred_region
          %s681 = sand.u32 %s65, 1
          %s682 = scalar_lea.sflag [#allocation3], %s681
          %s683 = sand.u32 %s65, 1
          %s684 = smul.addr %s683, 8
          %s685 = scalar_lea.vmem [#allocation2], %s684
          %s687 = ssub.s32 128, 128
          %688 = vsyncadd %s682, %s687
          %s689 = sadd.s32 %s49, %s48
          %s690 = smul.addr %s689, 128
          %s691 = scalar_lea.hbm %s0, %s690
          %s693 = sshll.u32 %s685, 4
          %s694 = int_to_ptr.vmem [resolvable:$true] %s693
          %696 = dma.hbm_to_vmem [thread:$0]  %s691, 128, %s694, %s682
        $region84: #{tpu_custom_call.1} parent=79 // pred_fallthru
          _
        // Predicated region
        $region85: #{tpu_custom_call.1} parent=79 // pred_check
          %p697 = pneg %p101
        $region86: #{tpu_custom_call.1} parent=79 // pred_check_branch
          %699 = sbr.rel (%p697) target = $region88
        $region87: #{tpu_custom_call.1} parent=79 // pred_region
          %s700 = sand.u32 %s41, 1
          %s701 = scalar_lea.sflag [#allocation6], %s700
          %s702 = sand.u32 %s91, 1
          %s703 = smul.addr %s702, 8
          %s704 = scalar_lea.vmem [#allocation5], %s703
          %s706 = ssub.s32 128, 128
          %707 = vsyncadd %s701, %s706
          %s708 = smul.addr %s48, 128
          %s709 = scalar_lea.hbm %s1, %s708
          %s711 = sshll.u32 %s704, 4
          %s712 = int_to_ptr.vmem [resolvable:$true] %s711
          %714 = dma.hbm_to_vmem [thread:$0]  %s709, 128, %s712, %s701
        $region88: #{tpu_custom_call.1} parent=79 // pred_fallthru
          _
      $region80: #{tpu_custom_call.1} parent=5 // pred_fallthru
        _
      %p715 = scmp.le.s32.totalorder 1, %s41
      %p716 = scmp.lt.s32.totalorder %s41, 3
      %p717 = pnand %p715, %p716
      %p718 = pneg %p717
      // Predicated region
      $region89: #{tpu_custom_call.1} parent=5 // pred_check
        _
      $region90: #{tpu_custom_call.1} parent=5 // pred_check_branch
        %720 = sbr.rel (%p717) target = $region92
      $region91: #{tpu_custom_call.1} parent=5 // pred_region
        %s721 = ssub.s32 %s41, 1
        %s722 = sand.u32 %s68, 1
        %s723 = scalar_lea.sflag [#allocation3], %s722
        %s724 = sand.u32 %s68, 1
        %s725 = smul.addr %s724, 8
        %s726 = scalar_lea.vmem [#allocation2], %s725
        // Predicated region
        $region93: #{tpu_custom_call.1} parent=91 // pred_check
          %p727 = pneg %p81
        $region94: #{tpu_custom_call.1} parent=91 // pred_check_branch
          %729 = sbr.rel (%p727) target = $region96
        $region95: #{tpu_custom_call.1} parent=91 // pred_region
          %730 = dma.done %s723, 128
        $region96: #{tpu_custom_call.1} parent=91 // pred_fallthru
          _
        %s731 = sand.u32 %s46, 1
        %s732 = scalar_lea.sflag [#allocation6], %s731
        %s733 = sand.u32 %s94, 1
        %s734 = smul.addr %s733, 8
        %s735 = scalar_lea.vmem [#allocation5], %s734
        // Predicated region
        $region97: #{tpu_custom_call.1} parent=91 // pred_check
          %p736 = pneg %p107
        $region98: #{tpu_custom_call.1} parent=91 // pred_check_branch
          %738 = sbr.rel (%p736) target = $region100
        $region99: #{tpu_custom_call.1} parent=91 // pred_region
          %739 = dma.done %s732, 128
        $region100: #{tpu_custom_call.1} parent=91 // pred_fallthru
          _
        // Predicated region
        $region101: #{tpu_custom_call.1} parent=91 // pred_check
          %p740 = pneg %p128
        $region102: #{tpu_custom_call.1} parent=91 // pred_check_branch
          %742 = sbr.rel (%p740) target = $region104
        $region103: #{tpu_custom_call.1} parent=91 // pred_region
          %743 = dma.done [#allocation6], 256
        $region104: #{tpu_custom_call.1} parent=91 // pred_fallthru
          _
        // Predicated region
        $region105: #{tpu_custom_call.1} parent=91 // pred_check
          %p744 = pneg %p149
        $region106: #{tpu_custom_call.1} parent=91 // pred_check_branch
          %746 = sbr.rel (%p744) target = $region108
        $region107: #{tpu_custom_call.1} parent=91 // pred_region
          %747 = dma.done [#allocation9], 16
        $region108: #{tpu_custom_call.1} parent=91 // pred_fallthru
          _
        // Predicated region
        $region109: #{tpu_custom_call.1} parent=91 // pred_check
          %p748 = pneg %p170
        $region110: #{tpu_custom_call.1} parent=91 // pred_check_branch
          %750 = sbr.rel (%p748) target = $region112
        $region111: #{tpu_custom_call.1} parent=91 // pred_region
          %751 = dma.done [#allocation9], 256
        $region112: #{tpu_custom_call.1} parent=91 // pred_fallthru
          _
        // Predicated region
        $region113: #{tpu_custom_call.1} parent=91 // pred_check
          %p752 = pneg %p191
        $region114: #{tpu_custom_call.1} parent=91 // pred_check_branch
          %754 = sbr.rel (%p752) target = $region116
        $region115: #{tpu_custom_call.1} parent=91 // pred_region
          %755 = dma.done [#allocation12], 16
        $region116: #{tpu_custom_call.1} parent=91 // pred_fallthru
          _
        // Predicated region
        $region117: #{tpu_custom_call.1} parent=91 // pred_check
          %p756 = pneg %p212
        $region118: #{tpu_custom_call.1} parent=91 // pred_check_branch
          %758 = sbr.rel (%p756) target = $region120
        $region119: #{tpu_custom_call.1} parent=91 // pred_region
          %759 = dma.done [#allocation12], 256
        $region120: #{tpu_custom_call.1} parent=91 // pred_fallthru
          _
        // Predicated region
        $region121: #{tpu_custom_call.1} parent=91 // pred_check
          %p760 = pneg %p233
        $region122: #{tpu_custom_call.1} parent=91 // pred_check_branch
          %762 = sbr.rel (%p760) target = $region124
        $region123: #{tpu_custom_call.1} parent=91 // pred_region
          %763 = dma.done [#allocation15], 16
        $region124: #{tpu_custom_call.1} parent=91 // pred_fallthru
          _
        // Predicated region
        $region125: #{tpu_custom_call.1} parent=91 // pred_check
          %p764 = pneg %p254
        $region126: #{tpu_custom_call.1} parent=91 // pred_check_branch
          %766 = sbr.rel (%p764) target = $region128
        $region127: #{tpu_custom_call.1} parent=91 // pred_region
          %767 = dma.done [#allocation15], 256
        $region128: #{tpu_custom_call.1} parent=91 // pred_fallthru
          _
        // Predicated region
        $region129: #{tpu_custom_call.1} parent=91 // pred_check
          %p768 = pneg %p275
        $region130: #{tpu_custom_call.1} parent=91 // pred_check_branch
          %770 = sbr.rel (%p768) target = $region132
        $region131: #{tpu_custom_call.1} parent=91 // pred_region
          %771 = dma.done [#allocation18], 16
        $region132: #{tpu_custom_call.1} parent=91 // pred_fallthru
          _
        // Predicated region
        $region133: #{tpu_custom_call.1} parent=91 // pred_check
          %p772 = pneg %p296
        $region134: #{tpu_custom_call.1} parent=91 // pred_check_branch
          %774 = sbr.rel (%p772) target = $region136
        $region135: #{tpu_custom_call.1} parent=91 // pred_region
          %775 = dma.done [#allocation18], 16
        $region136: #{tpu_custom_call.1} parent=91 // pred_fallthru
          _
        // Predicated region
        $region137: #{tpu_custom_call.1} parent=91 // pred_check
          %p776 = pneg %p317
        $region138: #{tpu_custom_call.1} parent=91 // pred_check_branch
          %778 = sbr.rel (%p776) target = $region140
        $region139: #{tpu_custom_call.1} parent=91 // pred_region
          %779 = dma.done [#allocation21], 16
        $region140: #{tpu_custom_call.1} parent=91 // pred_fallthru
          _
        // Predicated region
        $region141: #{tpu_custom_call.1} parent=91 // pred_check
          %p780 = pneg %p338
        $region142: #{tpu_custom_call.1} parent=91 // pred_check_branch
          %782 = sbr.rel (%p780) target = $region144
        $region143: #{tpu_custom_call.1} parent=91 // pred_region
          %783 = dma.done [#allocation21], 256
        $region144: #{tpu_custom_call.1} parent=91 // pred_fallthru
          _
        // Predicated region
        $region145: #{tpu_custom_call.1} parent=91 // pred_check
          %p784 = pneg %p359
        $region146: #{tpu_custom_call.1} parent=91 // pred_check_branch
          %786 = sbr.rel (%p784) target = $region148
        $region147: #{tpu_custom_call.1} parent=91 // pred_region
          %787 = dma.done [#allocation24], 16
        $region148: #{tpu_custom_call.1} parent=91 // pred_fallthru
          _
        // Predicated region
        $region149: #{tpu_custom_call.1} parent=91 // pred_check
          %p788 = pneg %p380
        $region150: #{tpu_custom_call.1} parent=91 // pred_check_branch
          %790 = sbr.rel (%p788) target = $region152
        $region151: #{tpu_custom_call.1} parent=91 // pred_region
          %791 = dma.done [#allocation24], 1024
        $region152: #{tpu_custom_call.1} parent=91 // pred_fallthru
          _
        // Predicated region
        $region153: #{tpu_custom_call.1} parent=91 // pred_check
          %p792 = pneg %p401
        $region154: #{tpu_custom_call.1} parent=91 // pred_check_branch
          %794 = sbr.rel (%p792) target = $region156
        $region155: #{tpu_custom_call.1} parent=91 // pred_region
          %795 = dma.done [#allocation27], 16
        $region156: #{tpu_custom_call.1} parent=91 // pred_fallthru
          _
        // Predicated region
        $region157: #{tpu_custom_call.1} parent=91 // pred_check
          %p796 = pneg %p422
        $region158: #{tpu_custom_call.1} parent=91 // pred_check_branch
          %798 = sbr.rel (%p796) target = $region160
        $region159: #{tpu_custom_call.1} parent=91 // pred_region
          %799 = dma.done [#allocation27], 16
        $region160: #{tpu_custom_call.1} parent=91 // pred_fallthru
          _
        // Predicated region
        $region161: #{tpu_custom_call.1} parent=91 // pred_check
          %p800 = pneg %p443
        $region162: #{tpu_custom_call.1} parent=91 // pred_check_branch
          %802 = sbr.rel (%p800) target = $region164
        $region163: #{tpu_custom_call.1} parent=91 // pred_region
          %803 = dma.done [#allocation30], 16
        $region164: #{tpu_custom_call.1} parent=91 // pred_fallthru
          _
        %s804 = sand.u32 %s68, 1
        %s805 = scalar_lea.sflag [#allocation3], %s804
        %s806 = sand.u32 %s68, 1
        %s807 = smul.addr %s806, 8
        %s808 = scalar_lea.vmem [#allocation2], %s807
        %p809 = pneg %p81
        %p810 = pneg %p78
        %s811 = sand.u32 %s46, 1
        %s812 = scalar_lea.sflag [#allocation6], %s811
        %s813 = sand.u32 %s94, 1
        %s814 = smul.addr %s813, 8
        %s815 = scalar_lea.vmem [#allocation5], %s814
        %p816 = pneg %p107
        %p817 = pneg %p104
        %p818 = pneg %p128
        %p819 = pneg %p125
        %p820 = pneg %p149
        %p821 = pneg %p146
        %p822 = pneg %p170
        %p823 = pneg %p167
        %p824 = pneg %p191
        %p825 = pneg %p188
        %p826 = pneg %p212
        %p827 = pneg %p209
        %p828 = pneg %p233
        %p829 = pneg %p230
        %p830 = pneg %p254
        %p831 = pneg %p251
        %p832 = pneg %p275
        %p833 = pneg %p272
        %p834 = pneg %p296
        %p835 = pneg %p293
        %p836 = pneg %p317
        %p837 = pneg %p314
        %p838 = pneg %p338
        %p839 = pneg %p335
        %p840 = pneg %p359
        %p841 = pneg %p356
        %p842 = pneg %p380
        %p843 = pneg %p377
        %p844 = pneg %p401
        %p845 = pneg %p398
        %p846 = pneg %p422
        %p847 = pneg %p419
        %p848 = pneg %p443
        %p849 = pneg %p440
        %p850 = pneg %p471
        %p851 = pneg %p468
        %s852 = sand.u32 %s458, 1
        %s853 = scalar_lea.sflag [#allocation4], %s852
        %s854 = sand.u32 %s458, 1
        %s855 = smul.addr %s854, 8
        %s856 = scalar_lea.vmem [#allocation31], %s855
        %v858 = vld [vmem:[%s726] sm:$0xff]
        %v859 = vld [vmem:[%s735] sm:$0xff]
        %v860 = vld [vmem:[#allocation19] sm:$0x1]
        %v861 = vld [vmem:[#allocation20] sm:$0x1]
        %vm862 = vcmask 261120
        %v863 = vsel %vm862, %v858, 0.0
        %864 = vadd.xlane.f32.xlu0 %v863
        %v865 = vpop.xlane.xlu0 %864
        %v866 = vrcp.pop 32.0
        %v867 = vmul.f32 %v865, %v866
        %v868 = vsub.f32 %v858, %v867
        %v869 = vmul.f32 %v868, %v868
        %v870 = vsel %vm862, %v869, 0.0
        %871 = vadd.xlane.f32.xlu0 %v870
        %v872 = vpop.xlane.xlu0 %871
        %v873 = vmul.f32 %v872, 0.032258064
        %v874 = vrsqrt.pop %v873
        %v875 = vmul.f32 %v873, %v874
        %vm876 = vcmp.eq.f32.partialorder %v873, inf
        %v877 = vsel %vm876, %v873, %v875
        %vm878 = vcmp.eq.f32.partialorder %v873, 0.0
        %v879 = vand.u32 %v873, 2147483648
        %v880 = vsel %vm878, %v879, %v877
        %v881 = vadd.f32 %v880, 1e-06
        %v882 = vrcp.pop %v881
        %v884 = vlaneseq
        %v885 = vshrl.u32 %v884, 7
        %v886 = vsub.s32 0, %v885
        %v887 = vrot.slane %v860, %v886
        %v889 = vmul.f32 %v887, %v868
        %v890 = vmul.f32 %v889, %v882
        %v892 = vlaneseq
        %v893 = vshrl.u32 %v892, 7
        %v894 = vsub.s32 0, %v893
        %v895 = vrot.slane %v861, %v894
        %v897 = vadd.f32 %v890, %v895
        %v898 = vsel %vm862, %v859, 0.0
        %899 = vadd.xlane.f32.xlu0 %v898
        %v900 = vpop.xlane.xlu0 %899
        %v901 = vmul.f32 %v900, %v866
        %v902 = vsub.f32 %v859, %v901
        %v903 = vmul.f32 %v902, %v902
        %v904 = vsel %vm862, %v903, 0.0
        %905 = vadd.xlane.f32.xlu0 %v904
        %v906 = vpop.xlane.xlu0 %905
        %v907 = vmul.f32 %v906, 0.032258064
        %v908 = vrsqrt.pop %v907
        %v909 = vmul.f32 %v907, %v908
        %vm910 = vcmp.eq.f32.partialorder %v907, inf
        %v911 = vsel %vm910, %v907, %v909
        %vm912 = vcmp.eq.f32.partialorder %v907, 0.0
        %v913 = vand.u32 %v907, 2147483648
        %v914 = vsel %vm912, %v913, %v911
        %v915 = vadd.f32 %v914, 1e-06
        %v916 = vrcp.pop %v915
        %v917 = vmul.f32 %v887, %v902
        %v918 = vmul.f32 %v917, %v916
        %v919 = vadd.f32 %v918, %v895
        %v920 = vpack.c.bf16 %v897, %v897
        %v921 = vld [vmem:[#allocation7] sm:$0xf]
        %v922 = vld [vmem:[#allocation7 + $0x4] sm:$0xf]
        %v923 = vld [vmem:[#allocation7 + $0x8] sm:$0xf]
        %v924 = vld [vmem:[#allocation7 + $0xc] sm:$0xf]
        %v925 = vld [vmem:[#allocation8] sm:$0x1]
        %v927 = vlaneseq
        %v928 = vshrl.u32 %v927, 7
        %v929 = vsub.s32 0, %v928
        %v930 = vrot.slane %v925, %v929
        %v936 = vunpack.c.l.b16 %v921
        %v937 = vunpack.c.l.b16 %v922
        %v938 = vunpack.c.l.b16 %v923
        %v939 = vunpack.c.l.b16 %v924
        %v940 = vpack.c.b16 %v937, %v936
        %v941 = vpack.c.b16 %v939, %v938
        %v945 = vsel %vm862, %v920, 0
        %947 = vmatprep.subr.bf16.mxu0 0
        %948 = vmatpush1.bf16.msra.mxu0 %v940
        %949 = vmatprep.subr.bf16.mxu0 0
        %950 = vmatpush1.bf16.msra.mxu0 %v941
        %951 = vmatprep.subr.bf16.mxu0 0
        %952 = vmatpush1.bf16.msra.mxu0 0
        %953 = vmatprep.subr.bf16.mxu0 0
        %954 = vmatpush1.bf16.msra.mxu0 0
        %955 = vmatprep.subr.bf16.mxu0 0
        %956 = vmatpush1.bf16.msra.mxu0 0
        %957 = vmatprep.subr.bf16.mxu0 0
        %958 = vmatpush1.bf16.msra.mxu0 0
        %959 = vmatprep.subr.bf16.mxu0 0
        %960 = vmatpush1.bf16.msra.mxu0 0
        %961 = vmatprep.subr.bf16.mxu0 0
        %962 = vmatpush1.bf16.msra.mxu0 0
        %963 = vmatprep.subr.bf16.mxu0 0
        %964 = vmatpush1.bf16.msra.mxu0 0
        %965 = vmatprep.subr.bf16.mxu0 0
        %966 = vmatpush1.bf16.msra.mxu0 0
        %967 = vmatprep.subr.bf16.mxu0 0
        %968 = vmatpush1.bf16.msra.mxu0 0
        %969 = vmatprep.subr.bf16.mxu0 0
        %970 = vmatpush1.bf16.msra.mxu0 0
        %971 = vmatprep.subr.bf16.mxu0 0
        %972 = vmatpush1.bf16.msra.mxu0 0
        %973 = vmatprep.subr.bf16.mxu0 0
        %974 = vmatpush1.bf16.msra.mxu0 0
        %975 = vmatprep.subr.bf16.mxu0 0
        %976 = vmatpush1.bf16.msra.mxu0 0
        %977 = vmatprep.subr.bf16.mxu0 0
        %978 = vmatpush1.bf16.msra.mxu0 0
        %979 = vmatprep.mubr.bf16.mxu0 0
        %980 = vmatmul.mubr.bf16.gmra.mrb[0].mxu0 %v945
        %v981 = vpop.f32.mrb[0].mxu0
        %v982 = vadd.f32 %v930, %v981
        %v983 = vpop.f32.mrb[0].mxu0
        %v984 = vpop.f32.mrb[0].mxu0
        %v985 = vpop.f32.mrb[0].mxu0
        %986 = vdwg.mxu0
        %v987 = vpack.c.bf16 %v919, %v919
        %v988 = vld [vmem:[#allocation10] sm:$0xf]
        %v989 = vld [vmem:[#allocation10 + $0x4] sm:$0xf]
        %v990 = vld [vmem:[#allocation10 + $0x8] sm:$0xf]
        %v991 = vld [vmem:[#allocation10 + $0xc] sm:$0xf]
        %v992 = vld [vmem:[#allocation11] sm:$0x1]
        %v994 = vlaneseq
        %v995 = vshrl.u32 %v994, 7
        %v996 = vsub.s32 0, %v995
        %v997 = vrot.slane %v992, %v996
        %v1003 = vunpack.c.l.b16 %v988
        %v1004 = vunpack.c.l.b16 %v989
        %v1005 = vunpack.c.l.b16 %v990
        %v1006 = vunpack.c.l.b16 %v991
        %v1007 = vpack.c.b16 %v1004, %v1003
        %v1008 = vpack.c.b16 %v1006, %v1005
        %v1012 = vsel %vm862, %v987, 0
        %1014 = vmatprep.subr.bf16.mxu0 0
        %1015 = vmatpush1.bf16.msra.mxu0 %v1007
        %1016 = vmatprep.subr.bf16.mxu0 0
        %1017 = vmatpush1.bf16.msra.mxu0 %v1008
        %1018 = vmatprep.subr.bf16.mxu0 0
        %1019 = vmatpush1.bf16.msra.mxu0 0
        %1020 = vmatprep.subr.bf16.mxu0 0
        %1021 = vmatpush1.bf16.msra.mxu0 0
        %1022 = vmatprep.subr.bf16.mxu0 0
        %1023 = vmatpush1.bf16.msra.mxu0 0
        %1024 = vmatprep.subr.bf16.mxu0 0
        %1025 = vmatpush1.bf16.msra.mxu0 0
        %1026 = vmatprep.subr.bf16.mxu0 0
        %1027 = vmatpush1.bf16.msra.mxu0 0
        %1028 = vmatprep.subr.bf16.mxu0 0
        %1029 = vmatpush1.bf16.msra.mxu0 0
        %1030 = vmatprep.subr.bf16.mxu0 0
        %1031 = vmatpush1.bf16.msra.mxu0 0
        %1032 = vmatprep.subr.bf16.mxu0 0
        %1033 = vmatpush1.bf16.msra.mxu0 0
        %1034 = vmatprep.subr.bf16.mxu0 0
        %1035 = vmatpush1.bf16.msra.mxu0 0
        %1036 = vmatprep.subr.bf16.mxu0 0
        %1037 = vmatpush1.bf16.msra.mxu0 0
        %1038 = vmatprep.subr.bf16.mxu0 0
        %1039 = vmatpush1.bf16.msra.mxu0 0
        %1040 = vmatprep.subr.bf16.mxu0 0
        %1041 = vmatpush1.bf16.msra.mxu0 0
        %1042 = vmatprep.subr.bf16.mxu0 0
        %1043 = vmatpush1.bf16.msra.mxu0 0
        %1044 = vmatprep.subr.bf16.mxu0 0
        %1045 = vmatpush1.bf16.msra.mxu0 0
        %1046 = vmatprep.mubr.bf16.mxu0 0
        %1047 = vmatmul.mubr.bf16.gmra.mrb[0].mxu0 %v1012
        %v1048 = vpop.f32.mrb[0].mxu0
        %v1049 = vadd.f32 %v997, %v1048
        %v1050 = vpop.f32.mrb[0].mxu0
        %v1051 = vpop.f32.mrb[0].mxu0
        %v1052 = vpop.f32.mrb[0].mxu0
        %1053 = vdwg.mxu0
        %v1054 = vld [vmem:[#allocation13] sm:$0xf]
        %v1055 = vld [vmem:[#allocation13 + $0x4] sm:$0xf]
        %v1056 = vld [vmem:[#allocation13 + $0x8] sm:$0xf]
        %v1057 = vld [vmem:[#allocation13 + $0xc] sm:$0xf]
        %v1058 = vld [vmem:[#allocation14] sm:$0x1]
        %v1060 = vlaneseq
        %v1061 = vshrl.u32 %v1060, 7
        %v1062 = vsub.s32 0, %v1061
        %v1063 = vrot.slane %v1058, %v1062
        %v1069 = vunpack.c.l.b16 %v1054
        %v1070 = vunpack.c.l.b16 %v1055
        %v1071 = vunpack.c.l.b16 %v1056
        %v1072 = vunpack.c.l.b16 %v1057
        %v1073 = vpack.c.b16 %v1070, %v1069
        %v1074 = vpack.c.b16 %v1072, %v1071
        %1077 = vmatprep.subr.bf16.mxu0 0
        %1078 = vmatpush1.bf16.msra.mxu0 %v1073
        %1079 = vmatprep.subr.bf16.mxu0 0
        %1080 = vmatpush1.bf16.msra.mxu0 %v1074
        %1081 = vmatprep.subr.bf16.mxu0 0
        %1082 = vmatpush1.bf16.msra.mxu0 0
        %1083 = vmatprep.subr.bf16.mxu0 0
        %1084 = vmatpush1.bf16.msra.mxu0 0
        %1085 = vmatprep.subr.bf16.mxu0 0
        %1086 = vmatpush1.bf16.msra.mxu0 0
        %1087 = vmatprep.subr.bf16.mxu0 0
        %1088 = vmatpush1.bf16.msra.mxu0 0
        %1089 = vmatprep.subr.bf16.mxu0 0
        %1090 = vmatpush1.bf16.msra.mxu0 0
        %1091 = vmatprep.subr.bf16.mxu0 0
        %1092 = vmatpush1.bf16.msra.mxu0 0
        %1093 = vmatprep.subr.bf16.mxu0 0
        %1094 = vmatpush1.bf16.msra.mxu0 0
        %1095 = vmatprep.subr.bf16.mxu0 0
        %1096 = vmatpush1.bf16.msra.mxu0 0
        %1097 = vmatprep.subr.bf16.mxu0 0
        %1098 = vmatpush1.bf16.msra.mxu0 0
        %1099 = vmatprep.subr.bf16.mxu0 0
        %1100 = vmatpush1.bf16.msra.mxu0 0
        %1101 = vmatprep.subr.bf16.mxu0 0
        %1102 = vmatpush1.bf16.msra.mxu0 0
        %1103 = vmatprep.subr.bf16.mxu0 0
        %1104 = vmatpush1.bf16.msra.mxu0 0
        %1105 = vmatprep.subr.bf16.mxu0 0
        %1106 = vmatpush1.bf16.msra.mxu0 0
        %1107 = vmatprep.subr.bf16.mxu0 0
        %1108 = vmatpush1.bf16.msra.mxu0 0
        %1109 = vmatprep.mubr.bf16.mxu0 0
        %1110 = vmatmul.mubr.bf16.gmra.mrb[0].mxu0 %v1012
        %v1111 = vpop.f32.mrb[0].mxu0
        %v1112 = vadd.f32 %v1063, %v1111
        %v1113 = vpop.f32.mrb[0].mxu0
        %v1114 = vpop.f32.mrb[0].mxu0
        %v1115 = vpop.f32.mrb[0].mxu0
        %1116 = vdwg.mxu0
        %1118 = vrot.lane.b32.xlu0 %v982, 120
        %v1119 = vpop.permute.xlu0 %1118
        %1121 = vrot.lane.b32.xlu0 %v982, 112
        %v1122 = vpop.permute.xlu0 %1121
        %1124 = vrot.lane.b32.xlu0 %v982, 104
        %v1125 = vpop.permute.xlu0 %1124
        %v1127 = vpack.c.bf16 %v982, %v982
        %v1128 = vpack.c.bf16 %v1119, %v1119
        %v1129 = vpack.c.bf16 %v1122, %v1122
        %v1130 = vpack.c.bf16 %v1125, %v1125
        %1132 = vrot.lane.b32.xlu0 %v1049, 120
        %v1133 = vpop.permute.xlu0 %1132
        %1135 = vrot.lane.b32.xlu0 %v1049, 112
        %v1136 = vpop.permute.xlu0 %1135
        %1138 = vrot.lane.b32.xlu0 %v1049, 104
        %v1139 = vpop.permute.xlu0 %1138
        %v1141 = vpack.c.bf16 %v1049, %v1049
        %v1142 = vpack.c.bf16 %v1133, %v1133
        %v1143 = vpack.c.bf16 %v1136, %v1136
        %v1144 = vpack.c.bf16 %v1139, %v1139
        %1146 = vrot.lane.b32.xlu0 %v1112, 120
        %v1147 = vpop.permute.xlu0 %1146
        %1149 = vrot.lane.b32.xlu0 %v1112, 112
        %v1150 = vpop.permute.xlu0 %1149
        %1152 = vrot.lane.b32.xlu0 %v1112, 104
        %v1153 = vpop.permute.xlu0 %1152
        %v1155 = vpack.c.bf16 %v1112, %v1112
        %v1156 = vpack.c.bf16 %v1147, %v1147
        %v1157 = vpack.c.bf16 %v1150, %v1150
        %v1158 = vpack.c.bf16 %v1153, %v1153
        %vm1159 = vcmask 64512
        %v1161 = vsel %vm1159, %v1127, 0
        %v1164 = vsel %vm1159, %v1141, 0
        %1166 = vmatprep.subr.bf16.mxu0 0
        %1167 = vmatpush1.bf16.xpose.msra.mxu0 %v1164
        %1168 = vmatprep.subr.bf16.mxu0 0
        %1169 = vmatpush1.bf16.xpose.msra.mxu0 0
        %1170 = vmatprep.subr.bf16.mxu0 0
        %1171 = vmatpush1.bf16.xpose.msra.mxu0 0
        %1172 = vmatprep.subr.bf16.mxu0 0
        %1173 = vmatpush1.bf16.xpose.msra.mxu0 0
        %1174 = vmatprep.subr.bf16.mxu0 0
        %1175 = vmatpush1.bf16.xpose.msra.mxu0 0
        %1176 = vmatprep.subr.bf16.mxu0 0
        %1177 = vmatpush1.bf16.xpose.msra.mxu0 0
        %1178 = vmatprep.subr.bf16.mxu0 0
        %1179 = vmatpush1.bf16.xpose.msra.mxu0 0
        %1180 = vmatprep.subr.bf16.mxu0 0
        %1181 = vmatpush1.bf16.xpose.msra.mxu0 0
        %1182 = vmatprep.subr.bf16.mxu0 0
        %1183 = vmatpush1.bf16.xpose.msra.mxu0 0
        %1184 = vmatprep.subr.bf16.mxu0 0
        %1185 = vmatpush1.bf16.xpose.msra.mxu0 0
        %1186 = vmatprep.subr.bf16.mxu0 0
        %1187 = vmatpush1.bf16.xpose.msra.mxu0 0
        %1188 = vmatprep.subr.bf16.mxu0 0
        %1189 = vmatpush1.bf16.xpose.msra.mxu0 0
        %1190 = vmatprep.subr.bf16.mxu0 0
        %1191 = vmatpush1.bf16.xpose.msra.mxu0 0
        %1192 = vmatprep.subr.bf16.mxu0 0
        %1193 = vmatpush1.bf16.xpose.msra.mxu0 0
        %1194 = vmatprep.subr.bf16.mxu0 0
        %1195 = vmatpush1.bf16.xpose.msra.mxu0 0
        %1196 = vmatprep.subr.bf16.mxu0 0
        %1197 = vmatpush1.bf16.xpose.msra.mxu0 0
        %1198 = vmatprep.mubr.bf16.mxu0 0
        %1199 = vmatmul.mubr.bf16.gmra.mrb[0].mxu0 %v1161
        %v1200 = vpop.f32.mrb[0].mxu0
        %v1201 = vadd.f32 0.0, %v1200
        %v1202 = vpop.f32.mrb[0].mxu0
        %v1203 = vpop.f32.mrb[0].mxu0
        %v1204 = vpop.f32.mrb[0].mxu0
        %1205 = vdwg.mxu0
        %v1207 = vsel %vm1159, %v1128, 0
        %v1210 = vsel %vm1159, %v1142, 0
        %1212 = vmatprep.subr.bf16.mxu0 0
        %1213 = vmatpush1.bf16.xpose.msra.mxu0 %v1210
        %1214 = vmatprep.subr.bf16.mxu0 0
        %1215 = vmatpush1.bf16.xpose.msra.mxu0 0
        %1216 = vmatprep.subr.bf16.mxu0 0
        %1217 = vmatpush1.bf16.xpose.msra.mxu0 0
        %1218 = vmatprep.subr.bf16.mxu0 0
        %1219 = vmatpush1.bf16.xpose.msra.mxu0 0
        %1220 = vmatprep.subr.bf16.mxu0 0
        %1221 = vmatpush1.bf16.xpose.msra.mxu0 0
        %1222 = vmatprep.subr.bf16.mxu0 0
        %1223 = vmatpush1.bf16.xpose.msra.mxu0 0
        %1224 = vmatprep.subr.bf16.mxu0 0
        %1225 = vmatpush1.bf16.xpose.msra.mxu0 0
        %1226 = vmatprep.subr.bf16.mxu0 0
        %1227 = vmatpush1.bf16.xpose.msra.mxu0 0
        %1228 = vmatprep.subr.bf16.mxu0 0
        %1229 = vmatpush1.bf16.xpose.msra.mxu0 0
        %1230 = vmatprep.subr.bf16.mxu0 0
        %1231 = vmatpush1.bf16.xpose.msra.mxu0 0
        %1232 = vmatprep.subr.bf16.mxu0 0
        %1233 = vmatpush1.bf16.xpose.msra.mxu0 0
        %1234 = vmatprep.subr.bf16.mxu0 0
        %1235 = vmatpush1.bf16.xpose.msra.mxu0 0
        %1236 = vmatprep.subr.bf16.mxu0 0
        %1237 = vmatpush1.bf16.xpose.msra.mxu0 0
        %1238 = vmatprep.subr.bf16.mxu0 0
        %1239 = vmatpush1.bf16.xpose.msra.mxu0 0
        %1240 = vmatprep.subr.bf16.mxu0 0
        %1241 = vmatpush1.bf16.xpose.msra.mxu0 0
        %1242 = vmatprep.subr.bf16.mxu0 0
        %1243 = vmatpush1.bf16.xpose.msra.mxu0 0
        %1244 = vmatprep.mubr.bf16.mxu0 0
        %1245 = vmatmul.mubr.bf16.gmra.mrb[0].mxu0 %v1207
        %v1246 = vpop.f32.mrb[0].mxu0
        %v1247 = vadd.f32 0.0, %v1246
        %v1248 = vpop.f32.mrb[0].mxu0
        %v1249 = vpop.f32.mrb[0].mxu0
        %v1250 = vpop.f32.mrb[0].mxu0
        %1251 = vdwg.mxu0
        %v1253 = vsel %vm1159, %v1129, 0
        %v1256 = vsel %vm1159, %v1143, 0
        %1258 = vmatprep.subr.bf16.mxu0 0
        %1259 = vmatpush1.bf16.xpose.msra.mxu0 %v1256
        %1260 = vmatprep.subr.bf16.mxu0 0
        %1261 = vmatpush1.bf16.xpose.msra.mxu0 0
        %1262 = vmatprep.subr.bf16.mxu0 0
        %1263 = vmatpush1.bf16.xpose.msra.mxu0 0
        %1264 = vmatprep.subr.bf16.mxu0 0
        %1265 = vmatpush1.bf16.xpose.msra.mxu0 0
        %1266 = vmatprep.subr.bf16.mxu0 0
        %1267 = vmatpush1.bf16.xpose.msra.mxu0 0
        %1268 = vmatprep.subr.bf16.mxu0 0
        %1269 = vmatpush1.bf16.xpose.msra.mxu0 0
        %1270 = vmatprep.subr.bf16.mxu0 0
        %1271 = vmatpush1.bf16.xpose.msra.mxu0 0
        %1272 = vmatprep.subr.bf16.mxu0 0
        %1273 = vmatpush1.bf16.xpose.msra.mxu0 0
        %1274 = vmatprep.subr.bf16.mxu0 0
        %1275 = vmatpush1.bf16.xpose.msra.mxu0 0
        %1276 = vmatprep.subr.bf16.mxu0 0
        %1277 = vmatpush1.bf16.xpose.msra.mxu0 0
        %1278 = vmatprep.subr.bf16.mxu0 0
        %1279 = vmatpush1.bf16.xpose.msra.mxu0 0
        %1280 = vmatprep.subr.bf16.mxu0 0
        %1281 = vmatpush1.bf16.xpose.msra.mxu0 0
        %1282 = vmatprep.subr.bf16.mxu0 0
        %1283 = vmatpush1.bf16.xpose.msra.mxu0 0
        %1284 = vmatprep.subr.bf16.mxu0 0
        %1285 = vmatpush1.bf16.xpose.msra.mxu0 0
        %1286 = vmatprep.subr.bf16.mxu0 0
        %1287 = vmatpush1.bf16.xpose.msra.mxu0 0
        %1288 = vmatprep.subr.bf16.mxu0 0
        %1289 = vmatpush1.bf16.xpose.msra.mxu0 0
        %1290 = vmatprep.mubr.bf16.mxu0 0
        %1291 = vmatmul.mubr.bf16.gmra.mrb[0].mxu0 %v1253
        %v1292 = vpop.f32.mrb[0].mxu0
        %v1293 = vadd.f32 0.0, %v1292
        %v1294 = vpop.f32.mrb[0].mxu0
        %v1295 = vpop.f32.mrb[0].mxu0
        %v1296 = vpop.f32.mrb[0].mxu0
        %1297 = vdwg.mxu0
        %v1299 = vsel %vm1159, %v1130, 0
        %v1302 = vsel %vm1159, %v1144, 0
        %1304 = vmatprep.subr.bf16.mxu0 0
        %1305 = vmatpush1.bf16.xpose.msra.mxu0 %v1302
        %1306 = vmatprep.subr.bf16.mxu0 0
        %1307 = vmatpush1.bf16.xpose.msra.mxu0 0
        %1308 = vmatprep.subr.bf16.mxu0 0
        %1309 = vmatpush1.bf16.xpose.msra.mxu0 0
        %1310 = vmatprep.subr.bf16.mxu0 0
        %1311 = vmatpush1.bf16.xpose.msra.mxu0 0
        %1312 = vmatprep.subr.bf16.mxu0 0
        %1313 = vmatpush1.bf16.xpose.msra.mxu0 0
        %1314 = vmatprep.subr.bf16.mxu0 0
        %1315 = vmatpush1.bf16.xpose.msra.mxu0 0
        %1316 = vmatprep.subr.bf16.mxu0 0
        %1317 = vmatpush1.bf16.xpose.msra.mxu0 0
        %1318 = vmatprep.subr.bf16.mxu0 0
        %1319 = vmatpush1.bf16.xpose.msra.mxu0 0
        %1320 = vmatprep.subr.bf16.mxu0 0
        %1321 = vmatpush1.bf16.xpose.msra.mxu0 0
        %1322 = vmatprep.subr.bf16.mxu0 0
        %1323 = vmatpush1.bf16.xpose.msra.mxu0 0
        %1324 = vmatprep.subr.bf16.mxu0 0
        %1325 = vmatpush1.bf16.xpose.msra.mxu0 0
        %1326 = vmatprep.subr.bf16.mxu0 0
        %1327 = vmatpush1.bf16.xpose.msra.mxu0 0
        %1328 = vmatprep.subr.bf16.mxu0 0
        %1329 = vmatpush1.bf16.xpose.msra.mxu0 0
        %1330 = vmatprep.subr.bf16.mxu0 0
        %1331 = vmatpush1.bf16.xpose.msra.mxu0 0
        %1332 = vmatprep.subr.bf16.mxu0 0
        %1333 = vmatpush1.bf16.xpose.msra.mxu0 0
        %1334 = vmatprep.subr.bf16.mxu0 0
        %1335 = vmatpush1.bf16.xpose.msra.mxu0 0
        %1336 = vmatprep.mubr.bf16.mxu0 0
        %1337 = vmatmul.mubr.bf16.gmra.mrb[0].mxu0 %v1299
        %v1338 = vpop.f32.mrb[0].mxu0
        %v1339 = vadd.f32 0.0, %v1338
        %v1340 = vpop.f32.mrb[0].mxu0
        %v1341 = vpop.f32.mrb[0].mxu0
        %v1342 = vpop.f32.mrb[0].mxu0
        %1343 = vdwg.mxu0
        %v1344 = vmul.f32 %v1201, 0.35355338
        %v1345 = vmul.f32 %v1247, 0.35355338
        %v1346 = vmul.f32 %v1293, 0.35355338
        %v1347 = vmul.f32 %v1339, 0.35355338
        %v1348 = vsel %vm1159, %v1344, -inf
        %1349 = vmax.xlane.f32.xlu0 %v1348
        %v1350 = vpop.xlane.xlu0 %1349
        %v1351 = vsel %vm1159, %v1345, -inf
        %1352 = vmax.xlane.f32.xlu0 %v1351
        %v1353 = vpop.xlane.xlu0 %1352
        %v1354 = vsel %vm1159, %v1346, -inf
        %1355 = vmax.xlane.f32.xlu0 %v1354
        %v1356 = vpop.xlane.xlu0 %1355
        %v1357 = vsel %vm1159, %v1347, -inf
        %1358 = vmax.xlane.f32.xlu0 %v1357
        %v1359 = vpop.xlane.xlu0 %1358
        %v1360 = vsub.f32 %v1344, %v1350
        %v1361 = vsub.f32 %v1345, %v1353
        %v1362 = vsub.f32 %v1346, %v1356
        %v1363 = vsub.f32 %v1347, %v1359
        %v1364 = vmul.f32 %v1360, 1.442695
        %v1365 = vpow.pop %v1364
        %v1366 = vmul.f32 %v1361, 1.442695
        %v1367 = vpow.pop %v1366
        %v1368 = vmul.f32 %v1362, 1.442695
        %v1369 = vpow.pop %v1368
        %v1370 = vmul.f32 %v1363, 1.442695
        %v1371 = vpow.pop %v1370
        %v1372 = vsel %vm1159, %v1365, 0.0
        %1373 = vadd.xlane.f32.xlu0 %v1372
        %v1374 = vpop.xlane.xlu0 %1373
        %v1375 = vsel %vm1159, %v1367, 0.0
        %1376 = vadd.xlane.f32.xlu0 %v1375
        %v1377 = vpop.xlane.xlu0 %1376
        %v1378 = vsel %vm1159, %v1369, 0.0
        %1379 = vadd.xlane.f32.xlu0 %v1378
        %v1380 = vpop.xlane.xlu0 %1379
        %v1381 = vsel %vm1159, %v1371, 0.0
        %1382 = vadd.xlane.f32.xlu0 %v1381
        %v1383 = vpop.xlane.xlu0 %1382
        %v1384 = vrcp.pop %v1374
        %v1385 = vrcp.pop %v1377
        %v1386 = vrcp.pop %v1380
        %v1387 = vrcp.pop %v1383
        %v1388 = vmul.f32 %v1365, %v1384
        %v1389 = vmul.f32 %v1367, %v1385
        %v1390 = vmul.f32 %v1369, %v1386
        %v1391 = vmul.f32 %v1371, %v1387
        %v1392 = vpack.c.bf16 %v1388, %v1388
        %v1393 = vpack.c.bf16 %v1389, %v1389
        %v1394 = vpack.c.bf16 %v1390, %v1390
        %v1395 = vpack.c.bf16 %v1391, %v1391
        %v1397 = vsel %vm1159, %v1392, 0
        %vm1399 = vcmask 1043456
        %v1401 = vsel %vm1399, %v1155, 0
        %1403 = vmatprep.subr.bf16.mxu0 0
        %1404 = vmatpush1.bf16.msra.mxu0 %v1401
        %1405 = vmatprep.subr.bf16.mxu0 0
        %1406 = vmatpush1.bf16.msra.mxu0 0
        %1407 = vmatprep.subr.bf16.mxu0 0
        %1408 = vmatpush1.bf16.msra.mxu0 0
        %1409 = vmatprep.subr.bf16.mxu0 0
        %1410 = vmatpush1.bf16.msra.mxu0 0
        %1411 = vmatprep.subr.bf16.mxu0 0
        %1412 = vmatpush1.bf16.msra.mxu0 0
        %1413 = vmatprep.subr.bf16.mxu0 0
        %1414 = vmatpush1.bf16.msra.mxu0 0
        %1415 = vmatprep.subr.bf16.mxu0 0
        %1416 = vmatpush1.bf16.msra.mxu0 0
        %1417 = vmatprep.subr.bf16.mxu0 0
        %1418 = vmatpush1.bf16.msra.mxu0 0
        %1419 = vmatprep.subr.bf16.mxu0 0
        %1420 = vmatpush1.bf16.msra.mxu0 0
        %1421 = vmatprep.subr.bf16.mxu0 0
        %1422 = vmatpush1.bf16.msra.mxu0 0
        %1423 = vmatprep.subr.bf16.mxu0 0
        %1424 = vmatpush1.bf16.msra.mxu0 0
        %1425 = vmatprep.subr.bf16.mxu0 0
        %1426 = vmatpush1.bf16.msra.mxu0 0
        %1427 = vmatprep.subr.bf16.mxu0 0
        %1428 = vmatpush1.bf16.msra.mxu0 0
        %1429 = vmatprep.subr.bf16.mxu0 0
        %1430 = vmatpush1.bf16.msra.mxu0 0
        %1431 = vmatprep.subr.bf16.mxu0 0
        %1432 = vmatpush1.bf16.msra.mxu0 0
        %1433 = vmatprep.subr.bf16.mxu0 0
        %1434 = vmatpush1.bf16.msra.mxu0 0
        %1435 = vmatprep.mubr.bf16.mxu0 0
        %1436 = vmatmul.mubr.bf16.gmra.mrb[0].mxu0 %v1397
        %v1437 = vpop.f32.mrb[0].mxu0
        %v1438 = vadd.f32 0.0, %v1437
        %v1439 = vpop.f32.mrb[0].mxu0
        %v1440 = vpop.f32.mrb[0].mxu0
        %v1441 = vpop.f32.mrb[0].mxu0
        %1442 = vdwg.mxu0
        %v1444 = vsel %vm1159, %v1393, 0
        %v1447 = vsel %vm1399, %v1156, 0
        %1449 = vmatprep.subr.bf16.mxu0 0
        %1450 = vmatpush1.bf16.msra.mxu0 %v1447
        %1451 = vmatprep.subr.bf16.mxu0 0
        %1452 = vmatpush1.bf16.msra.mxu0 0
        %1453 = vmatprep.subr.bf16.mxu0 0
        %1454 = vmatpush1.bf16.msra.mxu0 0
        %1455 = vmatprep.subr.bf16.mxu0 0
        %1456 = vmatpush1.bf16.msra.mxu0 0
        %1457 = vmatprep.subr.bf16.mxu0 0
        %1458 = vmatpush1.bf16.msra.mxu0 0
        %1459 = vmatprep.subr.bf16.mxu0 0
        %1460 = vmatpush1.bf16.msra.mxu0 0
        %1461 = vmatprep.subr.bf16.mxu0 0
        %1462 = vmatpush1.bf16.msra.mxu0 0
        %1463 = vmatprep.subr.bf16.mxu0 0
        %1464 = vmatpush1.bf16.msra.mxu0 0
        %1465 = vmatprep.subr.bf16.mxu0 0
        %1466 = vmatpush1.bf16.msra.mxu0 0
        %1467 = vmatprep.subr.bf16.mxu0 0
        %1468 = vmatpush1.bf16.msra.mxu0 0
        %1469 = vmatprep.subr.bf16.mxu0 0
        %1470 = vmatpush1.bf16.msra.mxu0 0
        %1471 = vmatprep.subr.bf16.mxu0 0
        %1472 = vmatpush1.bf16.msra.mxu0 0
        %1473 = vmatprep.subr.bf16.mxu0 0
        %1474 = vmatpush1.bf16.msra.mxu0 0
        %1475 = vmatprep.subr.bf16.mxu0 0
        %1476 = vmatpush1.bf16.msra.mxu0 0
        %1477 = vmatprep.subr.bf16.mxu0 0
        %1478 = vmatpush1.bf16.msra.mxu0 0
        %1479 = vmatprep.subr.bf16.mxu0 0
        %1480 = vmatpush1.bf16.msra.mxu0 0
        %1481 = vmatprep.mubr.bf16.mxu0 0
        %1482 = vmatmul.mubr.bf16.gmra.mrb[0].mxu0 %v1444
        %v1483 = vpop.f32.mrb[0].mxu0
        %v1484 = vadd.f32 0.0, %v1483
        %v1485 = vpop.f32.mrb[0].mxu0
        %v1486 = vpop.f32.mrb[0].mxu0
        %v1487 = vpop.f32.mrb[0].mxu0
        %1488 = vdwg.mxu0
        %v1490 = vsel %vm1159, %v1394, 0
        %v1493 = vsel %vm1399, %v1157, 0
        %1495 = vmatprep.subr.bf16.mxu0 0
        %1496 = vmatpush1.bf16.msra.mxu0 %v1493
        %1497 = vmatprep.subr.bf16.mxu0 0
        %1498 = vmatpush1.bf16.msra.mxu0 0
        %1499 = vmatprep.subr.bf16.mxu0 0
        %1500 = vmatpush1.bf16.msra.mxu0 0
        %1501 = vmatprep.subr.bf16.mxu0 0
        %1502 = vmatpush1.bf16.msra.mxu0 0
        %1503 = vmatprep.subr.bf16.mxu0 0
        %1504 = vmatpush1.bf16.msra.mxu0 0
        %1505 = vmatprep.subr.bf16.mxu0 0
        %1506 = vmatpush1.bf16.msra.mxu0 0
        %1507 = vmatprep.subr.bf16.mxu0 0
        %1508 = vmatpush1.bf16.msra.mxu0 0
        %1509 = vmatprep.subr.bf16.mxu0 0
        %1510 = vmatpush1.bf16.msra.mxu0 0
        %1511 = vmatprep.subr.bf16.mxu0 0
        %1512 = vmatpush1.bf16.msra.mxu0 0
        %1513 = vmatprep.subr.bf16.mxu0 0
        %1514 = vmatpush1.bf16.msra.mxu0 0
        %1515 = vmatprep.subr.bf16.mxu0 0
        %1516 = vmatpush1.bf16.msra.mxu0 0
        %1517 = vmatprep.subr.bf16.mxu0 0
        %1518 = vmatpush1.bf16.msra.mxu0 0
        %1519 = vmatprep.subr.bf16.mxu0 0
        %1520 = vmatpush1.bf16.msra.mxu0 0
        %1521 = vmatprep.subr.bf16.mxu0 0
        %1522 = vmatpush1.bf16.msra.mxu0 0
        %1523 = vmatprep.subr.bf16.mxu0 0
        %1524 = vmatpush1.bf16.msra.mxu0 0
        %1525 = vmatprep.subr.bf16.mxu0 0
        %1526 = vmatpush1.bf16.msra.mxu0 0
        %1527 = vmatprep.mubr.bf16.mxu0 0
        %1528 = vmatmul.mubr.bf16.gmra.mrb[0].mxu0 %v1490
        %v1529 = vpop.f32.mrb[0].mxu0
        %v1530 = vadd.f32 0.0, %v1529
        %v1531 = vpop.f32.mrb[0].mxu0
        %v1532 = vpop.f32.mrb[0].mxu0
        %v1533 = vpop.f32.mrb[0].mxu0
        %1534 = vdwg.mxu0
        %v1536 = vsel %vm1159, %v1395, 0
        %v1539 = vsel %vm1399, %v1158, 0
        %1541 = vmatprep.subr.bf16.mxu0 0
        %1542 = vmatpush1.bf16.msra.mxu0 %v1539
        %1543 = vmatprep.subr.bf16.mxu0 0
        %1544 = vmatpush1.bf16.msra.mxu0 0
        %1545 = vmatprep.subr.bf16.mxu0 0
        %1546 = vmatpush1.bf16.msra.mxu0 0
        %1547 = vmatprep.subr.bf16.mxu0 0
        %1548 = vmatpush1.bf16.msra.mxu0 0
        %1549 = vmatprep.subr.bf16.mxu0 0
        %1550 = vmatpush1.bf16.msra.mxu0 0
        %1551 = vmatprep.subr.bf16.mxu0 0
        %1552 = vmatpush1.bf16.msra.mxu0 0
        %1553 = vmatprep.subr.bf16.mxu0 0
        %1554 = vmatpush1.bf16.msra.mxu0 0
        %1555 = vmatprep.subr.bf16.mxu0 0
        %1556 = vmatpush1.bf16.msra.mxu0 0
        %1557 = vmatprep.subr.bf16.mxu0 0
        %1558 = vmatpush1.bf16.msra.mxu0 0
        %1559 = vmatprep.subr.bf16.mxu0 0
        %1560 = vmatpush1.bf16.msra.mxu0 0
        %1561 = vmatprep.subr.bf16.mxu0 0
        %1562 = vmatpush1.bf16.msra.mxu0 0
        %1563 = vmatprep.subr.bf16.mxu0 0
        %1564 = vmatpush1.bf16.msra.mxu0 0
        %1565 = vmatprep.subr.bf16.mxu0 0
        %1566 = vmatpush1.bf16.msra.mxu0 0
        %1567 = vmatprep.subr.bf16.mxu0 0
        %1568 = vmatpush1.bf16.msra.mxu0 0
        %1569 = vmatprep.subr.bf16.mxu0 0
        %1570 = vmatpush1.bf16.msra.mxu0 0
        %1571 = vmatprep.subr.bf16.mxu0 0
        %1572 = vmatpush1.bf16.msra.mxu0 0
        %1573 = vmatprep.mubr.bf16.mxu0 0
        %1574 = vmatmul.mubr.bf16.gmra.mrb[0].mxu0 %v1536
        %v1575 = vpop.f32.mrb[0].mxu0
        %v1576 = vadd.f32 0.0, %v1575
        %v1577 = vpop.f32.mrb[0].mxu0
        %v1578 = vpop.f32.mrb[0].mxu0
        %v1579 = vpop.f32.mrb[0].mxu0
        %1580 = vdwg.mxu0
        %1582 = vrot.lane.b32.xlu0 %v1484, 8
        %v1583 = vpop.permute.xlu0 %1582
        %1586 = vrot.lane.b32.xlu0 %v1530, 16
        %v1587 = vpop.permute.xlu0 %1586
        %1590 = vrot.lane.b32.xlu0 %v1576, 24
        %v1591 = vpop.permute.xlu0 %1590
        %v1593 = vsel %vm1159, %v1438, %v1583
        %vm1594 = vcmask 130048
        %v1595 = vsel %vm1594, %v1593, %v1587
        %vm1596 = vcmask 195584
        %v1597 = vsel %vm1596, %v1595, %v1591
        %v1598 = vpack.c.bf16 %v1597, %v1597
        %v1599 = vld [vmem:[#allocation16] sm:$0xf]
        %v1600 = vld [vmem:[#allocation16 + $0x4] sm:$0xf]
        %v1601 = vld [vmem:[#allocation16 + $0x8] sm:$0xf]
        %v1602 = vld [vmem:[#allocation16 + $0xc] sm:$0xf]
        %v1603 = vld [vmem:[#allocation17] sm:$0x1]
        %v1605 = vlaneseq
        %v1606 = vshrl.u32 %v1605, 7
        %v1607 = vsub.s32 0, %v1606
        %v1608 = vrot.slane %v1603, %v1607
        %v1614 = vunpack.c.l.b16 %v1599
        %v1615 = vunpack.c.l.b16 %v1600
        %v1616 = vunpack.c.l.b16 %v1601
        %v1617 = vunpack.c.l.b16 %v1602
        %v1618 = vpack.c.b16 %v1615, %v1614
        %v1619 = vpack.c.b16 %v1617, %v1616
        %v1623 = vsel %vm862, %v1598, 0
        %1625 = vmatprep.subr.bf16.mxu0 0
        %1626 = vmatpush1.bf16.msra.mxu0 %v1618
        %1627 = vmatprep.subr.bf16.mxu0 0
        %1628 = vmatpush1.bf16.msra.mxu0 %v1619
        %1629 = vmatprep.subr.bf16.mxu0 0
        %1630 = vmatpush1.bf16.msra.mxu0 0
        %1631 = vmatprep.subr.bf16.mxu0 0
        %1632 = vmatpush1.bf16.msra.mxu0 0
        %1633 = vmatprep.subr.bf16.mxu0 0
        %1634 = vmatpush1.bf16.msra.mxu0 0
        %1635 = vmatprep.subr.bf16.mxu0 0
        %1636 = vmatpush1.bf16.msra.mxu0 0
        %1637 = vmatprep.subr.bf16.mxu0 0
        %1638 = vmatpush1.bf16.msra.mxu0 0
        %1639 = vmatprep.subr.bf16.mxu0 0
        %1640 = vmatpush1.bf16.msra.mxu0 0
        %1641 = vmatprep.subr.bf16.mxu0 0
        %1642 = vmatpush1.bf16.msra.mxu0 0
        %1643 = vmatprep.subr.bf16.mxu0 0
        %1644 = vmatpush1.bf16.msra.mxu0 0
        %1645 = vmatprep.subr.bf16.mxu0 0
        %1646 = vmatpush1.bf16.msra.mxu0 0
        %1647 = vmatprep.subr.bf16.mxu0 0
        %1648 = vmatpush1.bf16.msra.mxu0 0
        %1649 = vmatprep.subr.bf16.mxu0 0
        %1650 = vmatpush1.bf16.msra.mxu0 0
        %1651 = vmatprep.subr.bf16.mxu0 0
        %1652 = vmatpush1.bf16.msra.mxu0 0
        %1653 = vmatprep.subr.bf16.mxu0 0
        %1654 = vmatpush1.bf16.msra.mxu0 0
        %1655 = vmatprep.subr.bf16.mxu0 0
        %1656 = vmatpush1.bf16.msra.mxu0 0
        %1657 = vmatprep.mubr.bf16.mxu0 0
        %1658 = vmatmul.mubr.bf16.gmra.mrb[0].mxu0 %v1623
        %v1659 = vpop.f32.mrb[0].mxu0
        %v1660 = vadd.f32 %v1608, %v1659
        %v1661 = vpop.f32.mrb[0].mxu0
        %v1662 = vpop.f32.mrb[0].mxu0
        %v1663 = vpop.f32.mrb[0].mxu0
        %1664 = vdwg.mxu0
        %v1665 = vadd.f32 %v858, %v1660
        %v1666 = vld [vmem:[#allocation28] sm:$0x1]
        %v1667 = vld [vmem:[#allocation29] sm:$0x1]
        %v1668 = vsel %vm862, %v1665, 0.0
        %1669 = vadd.xlane.f32.xlu0 %v1668
        %v1670 = vpop.xlane.xlu0 %1669
        %v1671 = vmul.f32 %v1670, %v866
        %v1672 = vsub.f32 %v1665, %v1671
        %v1673 = vmul.f32 %v1672, %v1672
        %v1674 = vsel %vm862, %v1673, 0.0
        %1675 = vadd.xlane.f32.xlu0 %v1674
        %v1676 = vpop.xlane.xlu0 %1675
        %v1677 = vmul.f32 %v1676, 0.032258064
        %v1678 = vrsqrt.pop %v1677
        %v1679 = vmul.f32 %v1677, %v1678
        %vm1680 = vcmp.eq.f32.partialorder %v1677, inf
        %v1681 = vsel %vm1680, %v1677, %v1679
        %vm1682 = vcmp.eq.f32.partialorder %v1677, 0.0
        %v1683 = vand.u32 %v1677, 2147483648
        %v1684 = vsel %vm1682, %v1683, %v1681
        %v1685 = vadd.f32 %v1684, 1e-06
        %v1686 = vrcp.pop %v1685
        %v1688 = vlaneseq
        %v1689 = vshrl.u32 %v1688, 7
        %v1690 = vsub.s32 0, %v1689
        %v1691 = vrot.slane %v1666, %v1690
        %v1693 = vmul.f32 %v1691, %v1672
        %v1694 = vmul.f32 %v1693, %v1686
        %v1696 = vlaneseq
        %v1697 = vshrl.u32 %v1696, 7
        %v1698 = vsub.s32 0, %v1697
        %v1699 = vrot.slane %v1667, %v1698
        %v1701 = vadd.f32 %v1694, %v1699
        %v1702 = vpack.c.bf16 %v1701, %v1701
        %v1703 = vld [vmem:[#allocation22] sm:$0xf]
        %v1704 = vld [vmem:[#allocation22 + $0x4] sm:$0xf]
        %v1705 = vld [vmem:[#allocation22 + $0x8] sm:$0xf]
        %v1706 = vld [vmem:[#allocation22 + $0xc] sm:$0xf]
        %v1707 = vld [vmem:[#allocation23] sm:$0x1]
        %v1709 = vlaneseq
        %v1710 = vshrl.u32 %v1709, 7
        %v1711 = vsub.s32 0, %v1710
        %v1712 = vrot.slane %v1707, %v1711
        %v1718 = vunpack.c.l.b16 %v1703
        %v1719 = vunpack.c.l.b16 %v1704
        %v1720 = vunpack.c.l.b16 %v1705
        %v1721 = vunpack.c.l.b16 %v1706
        %v1722 = vpack.c.b16 %v1719, %v1718
        %v1723 = vpack.c.b16 %v1721, %v1720
        %v1727 = vsel %vm862, %v1702, 0
        %1729 = vmatprep.subr.bf16.mxu0 0
        %1730 = vmatpush1.bf16.msra.mxu0 %v1722
        %1731 = vmatprep.subr.bf16.mxu0 0
        %1732 = vmatpush1.bf16.msra.mxu0 %v1723
        %1733 = vmatprep.subr.bf16.mxu0 0
        %1734 = vmatpush1.bf16.msra.mxu0 0
        %1735 = vmatprep.subr.bf16.mxu0 0
        %1736 = vmatpush1.bf16.msra.mxu0 0
        %1737 = vmatprep.subr.bf16.mxu0 0
        %1738 = vmatpush1.bf16.msra.mxu0 0
        %1739 = vmatprep.subr.bf16.mxu0 0
        %1740 = vmatpush1.bf16.msra.mxu0 0
        %1741 = vmatprep.subr.bf16.mxu0 0
        %1742 = vmatpush1.bf16.msra.mxu0 0
        %1743 = vmatprep.subr.bf16.mxu0 0
        %1744 = vmatpush1.bf16.msra.mxu0 0
        %1745 = vmatprep.subr.bf16.mxu0 0
        %1746 = vmatpush1.bf16.msra.mxu0 0
        %1747 = vmatprep.subr.bf16.mxu0 0
        %1748 = vmatpush1.bf16.msra.mxu0 0
        %1749 = vmatprep.subr.bf16.mxu0 0
        %1750 = vmatpush1.bf16.msra.mxu0 0
        %1751 = vmatprep.subr.bf16.mxu0 0
        %1752 = vmatpush1.bf16.msra.mxu0 0
        %1753 = vmatprep.subr.bf16.mxu0 0
        %1754 = vmatpush1.bf16.msra.mxu0 0
        %1755 = vmatprep.subr.bf16.mxu0 0
        %1756 = vmatpush1.bf16.msra.mxu0 0
        %1757 = vmatprep.subr.bf16.mxu0 0
        %1758 = vmatpush1.bf16.msra.mxu0 0
        %1759 = vmatprep.subr.bf16.mxu0 0
        %1760 = vmatpush1.bf16.msra.mxu0 0
        %1761 = vmatprep.mubr.bf16.mxu0 0
        %1762 = vmatmul.mubr.bf16.gmra.mrb[0].mxu0 %v1727
        %v1763 = vpop.f32.mrb[0].mxu0
        %v1764 = vadd.f32 %v1712, %v1763
        %v1765 = vpop.f32.mrb[0].mxu0
        %v1766 = vpop.f32.mrb[0].mxu0
        %v1767 = vpop.f32.mrb[0].mxu0
        %1768 = vdwg.mxu0
        %v1769 = vmul.f32 %v1764, 0.5
        %v1770 = vmul.f32 %v1764, 0.044715
        %v1771 = vmul.f32 %v1770, %v1764
        %v1772 = vmul.f32 %v1771, %v1764
        %v1773 = vadd.f32 %v1764, %v1772
        %v1774 = vmul.f32 %v1773, 0.7978846
        %v1775 = vtanh.pop %v1774
        %v1776 = vadd.f32 %v1775, 1.0
        %v1777 = vmul.f32 %v1769, %v1776
        %v1778 = vpack.c.bf16 %v1777, %v1777
        %v1779 = vld [vmem:[#allocation25] sm:$0xf]
        %v1780 = vld [vmem:[#allocation25 + $0x4] sm:$0xf]
        %v1781 = vld [vmem:[#allocation25 + $0x8] sm:$0xf]
        %v1782 = vld [vmem:[#allocation25 + $0xc] sm:$0xf]
        %v1783 = vld [vmem:[#allocation25 + $0x10] sm:$0xf]
        %v1784 = vld [vmem:[#allocation25 + $0x14] sm:$0xf]
        %v1785 = vld [vmem:[#allocation25 + $0x18] sm:$0xf]
        %v1786 = vld [vmem:[#allocation25 + $0x1c] sm:$0xf]
        %v1787 = vld [vmem:[#allocation25 + $0x20] sm:$0xf]
        %v1788 = vld [vmem:[#allocation25 + $0x24] sm:$0xf]
        %v1789 = vld [vmem:[#allocation25 + $0x28] sm:$0xf]
        %v1790 = vld [vmem:[#allocation25 + $0x2c] sm:$0xf]
        %v1791 = vld [vmem:[#allocation25 + $0x30] sm:$0xf]
        %v1792 = vld [vmem:[#allocation25 + $0x34] sm:$0xf]
        %v1793 = vld [vmem:[#allocation25 + $0x38] sm:$0xf]
        %v1794 = vld [vmem:[#allocation25 + $0x3c] sm:$0xf]
        %v1795 = vld [vmem:[#allocation26] sm:$0x1]
        %v1797 = vlaneseq
        %v1798 = vshrl.u32 %v1797, 7
        %v1799 = vsub.s32 0, %v1798
        %v1800 = vrot.slane %v1795, %v1799
        %v1818 = vunpack.c.l.b16 %v1779
        %v1819 = vunpack.c.l.b16 %v1780
        %v1820 = vunpack.c.l.b16 %v1781
        %v1821 = vunpack.c.l.b16 %v1782
        %v1822 = vunpack.c.l.b16 %v1783
        %v1823 = vunpack.c.l.b16 %v1784
        %v1824 = vunpack.c.l.b16 %v1785
        %v1825 = vunpack.c.l.b16 %v1786
        %v1826 = vunpack.c.l.b16 %v1787
        %v1827 = vunpack.c.l.b16 %v1788
        %v1828 = vunpack.c.l.b16 %v1789
        %v1829 = vunpack.c.l.b16 %v1790
        %v1830 = vunpack.c.l.b16 %v1791
        %v1831 = vunpack.c.l.b16 %v1792
        %v1832 = vunpack.c.l.b16 %v1793
        %v1833 = vunpack.c.l.b16 %v1794
        %v1834 = vpack.c.b16 %v1819, %v1818
        %v1835 = vpack.c.b16 %v1821, %v1820
        %v1836 = vpack.c.b16 %v1823, %v1822
        %v1837 = vpack.c.b16 %v1825, %v1824
        %v1838 = vpack.c.b16 %v1827, %v1826
        %v1839 = vpack.c.b16 %v1829, %v1828
        %v1840 = vpack.c.b16 %v1831, %v1830
        %v1841 = vpack.c.b16 %v1833, %v1832
        %1850 = vmatprep.subr.bf16.mxu0 0
        %1851 = vmatpush1.bf16.msra.mxu0 %v1834
        %1852 = vmatprep.subr.bf16.mxu0 0
        %1853 = vmatpush1.bf16.msra.mxu0 %v1835
        %1854 = vmatprep.subr.bf16.mxu0 0
        %1855 = vmatpush1.bf16.msra.mxu0 %v1836
        %1856 = vmatprep.subr.bf16.mxu0 0
        %1857 = vmatpush1.bf16.msra.mxu0 %v1837
        %1858 = vmatprep.subr.bf16.mxu0 0
        %1859 = vmatpush1.bf16.msra.mxu0 %v1838
        %1860 = vmatprep.subr.bf16.mxu0 0
        %1861 = vmatpush1.bf16.msra.mxu0 %v1839
        %1862 = vmatprep.subr.bf16.mxu0 0
        %1863 = vmatpush1.bf16.msra.mxu0 %v1840
        %1864 = vmatprep.subr.bf16.mxu0 0
        %1865 = vmatpush1.bf16.msra.mxu0 %v1841
        %1866 = vmatprep.subr.bf16.mxu0 0
        %1867 = vmatpush1.bf16.msra.mxu0 0
        %1868 = vmatprep.subr.bf16.mxu0 0
        %1869 = vmatpush1.bf16.msra.mxu0 0
        %1870 = vmatprep.subr.bf16.mxu0 0
        %1871 = vmatpush1.bf16.msra.mxu0 0
        %1872 = vmatprep.subr.bf16.mxu0 0
        %1873 = vmatpush1.bf16.msra.mxu0 0
        %1874 = vmatprep.subr.bf16.mxu0 0
        %1875 = vmatpush1.bf16.msra.mxu0 0
        %1876 = vmatprep.subr.bf16.mxu0 0
        %1877 = vmatpush1.bf16.msra.mxu0 0
        %1878 = vmatprep.subr.bf16.mxu0 0
        %1879 = vmatpush1.bf16.msra.mxu0 0
        %1880 = vmatprep.subr.bf16.mxu0 0
        %1881 = vmatpush1.bf16.msra.mxu0 0
        %1882 = vmatprep.mubr.bf16.mxu0 0
        %1883 = vmatmul.mubr.bf16.gmra.mrb[0].mxu0 %v1778
        %v1884 = vpop.f32.mrb[0].mxu0
        %v1885 = vadd.f32 %v1800, %v1884
        %v1886 = vpop.f32.mrb[0].mxu0
        %v1887 = vpop.f32.mrb[0].mxu0
        %v1888 = vpop.f32.mrb[0].mxu0
        %1889 = vdwg.mxu0
        %v1890 = vadd.f32 %v1665, %v1885
        %1891 = vst.msk [vmem:[%s856] sm:$0xff] %vm862, %v1890
        %s1892 = sand.u32 %s458, 1
        %s1893 = scalar_lea.sflag [#allocation4], %s1892
        %s1894 = sand.u32 %s458, 1
        %s1895 = smul.addr %s1894, 8
        %s1896 = scalar_lea.vmem [#allocation31], %s1895
        // Predicated region
        $region165: #{tpu_custom_call.1} parent=91 // pred_check
          %p1897 = pneg %p468
        $region166: #{tpu_custom_call.1} parent=91 // pred_check_branch
          %1899 = sbr.rel (%p1897) target = $region168
        $region167: #{tpu_custom_call.1} parent=91 // pred_region
          %s1901 = ssub.s32 128, 128
          %1902 = vsyncadd %s1893, %s1901
          %s1903 = sadd.s32 %s51, %s50
          %s1904 = smul.addr %s1903, 128
          %s1905 = scalar_lea.hbm %s18, %s1904
          %s1907 = sshll.u32 %s1896, 4
          %s1908 = int_to_ptr.vmem [resolvable:$true] %s1907
          %1910 = dma.vmem_to_hbm [thread:$0]  %s1908, 128, %s1905, %s1893
        $region168: #{tpu_custom_call.1} parent=91 // pred_fallthru
          _
      $region92: #{tpu_custom_call.1} parent=5 // pred_fallthru
        _
      %p1911 = scmp.le.s32.totalorder 2, %s41
      // Predicated region
      $region169: #{tpu_custom_call.1} parent=5 // pred_check
        %p1912 = pneg %p1911
      $region170: #{tpu_custom_call.1} parent=5 // pred_check_branch
        %1914 = sbr.rel (%p1912) target = $region172
      $region171: #{tpu_custom_call.1} parent=5 // pred_region
        %s1915 = ssub.s32 %s41, 2
        // Predicated region
        $region173: #{tpu_custom_call.1} parent=171 // pred_check
          %p1916 = pneg %p474
        $region174: #{tpu_custom_call.1} parent=171 // pred_check_branch
          %1918 = sbr.rel (%p1916) target = $region176
        $region175: #{tpu_custom_call.1} parent=171 // pred_region
          %s1919 = sand.u32 %s459, 1
          %s1920 = scalar_lea.sflag [#allocation4], %s1919
          %s1921 = sand.u32 %s459, 1
          %s1922 = smul.addr %s1921, 8
          %s1923 = scalar_lea.vmem [#allocation31], %s1922
          %1924 = dma.done %s1920, 128
        $region176: #{tpu_custom_call.1} parent=171 // pred_fallthru
          _
      $region172: #{tpu_custom_call.1} parent=5 // pred_fallthru
        _
    $region6: #{tpu_custom_call.1} parent=1 // loop_footer
      %s45 = sadd.s32 1, %s41
    $region7: #{tpu_custom_call.1} parent=1 // loop_footer_branch
      %40 = sbr.rel target = $region3
    $region8: #{tpu_custom_call.1} parent=1 // loop_exit
      _
    %1925 = vsyncpa [#allocation3], 1
    %s1926 = scalar_lea.sflag [#allocation3], 1
    %1927 = vsyncpa %s1926, 1
    %1928 = vsyncpa [#allocation6], 1
    %s1929 = scalar_lea.sflag [#allocation6], 1
    %1930 = vsyncpa %s1929, 1
    %1931 = vsyncpa [#allocation9], 1
    %1932 = vsyncpa [#allocation12], 1
    %1933 = vsyncpa [#allocation15], 1
    %1934 = vsyncpa [#allocation18], 1
    %1935 = vsyncpa [#allocation21], 1
    %1936 = vsyncpa [#allocation24], 1
    %1937 = vsyncpa [#allocation27], 1
    %1938 = vsyncpa [#allocation30], 1
    %1939 = vsyncpa [#allocation4], 1
    %s1940 = scalar_lea.sflag [#allocation4], 1
    %1941 = vsyncpa %s1940, 1

// kernel: tpu_custom_call.1
$region0: #{tpu_custom_call.1}
  #allocation0 [shape = 'u32[]', space=smem, size = 0x4, offset = 0x4, fixed_abs, tag = 'smem constant byte address 0x4 - core index']
  #allocation1 [shape = 'u32[144,128]{1,0:T(1,128)}', space=vmem, size = 0x12000, scoped, tag = 'internal scratch']
  %s0 = inlined_call_operand.hbm [shape: f32[2,8,32], index: 0, kind: input, shape index: {}]
  %s1 = inlined_call_operand.hbm [shape: f32[2,8,32], index: 1, kind: input, shape index: {}]
  %s2 = inlined_call_operand.hbm [shape: bf16[32,32], index: 2, kind: input, shape index: {}]
  %s3 = inlined_call_operand.hbm [shape: f32[1,32], index: 3, kind: input, shape index: {}]
  %s4 = inlined_call_operand.hbm [shape: bf16[32,32], index: 4, kind: input, shape index: {}]
  %s5 = inlined_call_operand.hbm [shape: f32[1,32], index: 5, kind: input, shape index: {}]
  %s6 = inlined_call_operand.hbm [shape: bf16[32,32], index: 6, kind: input, shape index: {}]
  %s7 = inlined_call_operand.hbm [shape: f32[1,32], index: 7, kind: input, shape index: {}]
  %s8 = inlined_call_operand.hbm [shape: bf16[32,32], index: 8, kind: input, shape index: {}]
  %s9 = inlined_call_operand.hbm [shape: f32[1,32], index: 9, kind: input, shape index: {}]
  %s10 = inlined_call_operand.hbm [shape: f32[1,32], index: 10, kind: input, shape index: {}]
  %s11 = inlined_call_operand.hbm [shape: f32[1,32], index: 11, kind: input, shape index: {}]
  %s12 = inlined_call_operand.hbm [shape: bf16[32,128], index: 12, kind: input, shape index: {}]
  %s13 = inlined_call_operand.hbm [shape: f32[1,128], index: 13, kind: input, shape index: {}]
  %s14 = inlined_call_operand.hbm [shape: bf16[128,32], index: 14, kind: input, shape index: {}]
  %s15 = inlined_call_operand.hbm [shape: f32[1,32], index: 15, kind: input, shape index: {}]
  %s16 = inlined_call_operand.hbm [shape: f32[1,32], index: 16, kind: input, shape index: {}]
  %s17 = inlined_call_operand.hbm [shape: f32[1,32], index: 17, kind: input, shape index: {}]
  %s18 = inlined_call_operand.hbm [shape: f32[2,8,32], index: 18, kind: output, shape index: {}]
  %s19 = sld [smem:[#allocation0]]
  $region177: #{tpu_custom_call.1} parent=0
    _
  %s21 = ssub.s32 1, %s19
  %s22 = scalar_select 0, %s21, %s19
  $region1: #{tpu_custom_call.1} parent=0
    #allocation2 [shape = 'u8[8192]{0}', space=vmem, size = 0x2000, scoped, tag = 'input window, operand 0']
    #allocation3 [shape = 's32[2]{0}', space=sflag, size = 0x8, scoped, tag = 'scoped memory for tpu_custom_call.1']
    #allocation4 [shape = 's32[2]{0}', space=sflag, size = 0x8, scoped, tag = 'scoped memory for tpu_custom_call.1']
    #allocation5 [shape = 'u8[8192]{0}', space=vmem, size = 0x2000, scoped, tag = 'input window, operand 1']
    #allocation6 [shape = 's32[2]{0}', space=sflag, size = 0x8, scoped, tag = 'scoped memory for tpu_custom_call.1']
    #allocation7 [shape = 'u8[8192]{0}', space=vmem, size = 0x2000, scoped, tag = 'input window, operand 2, single buffered']
    #allocation8 [shape = 'u8[512]{0}', space=vmem, size = 0x400, scoped, tag = 'input window, operand 3, single buffered']
    #allocation9 [shape = 's32[1]{0}', space=sflag, size = 0x4, scoped, tag = 'scoped memory for tpu_custom_call.1']
    #allocation10 [shape = 'u8[8192]{0}', space=vmem, size = 0x2000, scoped, tag = 'input window, operand 4, single buffered']
    #allocation11 [shape = 'u8[512]{0}', space=vmem, size = 0x400, scoped, tag = 'input window, operand 5, single buffered']
    #allocation12 [shape = 's32[1]{0}', space=sflag, size = 0x4, scoped, tag = 'scoped memory for tpu_custom_call.1']
    #allocation13 [shape = 'u8[8192]{0}', space=vmem, size = 0x2000, scoped, tag = 'input window, operand 6, single buffered']
    #allocation14 [shape = 'u8[512]{0}', space=vmem, size = 0x400, scoped, tag = 'input window, operand 7, single buffered']
    #allocation15 [shape = 's32[1]{0}', space=sflag, size = 0x4, scoped, tag = 'scoped memory for tpu_custom_call.1']
    #allocation16 [shape = 'u8[8192]{0}', space=vmem, size = 0x2000, scoped, tag = 'input window, operand 8, single buffered']
    #allocation17 [shape = 'u8[512]{0}', space=vmem, size = 0x400, scoped, tag = 'input window, operand 9, single buffered']
    #allocation18 [shape = 's32[1]{0}', space=sflag, size = 0x4, scoped, tag = 'scoped memory for tpu_custom_call.1']
    #allocation19 [shape = 'u8[512]{0}', space=vmem, size = 0x400, scoped, tag = 'input window, operand 10, single buffered']
    #allocation20 [shape = 'u8[512]{0}', space=vmem, size = 0x400, scoped, tag = 'input window, operand 11, single buffered']
    #allocation21 [shape = 's32[1]{0}', space=sflag, size = 0x4, scoped, tag = 'scoped memory for tpu_custom_call.1']
    #allocation22 [shape = 'u8[8192]{0}', space=vmem, size = 0x2000, scoped, tag = 'input window, operand 12, single buffered']
    #allocation23 [shape = 'u8[512]{0}', space=vmem, size = 0x400, scoped, tag = 'input window, operand 13, single buffered']
    #allocation24 [shape = 's32[1]{0}', space=sflag, size = 0x4, scoped, tag = 'scoped memory for tpu_custom_call.1']
    #allocation25 [shape = 'u8[32768]{0}', space=vmem, size = 0x8000, scoped, tag = 'input window, operand 14, single buffered']
    #allocation26 [shape = 'u8[512]{0}', space=vmem, size = 0x400, scoped, tag = 'input window, operand 15, single buffered']
    #allocation27 [shape = 's32[1]{0}', space=sflag, size = 0x4, scoped, tag = 'scoped memory for tpu_custom_call.1']
    #allocation28 [shape = 'u8[512]{0}', space=vmem, size = 0x400, scoped, tag = 'input window, operand 16, single buffered']
    #allocation29 [shape = 'u8[512]{0}', space=vmem, size = 0x400, scoped, tag = 'input window, operand 17, single buffered']
    #allocation30 [shape = 's32[1]{0}', space=sflag, size = 0x4, scoped, tag = 'scoped memory for tpu_custom_call.1']
    #allocation31 [shape = 'u8[8192]{0}', space=vmem, size = 0x2000, scoped, tag = 'output window, operand 0']
    %23 = vsyncpa [#allocation3], 0
    %s24 = scalar_lea.sflag [#allocation3], 1
    %25 = vsyncpa %s24, 0
    %26 = vsyncpa [#allocation6], 0
    %s27 = scalar_lea.sflag [#allocation6], 1
    %28 = vsyncpa %s27, 0
    %29 = vsyncpa [#allocation9], 0
    %30 = vsyncpa [#allocation12], 0
    %31 = vsyncpa [#allocation15], 0
    %32 = vsyncpa [#allocation18], 0
    %33 = vsyncpa [#allocation21], 0
    %34 = vsyncpa [#allocation24], 0
    %35 = vsyncpa [#allocation27], 0
    %36 = vsyncpa [#allocation30], 0
    %37 = vsyncpa [#allocation4], 0
    %s38 = scalar_lea.sflag [#allocation4], 1
    %39 = vsyncpa %s38, 0
    loop: start=0, step=1, limit=4
    $region2: #{tpu_custom_call.1} parent=1 // loop_pre_header
      _
    $region3: #{tpu_custom_call.1} parent=1 // loop_header
      %s41 = sphi 0, %s45
      %p42 = scmp.ge.s32.totalorder %s41, 4
      %s48 = sphi 0, %s60
      %s49 = sphi 0, %s56
      %s50 = sphi 0, %s48
      %s51 = sphi 0, %s49
      %s52 = sphi 0, %s50
      %s53 = sphi 0, %s51
      %s65 = sphi 0, %s67
      %s68 = sphi 0, %s65
      %s69 = sphi 0, %s68
      %s85 = sphi 0, %s69
      %s91 = sphi 0, %s93
      %s94 = sphi 0, %s91
      %s95 = sphi 0, %s94
      %s111 = sphi 0, %s95
      %s115 = sphi 0, %s115
      %s117 = sphi 0, %s115
      %s118 = sphi 0, %s117
      %s132 = sphi 0, %s118
      %s136 = sphi 0, %s136
      %s138 = sphi 0, %s136
      %s139 = sphi 0, %s138
      %s153 = sphi 0, %s139
      %s157 = sphi 0, %s157
      %s159 = sphi 0, %s157
      %s160 = sphi 0, %s159
      %s174 = sphi 0, %s160
      %s178 = sphi 0, %s178
      %s180 = sphi 0, %s178
      %s181 = sphi 0, %s180
      %s195 = sphi 0, %s181
      %s199 = sphi 0, %s199
      %s201 = sphi 0, %s199
      %s202 = sphi 0, %s201
      %s216 = sphi 0, %s202
      %s220 = sphi 0, %s220
      %s222 = sphi 0, %s220
      %s223 = sphi 0, %s222
      %s237 = sphi 0, %s223
      %s241 = sphi 0, %s241
      %s243 = sphi 0, %s241
      %s244 = sphi 0, %s243
      %s258 = sphi 0, %s244
      %s262 = sphi 0, %s262
      %s264 = sphi 0, %s262
      %s265 = sphi 0, %s264
      %s279 = sphi 0, %s265
      %s283 = sphi 0, %s283
      %s285 = sphi 0, %s283
      %s286 = sphi 0, %s285
      %s300 = sphi 0, %s286
      %s304 = sphi 0, %s304
      %s306 = sphi 0, %s304
      %s307 = sphi 0, %s306
      %s321 = sphi 0, %s307
      %s325 = sphi 0, %s325
      %s327 = sphi 0, %s325
      %s328 = sphi 0, %s327
      %s342 = sphi 0, %s328
      %s346 = sphi 0, %s346
      %s348 = sphi 0, %s346
      %s349 = sphi 0, %s348
      %s363 = sphi 0, %s349
      %s367 = sphi 0, %s367
      %s369 = sphi 0, %s367
      %s370 = sphi 0, %s369
      %s384 = sphi 0, %s370
      %s388 = sphi 0, %s388
      %s390 = sphi 0, %s388
      %s391 = sphi 0, %s390
      %s405 = sphi 0, %s391
      %s409 = sphi 0, %s409
      %s411 = sphi 0, %s409
      %s412 = sphi 0, %s411
      %s426 = sphi 0, %s412
      %s430 = sphi 0, %s430
      %s432 = sphi 0, %s430
      %s433 = sphi 0, %s432
      %s447 = sphi 0, %s433
      %s455 = sphi 0, %s457
      %s458 = sphi 0, %s455
      %s459 = sphi 0, %s458
      %s475 = sphi 0, %s459
    $region4: #{tpu_custom_call.1} parent=1 // loop_header_branch
      %44 = sbr.rel (%p42) target = $region8
    $region5: #{tpu_custom_call.1} parent=1 // loop_body
      %s46 = ssub.s32 %s41, 1
      %s47 = ssub.s32 %s41, 2
      %s54 = sadd.s32 1, %s49
      %p55 = scmp.ge.s32.totalorder %s54, 1
      %s56 = scalar_select %p55, 0, %s54
      %s57 = sadd.s32 1, %s48
      %s58 = scalar_select %p55, %s57, %s48
      %p59 = scmp.ge.s32.totalorder %s58, 2
      %s60 = scalar_select %p59, 0, %s58
      %s61 = ssub.s32 %s48, %s60
      %s62 = ssub.s32 %s49, %s56
      %s63 = sor.u32 %s61, %s62
      %p64 = scmp.eq.s32.totalorder %s63, 0
      %s66 = sadd.s32 %s65, 1
      %s67 = scalar_select %p64, %s65, %s66
      %p70 = pneg %p64
      %p71 = scmp.eq.s32.totalorder %s41, 1
      %p72 = por %p70, %p71
      %p73 = scmp.ne.s32.totalorder %s65, %s68
      %p74 = scmp.eq.s32.totalorder %s41, 0
      %p75 = por %p73, %p74
      %p76 = scmp.ne.s32.totalorder %s65, %s68
      %p77 = scmp.eq.s32.totalorder %s46, 1
      %p78 = por %p76, %p77
      %p79 = scmp.ne.s32.totalorder %s68, %s69
      %p80 = scmp.eq.s32.totalorder %s46, 0
      %p81 = por %p79, %p80
      %p82 = scmp.ne.s32.totalorder %s68, %s69
      %p83 = scmp.eq.s32.totalorder %s47, 1
      %p84 = por %p82, %p83
      %p86 = scmp.ne.s32.totalorder %s69, %s85
      %p87 = scmp.eq.s32.totalorder %s47, 0
      %p88 = por %p86, %p87
      %s89 = ssub.s32 %s48, %s60
      %p90 = scmp.eq.s32.totalorder %s89, 0
      %s92 = sadd.s32 %s91, 1
      %s93 = scalar_select %p90, %s91, %s92
      %p96 = pneg %p90
      %p97 = scmp.eq.s32.totalorder %s41, 1
      %p98 = por %p96, %p97
      %p99 = scmp.ne.s32.totalorder %s91, %s94
      %p100 = scmp.eq.s32.totalorder %s41, 0
      %p101 = por %p99, %p100
      %p102 = scmp.ne.s32.totalorder %s91, %s94
      %p103 = scmp.eq.s32.totalorder %s46, 1
      %p104 = por %p102, %p103
      %p105 = scmp.ne.s32.totalorder %s94, %s95
      %p106 = scmp.eq.s32.totalorder %s46, 0
      %p107 = por %p105, %p106
      %p108 = scmp.ne.s32.totalorder %s94, %s95
      %p109 = scmp.eq.s32.totalorder %s47, 1
      %p110 = por %p108, %p109
      %p112 = scmp.ne.s32.totalorder %s95, %s111
      %p113 = scmp.eq.s32.totalorder %s47, 0
      %p114 = por %p112, %p113
      %s116 = sadd.s32 %s115, 1
      %p119 = scmp.eq.s32.totalorder %s41, 1
      %p120 = scmp.ne.s32.totalorder %s115, %s117
      %p121 = scmp.eq.s32.totalorder %s41, 0
      %p122 = por %p120, %p121
      %p123 = scmp.ne.s32.totalorder %s115, %s117
      %p124 = scmp.eq.s32.totalorder %s46, 1
      %p125 = por %p123, %p124
      %p126 = scmp.ne.s32.totalorder %s117, %s118
      %p127 = scmp.eq.s32.totalorder %s46, 0
      %p128 = por %p126, %p127
      %p129 = scmp.ne.s32.totalorder %s117, %s118
      %p130 = scmp.eq.s32.totalorder %s47, 1
      %p131 = por %p129, %p130
      %p133 = scmp.ne.s32.totalorder %s118, %s132
      %p134 = scmp.eq.s32.totalorder %s47, 0
      %p135 = por %p133, %p134
      %s137 = sadd.s32 %s136, 1
      %p140 = scmp.eq.s32.totalorder %s41, 1
      %p141 = scmp.ne.s32.totalorder %s136, %s138
      %p142 = scmp.eq.s32.totalorder %s41, 0
      %p143 = por %p141, %p142
      %p144 = scmp.ne.s32.totalorder %s136, %s138
      %p145 = scmp.eq.s32.totalorder %s46, 1
      %p146 = por %p144, %p145
      %p147 = scmp.ne.s32.totalorder %s138, %s139
      %p148 = scmp.eq.s32.totalorder %s46, 0
      %p149 = por %p147, %p148
      %p150 = scmp.ne.s32.totalorder %s138, %s139
      %p151 = scmp.eq.s32.totalorder %s47, 1
      %p152 = por %p150, %p151
      %p154 = scmp.ne.s32.totalorder %s139, %s153
      %p155 = scmp.eq.s32.totalorder %s47, 0
      %p156 = por %p154, %p155
      %s158 = sadd.s32 %s157, 1
      %p161 = scmp.eq.s32.totalorder %s41, 1
      %p162 = scmp.ne.s32.totalorder %s157, %s159
      %p163 = scmp.eq.s32.totalorder %s41, 0
      %p164 = por %p162, %p163
      %p165 = scmp.ne.s32.totalorder %s157, %s159
      %p166 = scmp.eq.s32.totalorder %s46, 1
      %p167 = por %p165, %p166
      %p168 = scmp.ne.s32.totalorder %s159, %s160
      %p169 = scmp.eq.s32.totalorder %s46, 0
      %p170 = por %p168, %p169
      %p171 = scmp.ne.s32.totalorder %s159, %s160
      %p172 = scmp.eq.s32.totalorder %s47, 1
      %p173 = por %p171, %p172
      %p175 = scmp.ne.s32.totalorder %s160, %s174
      %p176 = scmp.eq.s32.totalorder %s47, 0
      %p177 = por %p175, %p176
      %s179 = sadd.s32 %s178, 1
      %p182 = scmp.eq.s32.totalorder %s41, 1
      %p183 = scmp.ne.s32.totalorder %s178, %s180
      %p184 = scmp.eq.s32.totalorder %s41, 0
      %p185 = por %p183, %p184
      %p186 = scmp.ne.s32.totalorder %s178, %s180
      %p187 = scmp.eq.s32.totalorder %s46, 1
      %p188 = por %p186, %p187
      %p189 = scmp.ne.s32.totalorder %s180, %s181
      %p190 = scmp.eq.s32.totalorder %s46, 0
      %p191 = por %p189, %p190
      %p192 = scmp.ne.s32.totalorder %s180, %s181
      %p193 = scmp.eq.s32.totalorder %s47, 1
      %p194 = por %p192, %p193
      %p196 = scmp.ne.s32.totalorder %s181, %s195
      %p197 = scmp.eq.s32.totalorder %s47, 0
      %p198 = por %p196, %p197
      %s200 = sadd.s32 %s199, 1
      %p203 = scmp.eq.s32.totalorder %s41, 1
      %p204 = scmp.ne.s32.totalorder %s199, %s201
      %p205 = scmp.eq.s32.totalorder %s41, 0
      %p206 = por %p204, %p205
      %p207 = scmp.ne.s32.totalorder %s199, %s201
      %p208 = scmp.eq.s32.totalorder %s46, 1
      %p209 = por %p207, %p208
      %p210 = scmp.ne.s32.totalorder %s201, %s202
      %p211 = scmp.eq.s32.totalorder %s46, 0
      %p212 = por %p210, %p211
      %p213 = scmp.ne.s32.totalorder %s201, %s202
      %p214 = scmp.eq.s32.totalorder %s47, 1
      %p215 = por %p213, %p214
      %p217 = scmp.ne.s32.totalorder %s202, %s216
      %p218 = scmp.eq.s32.totalorder %s47, 0
      %p219 = por %p217, %p218
      %s221 = sadd.s32 %s220, 1
      %p224 = scmp.eq.s32.totalorder %s41, 1
      %p225 = scmp.ne.s32.totalorder %s220, %s222
      %p226 = scmp.eq.s32.totalorder %s41, 0
      %p227 = por %p225, %p226
      %p228 = scmp.ne.s32.totalorder %s220, %s222
      %p229 = scmp.eq.s32.totalorder %s46, 1
      %p230 = por %p228, %p229
      %p231 = scmp.ne.s32.totalorder %s222, %s223
      %p232 = scmp.eq.s32.totalorder %s46, 0
      %p233 = por %p231, %p232
      %p234 = scmp.ne.s32.totalorder %s222, %s223
      %p235 = scmp.eq.s32.totalorder %s47, 1
      %p236 = por %p234, %p235
      %p238 = scmp.ne.s32.totalorder %s223, %s237
      %p239 = scmp.eq.s32.totalorder %s47, 0
      %p240 = por %p238, %p239
      %s242 = sadd.s32 %s241, 1
      %p245 = scmp.eq.s32.totalorder %s41, 1
      %p246 = scmp.ne.s32.totalorder %s241, %s243
      %p247 = scmp.eq.s32.totalorder %s41, 0
      %p248 = por %p246, %p247
      %p249 = scmp.ne.s32.totalorder %s241, %s243
      %p250 = scmp.eq.s32.totalorder %s46, 1
      %p251 = por %p249, %p250
      %p252 = scmp.ne.s32.totalorder %s243, %s244
      %p253 = scmp.eq.s32.totalorder %s46, 0
      %p254 = por %p252, %p253
      %p255 = scmp.ne.s32.totalorder %s243, %s244
      %p256 = scmp.eq.s32.totalorder %s47, 1
      %p257 = por %p255, %p256
      %p259 = scmp.ne.s32.totalorder %s244, %s258
      %p260 = scmp.eq.s32.totalorder %s47, 0
      %p261 = por %p259, %p260
      %s263 = sadd.s32 %s262, 1
      %p266 = scmp.eq.s32.totalorder %s41, 1
      %p267 = scmp.ne.s32.totalorder %s262, %s264
      %p268 = scmp.eq.s32.totalorder %s41, 0
      %p269 = por %p267, %p268
      %p270 = scmp.ne.s32.totalorder %s262, %s264
      %p271 = scmp.eq.s32.totalorder %s46, 1
      %p272 = por %p270, %p271
      %p273 = scmp.ne.s32.totalorder %s264, %s265
      %p274 = scmp.eq.s32.totalorder %s46, 0
      %p275 = por %p273, %p274
      %p276 = scmp.ne.s32.totalorder %s264, %s265
      %p277 = scmp.eq.s32.totalorder %s47, 1
      %p278 = por %p276, %p277
      %p280 = scmp.ne.s32.totalorder %s265, %s279
      %p281 = scmp.eq.s32.totalorder %s47, 0
      %p282 = por %p280, %p281
      %s284 = sadd.s32 %s283, 1
      %p287 = scmp.eq.s32.totalorder %s41, 1
      %p288 = scmp.ne.s32.totalorder %s283, %s285
      %p289 = scmp.eq.s32.totalorder %s41, 0
      %p290 = por %p288, %p289
      %p291 = scmp.ne.s32.totalorder %s283, %s285
      %p292 = scmp.eq.s32.totalorder %s46, 1
      %p293 = por %p291, %p292
      %p294 = scmp.ne.s32.totalorder %s285, %s286
      %p295 = scmp.eq.s32.totalorder %s46, 0
      %p296 = por %p294, %p295
      %p297 = scmp.ne.s32.totalorder %s285, %s286
      %p298 = scmp.eq.s32.totalorder %s47, 1
      %p299 = por %p297, %p298
      %p301 = scmp.ne.s32.totalorder %s286, %s300
      %p302 = scmp.eq.s32.totalorder %s47, 0
      %p303 = por %p301, %p302
      %s305 = sadd.s32 %s304, 1
      %p308 = scmp.eq.s32.totalorder %s41, 1
      %p309 = scmp.ne.s32.totalorder %s304, %s306
      %p310 = scmp.eq.s32.totalorder %s41, 0
      %p311 = por %p309, %p310
      %p312 = scmp.ne.s32.totalorder %s304, %s306
      %p313 = scmp.eq.s32.totalorder %s46, 1
      %p314 = por %p312, %p313
      %p315 = scmp.ne.s32.totalorder %s306, %s307
      %p316 = scmp.eq.s32.totalorder %s46, 0
      %p317 = por %p315, %p316
      %p318 = scmp.ne.s32.totalorder %s306, %s307
      %p319 = scmp.eq.s32.totalorder %s47, 1
      %p320 = por %p318, %p319
      %p322 = scmp.ne.s32.totalorder %s307, %s321
      %p323 = scmp.eq.s32.totalorder %s47, 0
      %p324 = por %p322, %p323
      %s326 = sadd.s32 %s325, 1
      %p329 = scmp.eq.s32.totalorder %s41, 1
      %p330 = scmp.ne.s32.totalorder %s325, %s327
      %p331 = scmp.eq.s32.totalorder %s41, 0
      %p332 = por %p330, %p331
      %p333 = scmp.ne.s32.totalorder %s325, %s327
      %p334 = scmp.eq.s32.totalorder %s46, 1
      %p335 = por %p333, %p334
      %p336 = scmp.ne.s32.totalorder %s327, %s328
      %p337 = scmp.eq.s32.totalorder %s46, 0
      %p338 = por %p336, %p337
      %p339 = scmp.ne.s32.totalorder %s327, %s328
      %p340 = scmp.eq.s32.totalorder %s47, 1
      %p341 = por %p339, %p340
      %p343 = scmp.ne.s32.totalorder %s328, %s342
      %p344 = scmp.eq.s32.totalorder %s47, 0
      %p345 = por %p343, %p344
      %s347 = sadd.s32 %s346, 1
      %p350 = scmp.eq.s32.totalorder %s41, 1
      %p351 = scmp.ne.s32.totalorder %s346, %s348
      %p352 = scmp.eq.s32.totalorder %s41, 0
      %p353 = por %p351, %p352
      %p354 = scmp.ne.s32.totalorder %s346, %s348
      %p355 = scmp.eq.s32.totalorder %s46, 1
      %p356 = por %p354, %p355
      %p357 = scmp.ne.s32.totalorder %s348, %s349
      %p358 = scmp.eq.s32.totalorder %s46, 0
      %p359 = por %p357, %p358
      %p360 = scmp.ne.s32.totalorder %s348, %s349
      %p361 = scmp.eq.s32.totalorder %s47, 1
      %p362 = por %p360, %p361
      %p364 = scmp.ne.s32.totalorder %s349, %s363
      %p365 = scmp.eq.s32.totalorder %s47, 0
      %p366 = por %p364, %p365
      %s368 = sadd.s32 %s367, 1
      %p371 = scmp.eq.s32.totalorder %s41, 1
      %p372 = scmp.ne.s32.totalorder %s367, %s369
      %p373 = scmp.eq.s32.totalorder %s41, 0
      %p374 = por %p372, %p373
      %p375 = scmp.ne.s32.totalorder %s367, %s369
      %p376 = scmp.eq.s32.totalorder %s46, 1
      %p377 = por %p375, %p376
      %p378 = scmp.ne.s32.totalorder %s369, %s370
      %p379 = scmp.eq.s32.totalorder %s46, 0
      %p380 = por %p378, %p379
      %p381 = scmp.ne.s32.totalorder %s369, %s370
      %p382 = scmp.eq.s32.totalorder %s47, 1
      %p383 = por %p381, %p382
      %p385 = scmp.ne.s32.totalorder %s370, %s384
      %p386 = scmp.eq.s32.totalorder %s47, 0
      %p387 = por %p385, %p386
      %s389 = sadd.s32 %s388, 1
      %p392 = scmp.eq.s32.totalorder %s41, 1
      %p393 = scmp.ne.s32.totalorder %s388, %s390
      %p394 = scmp.eq.s32.totalorder %s41, 0
      %p395 = por %p393, %p394
      %p396 = scmp.ne.s32.totalorder %s388, %s390
      %p397 = scmp.eq.s32.totalorder %s46, 1
      %p398 = por %p396, %p397
      %p399 = scmp.ne.s32.totalorder %s390, %s391
      %p400 = scmp.eq.s32.totalorder %s46, 0
      %p401 = por %p399, %p400
      %p402 = scmp.ne.s32.totalorder %s390, %s391
      %p403 = scmp.eq.s32.totalorder %s47, 1
      %p404 = por %p402, %p403
      %p406 = scmp.ne.s32.totalorder %s391, %s405
      %p407 = scmp.eq.s32.totalorder %s47, 0
      %p408 = por %p406, %p407
      %s410 = sadd.s32 %s409, 1
      %p413 = scmp.eq.s32.totalorder %s41, 1
      %p414 = scmp.ne.s32.totalorder %s409, %s411
      %p415 = scmp.eq.s32.totalorder %s41, 0
      %p416 = por %p414, %p415
      %p417 = scmp.ne.s32.totalorder %s409, %s411
      %p418 = scmp.eq.s32.totalorder %s46, 1
      %p419 = por %p417, %p418
      %p420 = scmp.ne.s32.totalorder %s411, %s412
      %p421 = scmp.eq.s32.totalorder %s46, 0
      %p422 = por %p420, %p421
      %p423 = scmp.ne.s32.totalorder %s411, %s412
      %p424 = scmp.eq.s32.totalorder %s47, 1
      %p425 = por %p423, %p424
      %p427 = scmp.ne.s32.totalorder %s412, %s426
      %p428 = scmp.eq.s32.totalorder %s47, 0
      %p429 = por %p427, %p428
      %s431 = sadd.s32 %s430, 1
      %p434 = scmp.eq.s32.totalorder %s41, 1
      %p435 = scmp.ne.s32.totalorder %s430, %s432
      %p436 = scmp.eq.s32.totalorder %s41, 0
      %p437 = por %p435, %p436
      %p438 = scmp.ne.s32.totalorder %s430, %s432
      %p439 = scmp.eq.s32.totalorder %s46, 1
      %p440 = por %p438, %p439
      %p441 = scmp.ne.s32.totalorder %s432, %s433
      %p442 = scmp.eq.s32.totalorder %s46, 0
      %p443 = por %p441, %p442
      %p444 = scmp.ne.s32.totalorder %s432, %s433
      %p445 = scmp.eq.s32.totalorder %s47, 1
      %p446 = por %p444, %p445
      %p448 = scmp.ne.s32.totalorder %s433, %s447
      %p449 = scmp.eq.s32.totalorder %s47, 0
      %p450 = por %p448, %p449
      %s451 = ssub.s32 %s48, %s60
      %s452 = ssub.s32 %s49, %s56
      %s453 = sor.u32 %s451, %s452
      %p454 = scmp.eq.s32.totalorder %s453, 0
      %s456 = sadd.s32 %s455, 1
      %s457 = scalar_select %p454, %s455, %s456
      %p460 = pneg %p454
      %p461 = scmp.eq.s32.totalorder %s41, 1
      %p462 = por %p460, %p461
      %p463 = scmp.ne.s32.totalorder %s455, %s458
      %p464 = scmp.eq.s32.totalorder %s41, 0
      %p465 = por %p463, %p464
      %p466 = scmp.ne.s32.totalorder %s455, %s458
      %p467 = scmp.eq.s32.totalorder %s46, 1
      %p468 = por %p466, %p467
      %p469 = scmp.ne.s32.totalorder %s458, %s459
      %p470 = scmp.eq.s32.totalorder %s46, 0
      %p471 = por %p469, %p470
      %p472 = scmp.ne.s32.totalorder %s458, %s459
      %p473 = scmp.eq.s32.totalorder %s47, 1
      %p474 = por %p472, %p473
      %p476 = scmp.ne.s32.totalorder %s459, %s475
      %p477 = scmp.eq.s32.totalorder %s47, 0
      %p478 = por %p476, %p477
      %p479 = scmp.le.s32.totalorder 1, %s41
      %p480 = scmp.lt.s32.totalorder %s41, 3
      %p481 = pnand %p479, %p480
      %p482 = pneg %p481
      // Predicated region
      $region9: #{tpu_custom_call.1} parent=5 // pred_check
        _
      $region10: #{tpu_custom_call.1} parent=5 // pred_check_branch
        %484 = sbr.rel (%p481) target = $region12
      $region11: #{tpu_custom_call.1} parent=5 // pred_region
        %s485 = ssub.s32 %s41, 1
        // Predicated region
        $region13: #{tpu_custom_call.1} parent=11 // pred_check
          %p486 = pneg %p128
        $region14: #{tpu_custom_call.1} parent=11 // pred_check_branch
          %488 = sbr.rel (%p486) target = $region16
        $region15: #{tpu_custom_call.1} parent=11 // pred_region
          %s490 = ssub.s32 256, 256
          %491 = vsyncadd [#allocation6], %s490
          %s492 = sshll.u32 [#allocation7], 4
          %s493 = int_to_ptr.vmem [resolvable:$true] %s492
          %498 = dma.hbm_to_vmem [thread:$0]  %s2, 256, %s493, [#allocation6], 64, 64, 4
        $region16: #{tpu_custom_call.1} parent=11 // pred_fallthru
          _
        // Predicated region
        $region17: #{tpu_custom_call.1} parent=11 // pred_check
          %p499 = pneg %p149
        $region18: #{tpu_custom_call.1} parent=11 // pred_check_branch
          %501 = sbr.rel (%p499) target = $region20
        $region19: #{tpu_custom_call.1} parent=11 // pred_region
          %s503 = ssub.s32 16, 16
          %504 = vsyncadd [#allocation9], %s503
          %s506 = sshll.u32 [#allocation8], 4
          %s507 = int_to_ptr.vmem [resolvable:$true] %s506
          %509 = dma.hbm_to_vmem [thread:$0]  %s3, 16, %s507, [#allocation9]
        $region20: #{tpu_custom_call.1} parent=11 // pred_fallthru
          _
        // Predicated region
        $region21: #{tpu_custom_call.1} parent=11 // pred_check
          %p510 = pneg %p170
        $region22: #{tpu_custom_call.1} parent=11 // pred_check_branch
          %512 = sbr.rel (%p510) target = $region24
        $region23: #{tpu_custom_call.1} parent=11 // pred_region
          %s514 = ssub.s32 256, 256
          %515 = vsyncadd [#allocation9], %s514
          %s516 = sshll.u32 [#allocation10], 4
          %s517 = int_to_ptr.vmem [resolvable:$true] %s516
          %522 = dma.hbm_to_vmem [thread:$0]  %s4, 256, %s517, [#allocation9], 64, 64, 4
        $region24: #{tpu_custom_call.1} parent=11 // pred_fallthru
          _
        // Predicated region
        $region25: #{tpu_custom_call.1} parent=11 // pred_check
          %p523 = pneg %p191
        $region26: #{tpu_custom_call.1} parent=11 // pred_check_branch
          %525 = sbr.rel (%p523) target = $region28
        $region27: #{tpu_custom_call.1} parent=11 // pred_region
          %s527 = ssub.s32 16, 16
          %528 = vsyncadd [#allocation12], %s527
          %s530 = sshll.u32 [#allocation11], 4
          %s531 = int_to_ptr.vmem [resolvable:$true] %s530
          %533 = dma.hbm_to_vmem [thread:$0]  %s5, 16, %s531, [#allocation12]
        $region28: #{tpu_custom_call.1} parent=11 // pred_fallthru
          _
        // Predicated region
        $region29: #{tpu_custom_call.1} parent=11 // pred_check
          %p534 = pneg %p212
        $region30: #{tpu_custom_call.1} parent=11 // pred_check_branch
          %536 = sbr.rel (%p534) target = $region32
        $region31: #{tpu_custom_call.1} parent=11 // pred_region
          %s538 = ssub.s32 256, 256
          %539 = vsyncadd [#allocation12], %s538
          %s540 = sshll.u32 [#allocation13], 4
          %s541 = int_to_ptr.vmem [resolvable:$true] %s540
          %546 = dma.hbm_to_vmem [thread:$0]  %s6, 256, %s541, [#allocation12], 64, 64, 4
        $region32: #{tpu_custom_call.1} parent=11 // pred_fallthru
          _
        // Predicated region
        $region33: #{tpu_custom_call.1} parent=11 // pred_check
          %p547 = pneg %p233
        $region34: #{tpu_custom_call.1} parent=11 // pred_check_branch
          %549 = sbr.rel (%p547) target = $region36
        $region35: #{tpu_custom_call.1} parent=11 // pred_region
          %s551 = ssub.s32 16, 16
          %552 = vsyncadd [#allocation15], %s551
          %s554 = sshll.u32 [#allocation14], 4
          %s555 = int_to_ptr.vmem [resolvable:$true] %s554
          %557 = dma.hbm_to_vmem [thread:$0]  %s7, 16, %s555, [#allocation15]
        $region36: #{tpu_custom_call.1} parent=11 // pred_fallthru
          _
        // Predicated region
        $region37: #{tpu_custom_call.1} parent=11 // pred_check
          %p558 = pneg %p254
        $region38: #{tpu_custom_call.1} parent=11 // pred_check_branch
          %560 = sbr.rel (%p558) target = $region40
        $region39: #{tpu_custom_call.1} parent=11 // pred_region
          %s562 = ssub.s32 256, 256
          %563 = vsyncadd [#allocation15], %s562
          %s564 = sshll.u32 [#allocation16], 4
          %s565 = int_to_ptr.vmem [resolvable:$true] %s564
          %570 = dma.hbm_to_vmem [thread:$0]  %s8, 256, %s565, [#allocation15], 64, 64, 4
        $region40: #{tpu_custom_call.1} parent=11 // pred_fallthru
          _
        // Predicated region
        $region41: #{tpu_custom_call.1} parent=11 // pred_check
          %p571 = pneg %p275
        $region42: #{tpu_custom_call.1} parent=11 // pred_check_branch
          %573 = sbr.rel (%p571) target = $region44
        $region43: #{tpu_custom_call.1} parent=11 // pred_region
          %s575 = ssub.s32 16, 16
          %576 = vsyncadd [#allocation18], %s575
          %s578 = sshll.u32 [#allocation17], 4
          %s579 = int_to_ptr.vmem [resolvable:$true] %s578
          %581 = dma.hbm_to_vmem [thread:$0]  %s9, 16, %s579, [#allocation18]
        $region44: #{tpu_custom_call.1} parent=11 // pred_fallthru
          _
        // Predicated region
        $region45: #{tpu_custom_call.1} parent=11 // pred_check
          %p582 = pneg %p296
        $region46: #{tpu_custom_call.1} parent=11 // pred_check_branch
          %584 = sbr.rel (%p582) target = $region48
        $region47: #{tpu_custom_call.1} parent=11 // pred_region
          %s586 = ssub.s32 16, 16
          %587 = vsyncadd [#allocation18], %s586
          %s589 = sshll.u32 [#allocation19], 4
          %s590 = int_to_ptr.vmem [resolvable:$true] %s589
          %592 = dma.hbm_to_vmem [thread:$0]  %s10, 16, %s590, [#allocation18]
        $region48: #{tpu_custom_call.1} parent=11 // pred_fallthru
          _
        // Predicated region
        $region49: #{tpu_custom_call.1} parent=11 // pred_check
          %p593 = pneg %p317
        $region50: #{tpu_custom_call.1} parent=11 // pred_check_branch
          %595 = sbr.rel (%p593) target = $region52
        $region51: #{tpu_custom_call.1} parent=11 // pred_region
          %s597 = ssub.s32 16, 16
          %598 = vsyncadd [#allocation21], %s597
          %s600 = sshll.u32 [#allocation20], 4
          %s601 = int_to_ptr.vmem [resolvable:$true] %s600
          %603 = dma.hbm_to_vmem [thread:$0]  %s11, 16, %s601, [#allocation21]
        $region52: #{tpu_custom_call.1} parent=11 // pred_fallthru
          _
        // Predicated region
        $region53: #{tpu_custom_call.1} parent=11 // pred_check
          %p604 = pneg %p338
        $region54: #{tpu_custom_call.1} parent=11 // pred_check_branch
          %606 = sbr.rel (%p604) target = $region56
        $region55: #{tpu_custom_call.1} parent=11 // pred_region
          %s608 = ssub.s32 256, 256
          %609 = vsyncadd [#allocation21], %s608
          %s610 = sshll.u32 [#allocation22], 4
          %s611 = int_to_ptr.vmem [resolvable:$true] %s610
          %616 = dma.hbm_to_vmem [thread:$0]  %s12, 256, %s611, [#allocation21], 64, 64, 4
        $region56: #{tpu_custom_call.1} parent=11 // pred_fallthru
          _
        // Predicated region
        $region57: #{tpu_custom_call.1} parent=11 // pred_check
          %p617 = pneg %p359
        $region58: #{tpu_custom_call.1} parent=11 // pred_check_branch
          %619 = sbr.rel (%p617) target = $region60
        $region59: #{tpu_custom_call.1} parent=11 // pred_region
          %s621 = ssub.s32 16, 16
          %622 = vsyncadd [#allocation24], %s621
          %s624 = sshll.u32 [#allocation23], 4
          %s625 = int_to_ptr.vmem [resolvable:$true] %s624
          %627 = dma.hbm_to_vmem [thread:$0]  %s13, 16, %s625, [#allocation24]
        $region60: #{tpu_custom_call.1} parent=11 // pred_fallthru
          _
        // Predicated region
        $region61: #{tpu_custom_call.1} parent=11 // pred_check
          %p628 = pneg %p380
        $region62: #{tpu_custom_call.1} parent=11 // pred_check_branch
          %630 = sbr.rel (%p628) target = $region64
        $region63: #{tpu_custom_call.1} parent=11 // pred_region
          %s632 = ssub.s32 1024, 1024
          %633 = vsyncadd [#allocation24], %s632
          %s634 = sshll.u32 [#allocation25], 4
          %s635 = int_to_ptr.vmem [resolvable:$true] %s634
          %640 = dma.hbm_to_vmem [thread:$0]  %s14, 1024, %s635, [#allocation24], 64, 64, 4
        $region64: #{tpu_custom_call.1} parent=11 // pred_fallthru
          _
        // Predicated region
        $region65: #{tpu_custom_call.1} parent=11 // pred_check
          %p641 = pneg %p401
        $region66: #{tpu_custom_call.1} parent=11 // pred_check_branch
          %643 = sbr.rel (%p641) target = $region68
        $region67: #{tpu_custom_call.1} parent=11 // pred_region
          %s645 = ssub.s32 16, 16
          %646 = vsyncadd [#allocation27], %s645
          %s648 = sshll.u32 [#allocation26], 4
          %s649 = int_to_ptr.vmem [resolvable:$true] %s648
          %651 = dma.hbm_to_vmem [thread:$0]  %s15, 16, %s649, [#allocation27]
        $region68: #{tpu_custom_call.1} parent=11 // pred_fallthru
          _
        // Predicated region
        $region69: #{tpu_custom_call.1} parent=11 // pred_check
          %p652 = pneg %p422
        $region70: #{tpu_custom_call.1} parent=11 // pred_check_branch
          %654 = sbr.rel (%p652) target = $region72
        $region71: #{tpu_custom_call.1} parent=11 // pred_region
          %s656 = ssub.s32 16, 16
          %657 = vsyncadd [#allocation27], %s656
          %s659 = sshll.u32 [#allocation28], 4
          %s660 = int_to_ptr.vmem [resolvable:$true] %s659
          %662 = dma.hbm_to_vmem [thread:$0]  %s16, 16, %s660, [#allocation27]
        $region72: #{tpu_custom_call.1} parent=11 // pred_fallthru
          _
        // Predicated region
        $region73: #{tpu_custom_call.1} parent=11 // pred_check
          %p663 = pneg %p443
        $region74: #{tpu_custom_call.1} parent=11 // pred_check_branch
          %665 = sbr.rel (%p663) target = $region76
        $region75: #{tpu_custom_call.1} parent=11 // pred_region
          %s667 = ssub.s32 16, 16
          %668 = vsyncadd [#allocation30], %s667
          %s670 = sshll.u32 [#allocation29], 4
          %s671 = int_to_ptr.vmem [resolvable:$true] %s670
          %673 = dma.hbm_to_vmem [thread:$0]  %s17, 16, %s671, [#allocation30]
        $region76: #{tpu_custom_call.1} parent=11 // pred_fallthru
          _
      $region12: #{tpu_custom_call.1} parent=5 // pred_fallthru
        _
      %p674 = scmp.lt.s32.totalorder %s41, 2
      // Predicated region
      $region77: #{tpu_custom_call.1} parent=5 // pred_check
        %p675 = pneg %p674
      $region78: #{tpu_custom_call.1} parent=5 // pred_check_branch
        %677 = sbr.rel (%p675) target = $region80
      $region79: #{tpu_custom_call.1} parent=5 // pred_region
        // Predicated region
        $region81: #{tpu_custom_call.1} parent=79 // pred_check
          %p678 = pneg %p75
        $region82: #{tpu_custom_call.1} parent=79 // pred_check_branch
          %680 = sbr.rel (%p678) target = $region84
        $region83: #{tpu_custom_call.1} parent=79 // pred_region
          %s681 = sand.u32 %s65, 1
          %s682 = scalar_lea.sflag [#allocation3], %s681
          %s683 = sand.u32 %s65, 1
          %s684 = smul.addr %s683, 8
          %s685 = scalar_lea.vmem [#allocation2], %s684
          %s687 = ssub.s32 128, 128
          %688 = vsyncadd %s682, %s687
          %s689 = sadd.s32 %s49, %s48
          %s690 = smul.addr %s689, 128
          %s691 = scalar_lea.hbm %s0, %s690
          %s693 = sshll.u32 %s685, 4
          %s694 = int_to_ptr.vmem [resolvable:$true] %s693
          %696 = dma.hbm_to_vmem [thread:$0]  %s691, 128, %s694, %s682
        $region84: #{tpu_custom_call.1} parent=79 // pred_fallthru
          _
        // Predicated region
        $region85: #{tpu_custom_call.1} parent=79 // pred_check
          %p697 = pneg %p101
        $region86: #{tpu_custom_call.1} parent=79 // pred_check_branch
          %699 = sbr.rel (%p697) target = $region88
        $region87: #{tpu_custom_call.1} parent=79 // pred_region
          %s700 = sand.u32 %s41, 1
          %s701 = scalar_lea.sflag [#allocation6], %s700
          %s702 = sand.u32 %s91, 1
          %s703 = smul.addr %s702, 8
          %s704 = scalar_lea.vmem [#allocation5], %s703
          %s706 = ssub.s32 128, 128
          %707 = vsyncadd %s701, %s706
          %s708 = smul.addr %s48, 128
          %s709 = scalar_lea.hbm %s1, %s708
          %s711 = sshll.u32 %s704, 4
          %s712 = int_to_ptr.vmem [resolvable:$true] %s711
          %714 = dma.hbm_to_vmem [thread:$0]  %s709, 128, %s712, %s701
        $region88: #{tpu_custom_call.1} parent=79 // pred_fallthru
          _
      $region80: #{tpu_custom_call.1} parent=5 // pred_fallthru
        _
      %p715 = scmp.le.s32.totalorder 1, %s41
      %p716 = scmp.lt.s32.totalorder %s41, 3
      %p717 = pnand %p715, %p716
      %p718 = pneg %p717
      // Predicated region
      $region89: #{tpu_custom_call.1} parent=5 // pred_check
        _
      $region90: #{tpu_custom_call.1} parent=5 // pred_check_branch
        %720 = sbr.rel (%p717) target = $region92
      $region91: #{tpu_custom_call.1} parent=5 // pred_region
        %s721 = ssub.s32 %s41, 1
        %s722 = sand.u32 %s68, 1
        %s723 = scalar_lea.sflag [#allocation3], %s722
        %s724 = sand.u32 %s68, 1
        %s725 = smul.addr %s724, 8
        %s726 = scalar_lea.vmem [#allocation2], %s725
        // Predicated region
        $region93: #{tpu_custom_call.1} parent=91 // pred_check
          %p727 = pneg %p81
        $region94: #{tpu_custom_call.1} parent=91 // pred_check_branch
          %729 = sbr.rel (%p727) target = $region96
        $region95: #{tpu_custom_call.1} parent=91 // pred_region
          %730 = dma.done %s723, 128
        $region96: #{tpu_custom_call.1} parent=91 // pred_fallthru
          _
        %s731 = sand.u32 %s46, 1
        %s732 = scalar_lea.sflag [#allocation6], %s731
        %s733 = sand.u32 %s94, 1
        %s734 = smul.addr %s733, 8
        %s735 = scalar_lea.vmem [#allocation5], %s734
        // Predicated region
        $region97: #{tpu_custom_call.1} parent=91 // pred_check
          %p736 = pneg %p107
        $region98: #{tpu_custom_call.1} parent=91 // pred_check_branch
          %738 = sbr.rel (%p736) target = $region100
        $region99: #{tpu_custom_call.1} parent=91 // pred_region
          %739 = dma.done %s732, 128
        $region100: #{tpu_custom_call.1} parent=91 // pred_fallthru
          _
        // Predicated region
        $region101: #{tpu_custom_call.1} parent=91 // pred_check
          %p740 = pneg %p128
        $region102: #{tpu_custom_call.1} parent=91 // pred_check_branch
          %742 = sbr.rel (%p740) target = $region104
        $region103: #{tpu_custom_call.1} parent=91 // pred_region
          %743 = dma.done [#allocation6], 256
        $region104: #{tpu_custom_call.1} parent=91 // pred_fallthru
          _
        // Predicated region
        $region105: #{tpu_custom_call.1} parent=91 // pred_check
          %p744 = pneg %p149
        $region106: #{tpu_custom_call.1} parent=91 // pred_check_branch
          %746 = sbr.rel (%p744) target = $region108
        $region107: #{tpu_custom_call.1} parent=91 // pred_region
          %747 = dma.done [#allocation9], 16
        $region108: #{tpu_custom_call.1} parent=91 // pred_fallthru
          _
        // Predicated region
        $region109: #{tpu_custom_call.1} parent=91 // pred_check
          %p748 = pneg %p170
        $region110: #{tpu_custom_call.1} parent=91 // pred_check_branch
          %750 = sbr.rel (%p748) target = $region112
        $region111: #{tpu_custom_call.1} parent=91 // pred_region
          %751 = dma.done [#allocation9], 256
        $region112: #{tpu_custom_call.1} parent=91 // pred_fallthru
          _
        // Predicated region
        $region113: #{tpu_custom_call.1} parent=91 // pred_check
          %p752 = pneg %p191
        $region114: #{tpu_custom_call.1} parent=91 // pred_check_branch
          %754 = sbr.rel (%p752) target = $region116
        $region115: #{tpu_custom_call.1} parent=91 // pred_region
          %755 = dma.done [#allocation12], 16
        $region116: #{tpu_custom_call.1} parent=91 // pred_fallthru
          _
        // Predicated region
        $region117: #{tpu_custom_call.1} parent=91 // pred_check
          %p756 = pneg %p212
        $region118: #{tpu_custom_call.1} parent=91 // pred_check_branch
          %758 = sbr.rel (%p756) target = $region120
        $region119: #{tpu_custom_call.1} parent=91 // pred_region
          %759 = dma.done [#allocation12], 256
        $region120: #{tpu_custom_call.1} parent=91 // pred_fallthru
          _
        // Predicated region
        $region121: #{tpu_custom_call.1} parent=91 // pred_check
          %p760 = pneg %p233
        $region122: #{tpu_custom_call.1} parent=91 // pred_check_branch
          %762 = sbr.rel (%p760) target = $region124
        $region123: #{tpu_custom_call.1} parent=91 // pred_region
          %763 = dma.done [#allocation15], 16
        $region124: #{tpu_custom_call.1} parent=91 // pred_fallthru
          _
        // Predicated region
        $region125: #{tpu_custom_call.1} parent=91 // pred_check
          %p764 = pneg %p254
        $region126: #{tpu_custom_call.1} parent=91 // pred_check_branch
          %766 = sbr.rel (%p764) target = $region128
        $region127: #{tpu_custom_call.1} parent=91 // pred_region
          %767 = dma.done [#allocation15], 256
        $region128: #{tpu_custom_call.1} parent=91 // pred_fallthru
          _
        // Predicated region
        $region129: #{tpu_custom_call.1} parent=91 // pred_check
          %p768 = pneg %p275
        $region130: #{tpu_custom_call.1} parent=91 // pred_check_branch
          %770 = sbr.rel (%p768) target = $region132
        $region131: #{tpu_custom_call.1} parent=91 // pred_region
          %771 = dma.done [#allocation18], 16
        $region132: #{tpu_custom_call.1} parent=91 // pred_fallthru
          _
        // Predicated region
        $region133: #{tpu_custom_call.1} parent=91 // pred_check
          %p772 = pneg %p296
        $region134: #{tpu_custom_call.1} parent=91 // pred_check_branch
          %774 = sbr.rel (%p772) target = $region136
        $region135: #{tpu_custom_call.1} parent=91 // pred_region
          %775 = dma.done [#allocation18], 16
        $region136: #{tpu_custom_call.1} parent=91 // pred_fallthru
          _
        // Predicated region
        $region137: #{tpu_custom_call.1} parent=91 // pred_check
          %p776 = pneg %p317
        $region138: #{tpu_custom_call.1} parent=91 // pred_check_branch
          %778 = sbr.rel (%p776) target = $region140
        $region139: #{tpu_custom_call.1} parent=91 // pred_region
          %779 = dma.done [#allocation21], 16
        $region140: #{tpu_custom_call.1} parent=91 // pred_fallthru
          _
        // Predicated region
        $region141: #{tpu_custom_call.1} parent=91 // pred_check
          %p780 = pneg %p338
        $region142: #{tpu_custom_call.1} parent=91 // pred_check_branch
          %782 = sbr.rel (%p780) target = $region144
        $region143: #{tpu_custom_call.1} parent=91 // pred_region
          %783 = dma.done [#allocation21], 256
        $region144: #{tpu_custom_call.1} parent=91 // pred_fallthru
          _
        // Predicated region
        $region145: #{tpu_custom_call.1} parent=91 // pred_check
          %p784 = pneg %p359
        $region146: #{tpu_custom_call.1} parent=91 // pred_check_branch
          %786 = sbr.rel (%p784) target = $region148
        $region147: #{tpu_custom_call.1} parent=91 // pred_region
          %787 = dma.done [#allocation24], 16
        $region148: #{tpu_custom_call.1} parent=91 // pred_fallthru
          _
        // Predicated region
        $region149: #{tpu_custom_call.1} parent=91 // pred_check
          %p788 = pneg %p380
        $region150: #{tpu_custom_call.1} parent=91 // pred_check_branch
          %790 = sbr.rel (%p788) target = $region152
        $region151: #{tpu_custom_call.1} parent=91 // pred_region
          %791 = dma.done [#allocation24], 1024
        $region152: #{tpu_custom_call.1} parent=91 // pred_fallthru
          _
        // Predicated region
        $region153: #{tpu_custom_call.1} parent=91 // pred_check
          %p792 = pneg %p401
        $region154: #{tpu_custom_call.1} parent=91 // pred_check_branch
          %794 = sbr.rel (%p792) target = $region156
        $region155: #{tpu_custom_call.1} parent=91 // pred_region
          %795 = dma.done [#allocation27], 16
        $region156: #{tpu_custom_call.1} parent=91 // pred_fallthru
          _
        // Predicated region
        $region157: #{tpu_custom_call.1} parent=91 // pred_check
          %p796 = pneg %p422
        $region158: #{tpu_custom_call.1} parent=91 // pred_check_branch
          %798 = sbr.rel (%p796) target = $region160
        $region159: #{tpu_custom_call.1} parent=91 // pred_region
          %799 = dma.done [#allocation27], 16
        $region160: #{tpu_custom_call.1} parent=91 // pred_fallthru
          _
        // Predicated region
        $region161: #{tpu_custom_call.1} parent=91 // pred_check
          %p800 = pneg %p443
        $region162: #{tpu_custom_call.1} parent=91 // pred_check_branch
          %802 = sbr.rel (%p800) target = $region164
        $region163: #{tpu_custom_call.1} parent=91 // pred_region
          %803 = dma.done [#allocation30], 16
        $region164: #{tpu_custom_call.1} parent=91 // pred_fallthru
          _
        %s804 = sand.u32 %s68, 1
        %s805 = scalar_lea.sflag [#allocation3], %s804
        %s806 = sand.u32 %s68, 1
        %s807 = smul.addr %s806, 8
        %s808 = scalar_lea.vmem [#allocation2], %s807
        %p809 = pneg %p81
        %p810 = pneg %p78
        %s811 = sand.u32 %s46, 1
        %s812 = scalar_lea.sflag [#allocation6], %s811
        %s813 = sand.u32 %s94, 1
        %s814 = smul.addr %s813, 8
        %s815 = scalar_lea.vmem [#allocation5], %s814
        %p816 = pneg %p107
        %p817 = pneg %p104
        %p818 = pneg %p128
        %p819 = pneg %p125
        %p820 = pneg %p149
        %p821 = pneg %p146
        %p822 = pneg %p170
        %p823 = pneg %p167
        %p824 = pneg %p191
        %p825 = pneg %p188
        %p826 = pneg %p212
        %p827 = pneg %p209
        %p828 = pneg %p233
        %p829 = pneg %p230
        %p830 = pneg %p254
        %p831 = pneg %p251
        %p832 = pneg %p275
        %p833 = pneg %p272
        %p834 = pneg %p296
        %p835 = pneg %p293
        %p836 = pneg %p317
        %p837 = pneg %p314
        %p838 = pneg %p338
        %p839 = pneg %p335
        %p840 = pneg %p359
        %p841 = pneg %p356
        %p842 = pneg %p380
        %p843 = pneg %p377
        %p844 = pneg %p401
        %p845 = pneg %p398
        %p846 = pneg %p422
        %p847 = pneg %p419
        %p848 = pneg %p443
        %p849 = pneg %p440
        %p850 = pneg %p471
        %p851 = pneg %p468
        %s852 = sand.u32 %s458, 1
        %s853 = scalar_lea.sflag [#allocation4], %s852
        %s854 = sand.u32 %s458, 1
        %s855 = smul.addr %s854, 8
        %s856 = scalar_lea.vmem [#allocation31], %s855
        %v858 = vld [vmem:[%s726] sm:$0xff]
        %v859 = vld [vmem:[%s735] sm:$0xff]
        %v860 = vld [vmem:[#allocation19] sm:$0x1]
        %v861 = vld [vmem:[#allocation20] sm:$0x1]
        %vm862 = vcmask 261120
        %v863 = vsel %vm862, %v858, 0.0
        %864 = vadd.xlane.f32.xlu0 %v863
        %v865 = vpop.xlane.xlu0 %864
        %v866 = vrcp.pop 32.0
        %v867 = vmul.f32 %v865, %v866
        %v868 = vsub.f32 %v858, %v867
        %v869 = vmul.f32 %v868, %v868
        %v870 = vsel %vm862, %v869, 0.0
        %871 = vadd.xlane.f32.xlu0 %v870
        %v872 = vpop.xlane.xlu0 %871
        %v873 = vmul.f32 %v872, 0.032258064
        %v874 = vrsqrt.pop %v873
        %v875 = vmul.f32 %v873, %v874
        %vm876 = vcmp.eq.f32.partialorder %v873, inf
        %v877 = vsel %vm876, %v873, %v875
        %vm878 = vcmp.eq.f32.partialorder %v873, 0.0
        %v879 = vand.u32 %v873, 2147483648
        %v880 = vsel %vm878, %v879, %v877
        %v881 = vadd.f32 %v880, 1e-06
        %v882 = vrcp.pop %v881
        %v884 = vlaneseq
        %v885 = vshrl.u32 %v884, 7
        %v886 = vsub.s32 0, %v885
        %v887 = vrot.slane %v860, %v886
        %v889 = vmul.f32 %v887, %v868
        %v890 = vmul.f32 %v889, %v882
        %v892 = vlaneseq
        %v893 = vshrl.u32 %v892, 7
        %v894 = vsub.s32 0, %v893
        %v895 = vrot.slane %v861, %v894
        %v897 = vadd.f32 %v890, %v895
        %v898 = vsel %vm862, %v859, 0.0
        %899 = vadd.xlane.f32.xlu0 %v898
        %v900 = vpop.xlane.xlu0 %899
        %v901 = vmul.f32 %v900, %v866
        %v902 = vsub.f32 %v859, %v901
        %v903 = vmul.f32 %v902, %v902
        %v904 = vsel %vm862, %v903, 0.0
        %905 = vadd.xlane.f32.xlu0 %v904
        %v906 = vpop.xlane.xlu0 %905
        %v907 = vmul.f32 %v906, 0.032258064
        %v908 = vrsqrt.pop %v907
        %v909 = vmul.f32 %v907, %v908
        %vm910 = vcmp.eq.f32.partialorder %v907, inf
        %v911 = vsel %vm910, %v907, %v909
        %vm912 = vcmp.eq.f32.partialorder %v907, 0.0
        %v913 = vand.u32 %v907, 2147483648
        %v914 = vsel %vm912, %v913, %v911
        %v915 = vadd.f32 %v914, 1e-06
        %v916 = vrcp.pop %v915
        %v917 = vmul.f32 %v887, %v902
        %v918 = vmul.f32 %v917, %v916
        %v919 = vadd.f32 %v918, %v895
        %v920 = vpack.c.bf16 %v897, %v897
        %v921 = vld [vmem:[#allocation7] sm:$0xf]
        %v922 = vld [vmem:[#allocation7 + $0x4] sm:$0xf]
        %v923 = vld [vmem:[#allocation7 + $0x8] sm:$0xf]
        %v924 = vld [vmem:[#allocation7 + $0xc] sm:$0xf]
        %v925 = vld [vmem:[#allocation8] sm:$0x1]
        %v927 = vlaneseq
        %v928 = vshrl.u32 %v927, 7
        %v929 = vsub.s32 0, %v928
        %v930 = vrot.slane %v925, %v929
        %v936 = vunpack.c.l.b16 %v921
        %v937 = vunpack.c.l.b16 %v922
        %v938 = vunpack.c.l.b16 %v923
        %v939 = vunpack.c.l.b16 %v924
        %v940 = vpack.c.b16 %v937, %v936
        %v941 = vpack.c.b16 %v939, %v938
        %v945 = vsel %vm862, %v920, 0
        %947 = vmatprep.subr.bf16.mxu0 0
        %948 = vmatpush1.bf16.msra.mxu0 %v940
        %949 = vmatprep.subr.bf16.mxu0 0
        %950 = vmatpush1.bf16.msra.mxu0 %v941
        %951 = vmatprep.subr.bf16.mxu0 0
        %952 = vmatpush1.bf16.msra.mxu0 0
        %953 = vmatprep.subr.bf16.mxu0 0
        %954 = vmatpush1.bf16.msra.mxu0 0
        %955 = vmatprep.subr.bf16.mxu0 0
        %956 = vmatpush1.bf16.msra.mxu0 0
        %957 = vmatprep.subr.bf16.mxu0 0
        %958 = vmatpush1.bf16.msra.mxu0 0
        %959 = vmatprep.subr.bf16.mxu0 0
        %960 = vmatpush1.bf16.msra.mxu0 0
        %961 = vmatprep.subr.bf16.mxu0 0
        %962 = vmatpush1.bf16.msra.mxu0 0
        %963 = vmatprep.subr.bf16.mxu0 0
        %964 = vmatpush1.bf16.msra.mxu0 0
        %965 = vmatprep.subr.bf16.mxu0 0
        %966 = vmatpush1.bf16.msra.mxu0 0
        %967 = vmatprep.subr.bf16.mxu0 0
        %968 = vmatpush1.bf16.msra.mxu0 0
        %969 = vmatprep.subr.bf16.mxu0 0
        %970 = vmatpush1.bf16.msra.mxu0 0
        %971 = vmatprep.subr.bf16.mxu0 0
        %972 = vmatpush1.bf16.msra.mxu0 0
        %973 = vmatprep.subr.bf16.mxu0 0
        %974 = vmatpush1.bf16.msra.mxu0 0
        %975 = vmatprep.subr.bf16.mxu0 0
        %976 = vmatpush1.bf16.msra.mxu0 0
        %977 = vmatprep.subr.bf16.mxu0 0
        %978 = vmatpush1.bf16.msra.mxu0 0
        %979 = vmatprep.mubr.bf16.mxu0 0
        %980 = vmatmul.mubr.bf16.gmra.mrb[0].mxu0 %v945
        %v981 = vpop.f32.mrb[0].mxu0
        %v982 = vadd.f32 %v930, %v981
        %v983 = vpop.f32.mrb[0].mxu0
        %v984 = vpop.f32.mrb[0].mxu0
        %v985 = vpop.f32.mrb[0].mxu0
        %986 = vdwg.mxu0
        %v987 = vpack.c.bf16 %v919, %v919
        %v988 = vld [vmem:[#allocation10] sm:$0xf]
        %v989 = vld [vmem:[#allocation10 + $0x4] sm:$0xf]
        %v990 = vld [vmem:[#allocation10 + $0x8] sm:$0xf]
        %v991 = vld [vmem:[#allocation10 + $0xc] sm:$0xf]
        %v992 = vld [vmem:[#allocation11] sm:$0x1]
        %v994 = vlaneseq
        %v995 = vshrl.u32 %v994, 7
        %v996 = vsub.s32 0, %v995
        %v997 = vrot.slane %v992, %v996
        %v1003 = vunpack.c.l.b16 %v988
        %v1004 = vunpack.c.l.b16 %v989
        %v1005 = vunpack.c.l.b16 %v990
        %v1006 = vunpack.c.l.b16 %v991
        %v1007 = vpack.c.b16 %v1004, %v1003
        %v1008 = vpack.c.b16 %v1006, %v1005
        %v1012 = vsel %vm862, %v987, 0
        %1014 = vmatprep.subr.bf16.mxu0 0
        %1015 = vmatpush1.bf16.msra.mxu0 %v1007
        %1016 = vmatprep.subr.bf16.mxu0 0
        %1017 = vmatpush1.bf16.msra.mxu0 %v1008
        %1018 = vmatprep.subr.bf16.mxu0 0
        %1019 = vmatpush1.bf16.msra.mxu0 0
        %1020 = vmatprep.subr.bf16.mxu0 0
        %1021 = vmatpush1.bf16.msra.mxu0 0
        %1022 = vmatprep.subr.bf16.mxu0 0
        %1023 = vmatpush1.bf16.msra.mxu0 0
        %1024 = vmatprep.subr.bf16.mxu0 0
        %1025 = vmatpush1.bf16.msra.mxu0 0
        %1026 = vmatprep.subr.bf16.mxu0 0
        %1027 = vmatpush1.bf16.msra.mxu0 0
        %1028 = vmatprep.subr.bf16.mxu0 0
        %1029 = vmatpush1.bf16.msra.mxu0 0
        %1030 = vmatprep.subr.bf16.mxu0 0
        %1031 = vmatpush1.bf16.msra.mxu0 0
        %1032 = vmatprep.subr.bf16.mxu0 0
        %1033 = vmatpush1.bf16.msra.mxu0 0
        %1034 = vmatprep.subr.bf16.mxu0 0
        %1035 = vmatpush1.bf16.msra.mxu0 0
        %1036 = vmatprep.subr.bf16.mxu0 0
        %1037 = vmatpush1.bf16.msra.mxu0 0
        %1038 = vmatprep.subr.bf16.mxu0 0
        %1039 = vmatpush1.bf16.msra.mxu0 0
        %1040 = vmatprep.subr.bf16.mxu0 0
        %1041 = vmatpush1.bf16.msra.mxu0 0
        %1042 = vmatprep.subr.bf16.mxu0 0
        %1043 = vmatpush1.bf16.msra.mxu0 0
        %1044 = vmatprep.subr.bf16.mxu0 0
        %1045 = vmatpush1.bf16.msra.mxu0 0
        %1046 = vmatprep.mubr.bf16.mxu0 0
        %1047 = vmatmul.mubr.bf16.gmra.mrb[0].mxu0 %v1012
        %v1048 = vpop.f32.mrb[0].mxu0
        %v1049 = vadd.f32 %v997, %v1048
        %v1050 = vpop.f32.mrb[0].mxu0
        %v1051 = vpop.f32.mrb[0].mxu0
        %v1052 = vpop.f32.mrb[0].mxu0
        %1053 = vdwg.mxu0
        %v1054 = vld [vmem:[#allocation13] sm:$0xf]
        %v1055 = vld [vmem:[#allocation13 + $0x4] sm:$0xf]
        %v1056 = vld [vmem:[#allocation13 + $0x8] sm:$0xf]
        %v1057 = vld [vmem:[#allocation13 + $0xc] sm:$0xf]
        %v1058 = vld [vmem:[#allocation14] sm:$0x1]
        %v1060 = vlaneseq
        %v1061 = vshrl.u32 %v1060, 7
        %v1062 = vsub.s32 0, %v1061
        %v1063 = vrot.slane %v1058, %v1062
        %v1069 = vunpack.c.l.b16 %v1054
        %v1070 = vunpack.c.l.b16 %v1055
        %v1071 = vunpack.c.l.b16 %v1056
        %v1072 = vunpack.c.l.b16 %v1057
        %v1073 = vpack.c.b16 %v1070, %v1069
        %v1074 = vpack.c.b16 %v1072, %v1071
        %1077 = vmatprep.subr.bf16.mxu0 0
        %1078 = vmatpush1.bf16.msra.mxu0 %v1073
        %1079 = vmatprep.subr.bf16.mxu0 0
        %1080 = vmatpush1.bf16.msra.mxu0 %v1074
        %1081 = vmatprep.subr.bf16.mxu0 0
        %1082 = vmatpush1.bf16.msra.mxu0 0
        %1083 = vmatprep.subr.bf16.mxu0 0
        %1084 = vmatpush1.bf16.msra.mxu0 0
        %1085 = vmatprep.subr.bf16.mxu0 0
        %1086 = vmatpush1.bf16.msra.mxu0 0
        %1087 = vmatprep.subr.bf16.mxu0 0
        %1088 = vmatpush1.bf16.msra.mxu0 0
        %1089 = vmatprep.subr.bf16.mxu0 0
        %1090 = vmatpush1.bf16.msra.mxu0 0
        %1091 = vmatprep.subr.bf16.mxu0 0
        %1092 = vmatpush1.bf16.msra.mxu0 0
        %1093 = vmatprep.subr.bf16.mxu0 0
        %1094 = vmatpush1.bf16.msra.mxu0 0
        %1095 = vmatprep.subr.bf16.mxu0 0
        %1096 = vmatpush1.bf16.msra.mxu0 0
        %1097 = vmatprep.subr.bf16.mxu0 0
        %1098 = vmatpush1.bf16.msra.mxu0 0
        %1099 = vmatprep.subr.bf16.mxu0 0
        %1100 = vmatpush1.bf16.msra.mxu0 0
        %1101 = vmatprep.subr.bf16.mxu0 0
        %1102 = vmatpush1.bf16.msra.mxu0 0
        %1103 = vmatprep.subr.bf16.mxu0 0
        %1104 = vmatpush1.bf16.msra.mxu0 0
        %1105 = vmatprep.subr.bf16.mxu0 0
        %1106 = vmatpush1.bf16.msra.mxu0 0
        %1107 = vmatprep.subr.bf16.mxu0 0
        %1108 = vmatpush1.bf16.msra.mxu0 0
        %1109 = vmatprep.mubr.bf16.mxu0 0
        %1110 = vmatmul.mubr.bf16.gmra.mrb[0].mxu0 %v1012
        %v1111 = vpop.f32.mrb[0].mxu0
        %v1112 = vadd.f32 %v1063, %v1111
        %v1113 = vpop.f32.mrb[0].mxu0
        %v1114 = vpop.f32.mrb[0].mxu0
        %v1115 = vpop.f32.mrb[0].mxu0
        %1116 = vdwg.mxu0
        %1118 = vrot.lane.b32.xlu0 %v982, 120
        %v1119 = vpop.permute.xlu0 %1118
        %1121 = vrot.lane.b32.xlu0 %v982, 112
        %v1122 = vpop.permute.xlu0 %1121
        %1124 = vrot.lane.b32.xlu0 %v982, 104
        %v1125 = vpop.permute.xlu0 %1124
        %v1127 = vpack.c.bf16 %v982, %v982
        %v1128 = vpack.c.bf16 %v1119, %v1119
        %v1129 = vpack.c.bf16 %v1122, %v1122
        %v1130 = vpack.c.bf16 %v1125, %v1125
        %1132 = vrot.lane.b32.xlu0 %v1049, 120
        %v1133 = vpop.permute.xlu0 %1132
        %1135 = vrot.lane.b32.xlu0 %v1049, 112
        %v1136 = vpop.permute.xlu0 %1135
        %1138 = vrot.lane.b32.xlu0 %v1049, 104
        %v1139 = vpop.permute.xlu0 %1138
        %v1141 = vpack.c.bf16 %v1049, %v1049
        %v1142 = vpack.c.bf16 %v1133, %v1133
        %v1143 = vpack.c.bf16 %v1136, %v1136
        %v1144 = vpack.c.bf16 %v1139, %v1139
        %1146 = vrot.lane.b32.xlu0 %v1112, 120
        %v1147 = vpop.permute.xlu0 %1146
        %1149 = vrot.lane.b32.xlu0 %v1112, 112
        %v1150 = vpop.permute.xlu0 %1149
        %1152 = vrot.lane.b32.xlu0 %v1112, 104
        %v1153 = vpop.permute.xlu0 %1152
        %v1155 = vpack.c.bf16 %v1112, %v1112
        %v1156 = vpack.c.bf16 %v1147, %v1147
        %v1157 = vpack.c.bf16 %v1150, %v1150
        %v1158 = vpack.c.bf16 %v1153, %v1153
        %vm1159 = vcmask 64512
        %v1161 = vsel %vm1159, %v1127, 0
        %v1164 = vsel %vm1159, %v1141, 0
        %1166 = vmatprep.subr.bf16.mxu0 0
        %1167 = vmatpush1.bf16.xpose.msra.mxu0 %v1164
        %1168 = vmatprep.subr.bf16.mxu0 0
        %1169 = vmatpush1.bf16.xpose.msra.mxu0 0
        %1170 = vmatprep.subr.bf16.mxu0 0
        %1171 = vmatpush1.bf16.xpose.msra.mxu0 0
        %1172 = vmatprep.subr.bf16.mxu0 0
        %1173 = vmatpush1.bf16.xpose.msra.mxu0 0
        %1174 = vmatprep.subr.bf16.mxu0 0
        %1175 = vmatpush1.bf16.xpose.msra.mxu0 0
        %1176 = vmatprep.subr.bf16.mxu0 0
        %1177 = vmatpush1.bf16.xpose.msra.mxu0 0
        %1178 = vmatprep.subr.bf16.mxu0 0
        %1179 = vmatpush1.bf16.xpose.msra.mxu0 0
        %1180 = vmatprep.subr.bf16.mxu0 0
        %1181 = vmatpush1.bf16.xpose.msra.mxu0 0
        %1182 = vmatprep.subr.bf16.mxu0 0
        %1183 = vmatpush1.bf16.xpose.msra.mxu0 0
        %1184 = vmatprep.subr.bf16.mxu0 0
        %1185 = vmatpush1.bf16.xpose.msra.mxu0 0
        %1186 = vmatprep.subr.bf16.mxu0 0
        %1187 = vmatpush1.bf16.xpose.msra.mxu0 0
        %1188 = vmatprep.subr.bf16.mxu0 0
        %1189 = vmatpush1.bf16.xpose.msra.mxu0 0
        %1190 = vmatprep.subr.bf16.mxu0 0
        %1191 = vmatpush1.bf16.xpose.msra.mxu0 0
        %1192 = vmatprep.subr.bf16.mxu0 0
        %1193 = vmatpush1.bf16.xpose.msra.mxu0 0
        %1194 = vmatprep.subr.bf16.mxu0 0
        %1195 = vmatpush1.bf16.xpose.msra.mxu0 0
        %1196 = vmatprep.subr.bf16.mxu0 0
        %1197 = vmatpush1.bf16.xpose.msra.mxu0 0
        %1198 = vmatprep.mubr.bf16.mxu0 0
        %1199 = vmatmul.mubr.bf16.gmra.mrb[0].mxu0 %v1161
        %v1200 = vpop.f32.mrb[0].mxu0
        %v1201 = vadd.f32 0.0, %v1200
        %v1202 = vpop.f32.mrb[0].mxu0
        %v1203 = vpop.f32.mrb[0].mxu0
        %v1204 = vpop.f32.mrb[0].mxu0
        %1205 = vdwg.mxu0
        %v1207 = vsel %vm1159, %v1128, 0
        %v1210 = vsel %vm1159, %v1142, 0
        %1212 = vmatprep.subr.bf16.mxu0 0
        %1213 = vmatpush1.bf16.xpose.msra.mxu0 %v1210
        %1214 = vmatprep.subr.bf16.mxu0 0
        %1215 = vmatpush1.bf16.xpose.msra.mxu0 0
        %1216 = vmatprep.subr.bf16.mxu0 0
        %1217 = vmatpush1.bf16.xpose.msra.mxu0 0
        %1218 = vmatprep.subr.bf16.mxu0 0
        %1219 = vmatpush1.bf16.xpose.msra.mxu0 0
        %1220 = vmatprep.subr.bf16.mxu0 0
        %1221 = vmatpush1.bf16.xpose.msra.mxu0 0
        %1222 = vmatprep.subr.bf16.mxu0 0
        %1223 = vmatpush1.bf16.xpose.msra.mxu0 0
        %1224 = vmatprep.subr.bf16.mxu0 0
        %1225 = vmatpush1.bf16.xpose.msra.mxu0 0
        %1226 = vmatprep.subr.bf16.mxu0 0
        %1227 = vmatpush1.bf16.xpose.msra.mxu0 0
        %1228 = vmatprep.subr.bf16.mxu0 0
        %1229 = vmatpush1.bf16.xpose.msra.mxu0 0
        %1230 = vmatprep.subr.bf16.mxu0 0
        %1231 = vmatpush1.bf16.xpose.msra.mxu0 0
        %1232 = vmatprep.subr.bf16.mxu0 0
        %1233 = vmatpush1.bf16.xpose.msra.mxu0 0
        %1234 = vmatprep.subr.bf16.mxu0 0
        %1235 = vmatpush1.bf16.xpose.msra.mxu0 0
        %1236 = vmatprep.subr.bf16.mxu0 0
        %1237 = vmatpush1.bf16.xpose.msra.mxu0 0
        %1238 = vmatprep.subr.bf16.mxu0 0
        %1239 = vmatpush1.bf16.xpose.msra.mxu0 0
        %1240 = vmatprep.subr.bf16.mxu0 0
        %1241 = vmatpush1.bf16.xpose.msra.mxu0 0
        %1242 = vmatprep.subr.bf16.mxu0 0
        %1243 = vmatpush1.bf16.xpose.msra.mxu0 0
        %1244 = vmatprep.mubr.bf16.mxu0 0
        %1245 = vmatmul.mubr.bf16.gmra.mrb[0].mxu0 %v1207
        %v1246 = vpop.f32.mrb[0].mxu0
        %v1247 = vadd.f32 0.0, %v1246
        %v1248 = vpop.f32.mrb[0].mxu0
        %v1249 = vpop.f32.mrb[0].mxu0
        %v1250 = vpop.f32.mrb[0].mxu0
        %1251 = vdwg.mxu0
        %v1253 = vsel %vm1159, %v1129, 0
        %v1256 = vsel %vm1159, %v1143, 0
        %1258 = vmatprep.subr.bf16.mxu0 0
        %1259 = vmatpush1.bf16.xpose.msra.mxu0 %v1256
        %1260 = vmatprep.subr.bf16.mxu0 0
        %1261 = vmatpush1.bf16.xpose.msra.mxu0 0
        %1262 = vmatprep.subr.bf16.mxu0 0
        %1263 = vmatpush1.bf16.xpose.msra.mxu0 0
        %1264 = vmatprep.subr.bf16.mxu0 0
        %1265 = vmatpush1.bf16.xpose.msra.mxu0 0
        %1266 = vmatprep.subr.bf16.mxu0 0
        %1267 = vmatpush1.bf16.xpose.msra.mxu0 0
        %1268 = vmatprep.subr.bf16.mxu0 0
        %1269 = vmatpush1.bf16.xpose.msra.mxu0 0
        %1270 = vmatprep.subr.bf16.mxu0 0
        %1271 = vmatpush1.bf16.xpose.msra.mxu0 0
        %1272 = vmatprep.subr.bf16.mxu0 0
        %1273 = vmatpush1.bf16.xpose.msra.mxu0 0
        %1274 = vmatprep.subr.bf16.mxu0 0
        %1275 = vmatpush1.bf16.xpose.msra.mxu0 0
        %1276 = vmatprep.subr.bf16.mxu0 0
        %1277 = vmatpush1.bf16.xpose.msra.mxu0 0
        %1278 = vmatprep.subr.bf16.mxu0 0
        %1279 = vmatpush1.bf16.xpose.msra.mxu0 0
        %1280 = vmatprep.subr.bf16.mxu0 0
        %1281 = vmatpush1.bf16.xpose.msra.mxu0 0
        %1282 = vmatprep.subr.bf16.mxu0 0
        %1283 = vmatpush1.bf16.xpose.msra.mxu0 0
        %1284 = vmatprep.subr.bf16.mxu0 0
        %1285 = vmatpush1.bf16.xpose.msra.mxu0 0
        %1286 = vmatprep.subr.bf16.mxu0 0
        %1287 = vmatpush1.bf16.xpose.msra.mxu0 0
        %1288 = vmatprep.subr.bf16.mxu0 0
        %1289 = vmatpush1.bf16.xpose.msra.mxu0 0
        %1290 = vmatprep.mubr.bf16.mxu0 0
        %1291 = vmatmul.mubr.bf16.gmra.mrb[0].mxu0 %v1253
        %v1292 = vpop.f32.mrb[0].mxu0
        %v1293 = vadd.f32 0.0, %v1292
        %v1294 = vpop.f32.mrb[0].mxu0
        %v1295 = vpop.f32.mrb[0].mxu0
        %v1296 = vpop.f32.mrb[0].mxu0
        %1297 = vdwg.mxu0
        %v1299 = vsel %vm1159, %v1130, 0
        %v1302 = vsel %vm1159, %v1144, 0
        %1304 = vmatprep.subr.bf16.mxu0 0
        %1305 = vmatpush1.bf16.xpose.msra.mxu0 %v1302
        %1306 = vmatprep.subr.bf16.mxu0 0
        %1307 = vmatpush1.bf16.xpose.msra.mxu0 0
        %1308 = vmatprep.subr.bf16.mxu0 0
        %1309 = vmatpush1.bf16.xpose.msra.mxu0 0
        %1310 = vmatprep.subr.bf16.mxu0 0
        %1311 = vmatpush1.bf16.xpose.msra.mxu0 0
        %1312 = vmatprep.subr.bf16.mxu0 0
        %1313 = vmatpush1.bf16.xpose.msra.mxu0 0
        %1314 = vmatprep.subr.bf16.mxu0 0
        %1315 = vmatpush1.bf16.xpose.msra.mxu0 0
        %1316 = vmatprep.subr.bf16.mxu0 0
        %1317 = vmatpush1.bf16.xpose.msra.mxu0 0
        %1318 = vmatprep.subr.bf16.mxu0 0
        %1319 = vmatpush1.bf16.xpose.msra.mxu0 0
        %1320 = vmatprep.subr.bf16.mxu0 0
        %1321 = vmatpush1.bf16.xpose.msra.mxu0 0
        %1322 = vmatprep.subr.bf16.mxu0 0
        %1323 = vmatpush1.bf16.xpose.msra.mxu0 0
        %1324 = vmatprep.subr.bf16.mxu0 0
        %1325 = vmatpush1.bf16.xpose.msra.mxu0 0
        %1326 = vmatprep.subr.bf16.mxu0 0
        %1327 = vmatpush1.bf16.xpose.msra.mxu0 0
        %1328 = vmatprep.subr.bf16.mxu0 0
        %1329 = vmatpush1.bf16.xpose.msra.mxu0 0
        %1330 = vmatprep.subr.bf16.mxu0 0
        %1331 = vmatpush1.bf16.xpose.msra.mxu0 0
        %1332 = vmatprep.subr.bf16.mxu0 0
        %1333 = vmatpush1.bf16.xpose.msra.mxu0 0
        %1334 = vmatprep.subr.bf16.mxu0 0
        %1335 = vmatpush1.bf16.xpose.msra.mxu0 0
        %1336 = vmatprep.mubr.bf16.mxu0 0
        %1337 = vmatmul.mubr.bf16.gmra.mrb[0].mxu0 %v1299
        %v1338 = vpop.f32.mrb[0].mxu0
        %v1339 = vadd.f32 0.0, %v1338
        %v1340 = vpop.f32.mrb[0].mxu0
        %v1341 = vpop.f32.mrb[0].mxu0
        %v1342 = vpop.f32.mrb[0].mxu0
        %1343 = vdwg.mxu0
        %v1344 = vmul.f32 %v1201, 0.35355338
        %v1345 = vmul.f32 %v1247, 0.35355338
        %v1346 = vmul.f32 %v1293, 0.35355338
        %v1347 = vmul.f32 %v1339, 0.35355338
        %v1348 = vsel %vm1159, %v1344, -inf
        %1349 = vmax.xlane.f32.xlu0 %v1348
        %v1350 = vpop.xlane.xlu0 %1349
        %v1351 = vsel %vm1159, %v1345, -inf
        %1352 = vmax.xlane.f32.xlu0 %v1351
        %v1353 = vpop.xlane.xlu0 %1352
        %v1354 = vsel %vm1159, %v1346, -inf
        %1355 = vmax.xlane.f32.xlu0 %v1354
        %v1356 = vpop.xlane.xlu0 %1355
        %v1357 = vsel %vm1159, %v1347, -inf
        %1358 = vmax.xlane.f32.xlu0 %v1357
        %v1359 = vpop.xlane.xlu0 %1358
        %v1360 = vsub.f32 %v1344, %v1350
        %v1361 = vsub.f32 %v1345, %v1353
        %v1362 = vsub.f32 %v1346, %v1356
        %v1363 = vsub.f32 %v1347, %v1359
        %v1364 = vmul.f32 %v1360, 1.442695
        %v1365 = vpow.pop %v1364
        %v1366 = vmul.f32 %v1361, 1.442695
        %v1367 = vpow.pop %v1366
        %v1368 = vmul.f32 %v1362, 1.442695
        %v1369 = vpow.pop %v1368
        %v1370 = vmul.f32 %v1363, 1.442695
        %v1371 = vpow.pop %v1370
        %v1372 = vsel %vm1159, %v1365, 0.0
        %1373 = vadd.xlane.f32.xlu0 %v1372
        %v1374 = vpop.xlane.xlu0 %1373
        %v1375 = vsel %vm1159, %v1367, 0.0
        %1376 = vadd.xlane.f32.xlu0 %v1375
        %v1377 = vpop.xlane.xlu0 %1376
        %v1378 = vsel %vm1159, %v1369, 0.0
        %1379 = vadd.xlane.f32.xlu0 %v1378
        %v1380 = vpop.xlane.xlu0 %1379
        %v1381 = vsel %vm1159, %v1371, 0.0
        %1382 = vadd.xlane.f32.xlu0 %v1381
        %v1383 = vpop.xlane.xlu0 %1382
        %v1384 = vrcp.pop %v1374
        %v1385 = vrcp.pop %v1377
        %v1386 = vrcp.pop %v1380
        %v1387 = vrcp.pop %v1383
        %v1388 = vmul.f32 %v1365, %v1384
        %v1389 = vmul.f32 %v1367, %v1385
        %v1390 = vmul.f32 %v1369, %v1386
        %v1391 = vmul.f32 %v1371, %v1387
        %v1392 = vpack.c.bf16 %v1388, %v1388
        %v1393 = vpack.c.bf16 %v1389, %v1389
        %v1394 = vpack.c.bf16 %v1390, %v1390
        %v1395 = vpack.c.bf16 %v1391, %v1391
        %v1397 = vsel %vm1159, %v1392, 0
        %vm1399 = vcmask 1043456
        %v1401 = vsel %vm1399, %v1155, 0
        %1403 = vmatprep.subr.bf16.mxu0 0
        %1404 = vmatpush1.bf16.msra.mxu0 %v1401
        %1405 = vmatprep.subr.bf16.mxu0 0
        %1406 = vmatpush1.bf16.msra.mxu0 0
        %1407 = vmatprep.subr.bf16.mxu0 0
        %1408 = vmatpush1.bf16.msra.mxu0 0
        %1409 = vmatprep.subr.bf16.mxu0 0
        %1410 = vmatpush1.bf16.msra.mxu0 0
        %1411 = vmatprep.subr.bf16.mxu0 0
        %1412 = vmatpush1.bf16.msra.mxu0 0
        %1413 = vmatprep.subr.bf16.mxu0 0
        %1414 = vmatpush1.bf16.msra.mxu0 0
        %1415 = vmatprep.subr.bf16.mxu0 0
        %1416 = vmatpush1.bf16.msra.mxu0 0
        %1417 = vmatprep.subr.bf16.mxu0 0
        %1418 = vmatpush1.bf16.msra.mxu0 0
        %1419 = vmatprep.subr.bf16.mxu0 0
        %1420 = vmatpush1.bf16.msra.mxu0 0
        %1421 = vmatprep.subr.bf16.mxu0 0
        %1422 = vmatpush1.bf16.msra.mxu0 0
        %1423 = vmatprep.subr.bf16.mxu0 0
        %1424 = vmatpush1.bf16.msra.mxu0 0
        %1425 = vmatprep.subr.bf16.mxu0 0
        %1426 = vmatpush1.bf16.msra.mxu0 0
        %1427 = vmatprep.subr.bf16.mxu0 0
        %1428 = vmatpush1.bf16.msra.mxu0 0
        %1429 = vmatprep.subr.bf16.mxu0 0
        %1430 = vmatpush1.bf16.msra.mxu0 0
        %1431 = vmatprep.subr.bf16.mxu0 0
        %1432 = vmatpush1.bf16.msra.mxu0 0
        %1433 = vmatprep.subr.bf16.mxu0 0
        %1434 = vmatpush1.bf16.msra.mxu0 0
        %1435 = vmatprep.mubr.bf16.mxu0 0
        %1436 = vmatmul.mubr.bf16.gmra.mrb[0].mxu0 %v1397
        %v1437 = vpop.f32.mrb[0].mxu0
        %v1438 = vadd.f32 0.0, %v1437
        %v1439 = vpop.f32.mrb[0].mxu0
        %v1440 = vpop.f32.mrb[0].mxu0
        %v1441 = vpop.f32.mrb[0].mxu0
        %1442 = vdwg.mxu0
        %v1444 = vsel %vm1159, %v1393, 0
        %v1447 = vsel %vm1399, %v1156, 0
        %1449 = vmatprep.subr.bf16.mxu0 0
        %1450 = vmatpush1.bf16.msra.mxu0 %v1447
        %1451 = vmatprep.subr.bf16.mxu0 0
        %1452 = vmatpush1.bf16.msra.mxu0 0
        %1453 = vmatprep.subr.bf16.mxu0 0
        %1454 = vmatpush1.bf16.msra.mxu0 0
        %1455 = vmatprep.subr.bf16.mxu0 0
        %1456 = vmatpush1.bf16.msra.mxu0 0
        %1457 = vmatprep.subr.bf16.mxu0 0
        %1458 = vmatpush1.bf16.msra.mxu0 0
        %1459 = vmatprep.subr.bf16.mxu0 0
        %1460 = vmatpush1.bf16.msra.mxu0 0
        %1461 = vmatprep.subr.bf16.mxu0 0
        %1462 = vmatpush1.bf16.msra.mxu0 0
        %1463 = vmatprep.subr.bf16.mxu0 0
        %1464 = vmatpush1.bf16.msra.mxu0 0
        %1465 = vmatprep.subr.bf16.mxu0 0
        %1466 = vmatpush1.bf16.msra.mxu0 0
        %1467 = vmatprep.subr.bf16.mxu0 0
        %1468 = vmatpush1.bf16.msra.mxu0 0
        %1469 = vmatprep.subr.bf16.mxu0 0
        %1470 = vmatpush1.bf16.msra.mxu0 0
        %1471 = vmatprep.subr.bf16.mxu0 0
        %1472 = vmatpush1.bf16.msra.mxu0 0
        %1473 = vmatprep.subr.bf16.mxu0 0
        %1474 = vmatpush1.bf16.msra.mxu0 0
        %1475 = vmatprep.subr.bf16.mxu0 0
        %1476 = vmatpush1.bf16.msra.mxu0 0
        %1477 = vmatprep.subr.bf16.mxu0 0
        %1478 = vmatpush1.bf16.msra.mxu0 0
        %1479 = vmatprep.subr.bf16.mxu0 0
        %1480 = vmatpush1.bf16.msra.mxu0 0
        %1481 = vmatprep.mubr.bf16.mxu0 0
        %1482 = vmatmul.mubr.bf16.gmra.mrb[0].mxu0 %v1444
        %v1483 = vpop.f32.mrb[0].mxu0
        %v1484 = vadd.f32 0.0, %v1483
        %v1485 = vpop.f32.mrb[0].mxu0
        %v1486 = vpop.f32.mrb[0].mxu0
        %v1487 = vpop.f32.mrb[0].mxu0
        %1488 = vdwg.mxu0
        %v1490 = vsel %vm1159, %v1394, 0
        %v1493 = vsel %vm1399, %v1157, 0
        %1495 = vmatprep.subr.bf16.mxu0 0
        %1496 = vmatpush1.bf16.msra.mxu0 %v1493
        %1497 = vmatprep.subr.bf16.mxu0 0
        %1498 = vmatpush1.bf16.msra.mxu0 0
        %1499 = vmatprep.subr.bf16.mxu0 0
        %1500 = vmatpush1.bf16.msra.mxu0 0
        %1501 = vmatprep.subr.bf16.mxu0 0
        %1502 = vmatpush1.bf16.msra.mxu0 0
        %1503 = vmatprep.subr.bf16.mxu0 0
        %1504 = vmatpush1.bf16.msra.mxu0 0
        %1505 = vmatprep.subr.bf16.mxu0 0
        %1506 = vmatpush1.bf16.msra.mxu0 0
        %1507 = vmatprep.subr.bf16.mxu0 0
        %1508 = vmatpush1.bf16.msra.mxu0 0
        %1509 = vmatprep.subr.bf16.mxu0 0
        %1510 = vmatpush1.bf16.msra.mxu0 0
        %1511 = vmatprep.subr.bf16.mxu0 0
        %1512 = vmatpush1.bf16.msra.mxu0 0
        %1513 = vmatprep.subr.bf16.mxu0 0
        %1514 = vmatpush1.bf16.msra.mxu0 0
        %1515 = vmatprep.subr.bf16.mxu0 0
        %1516 = vmatpush1.bf16.msra.mxu0 0
        %1517 = vmatprep.subr.bf16.mxu0 0
        %1518 = vmatpush1.bf16.msra.mxu0 0
        %1519 = vmatprep.subr.bf16.mxu0 0
        %1520 = vmatpush1.bf16.msra.mxu0 0
        %1521 = vmatprep.subr.bf16.mxu0 0
        %1522 = vmatpush1.bf16.msra.mxu0 0
        %1523 = vmatprep.subr.bf16.mxu0 0
        %1524 = vmatpush1.bf16.msra.mxu0 0
        %1525 = vmatprep.subr.bf16.mxu0 0
        %1526 = vmatpush1.bf16.msra.mxu0 0
        %1527 = vmatprep.mubr.bf16.mxu0 0
        %1528 = vmatmul.mubr.bf16.gmra.mrb[0].mxu0 %v1490
        %v1529 = vpop.f32.mrb[0].mxu0
        %v1530 = vadd.f32 0.0, %v1529
        %v1531 = vpop.f32.mrb[0].mxu0
        %v1532 = vpop.f32.mrb[0].mxu0
        %v1533 = vpop.f32.mrb[0].mxu0
        %1534 = vdwg.mxu0
        %v1536 = vsel %vm1159, %v1395, 0
        %v1539 = vsel %vm1399, %v1158, 0
        %1541 = vmatprep.subr.bf16.mxu0 0
        %1542 = vmatpush1.bf16.msra.mxu0 %v1539
        %1543 = vmatprep.subr.bf16.mxu0 0
        %1544 = vmatpush1.bf16.msra.mxu0 0
        %1545 = vmatprep.subr.bf16.mxu0 0
        %1546 = vmatpush1.bf16.msra.mxu0 0
        %1547 = vmatprep.subr.bf16.mxu0 0
        %1548 = vmatpush1.bf16.msra.mxu0 0
        %1549 = vmatprep.subr.bf16.mxu0 0
        %1550 = vmatpush1.bf16.msra.mxu0 0
        %1551 = vmatprep.subr.bf16.mxu0 0
        %1552 = vmatpush1.bf16.msra.mxu0 0
        %1553 = vmatprep.subr.bf16.mxu0 0
        %1554 = vmatpush1.bf16.msra.mxu0 0
        %1555 = vmatprep.subr.bf16.mxu0 0
        %1556 = vmatpush1.bf16.msra.mxu0 0
        %1557 = vmatprep.subr.bf16.mxu0 0
        %1558 = vmatpush1.bf16.msra.mxu0 0
        %1559 = vmatprep.subr.bf16.mxu0 0
        %1560 = vmatpush1.bf16.msra.mxu0 0
        %1561 = vmatprep.subr.bf16.mxu0 0
        %1562 = vmatpush1.bf16.msra.mxu0 0
        %1563 = vmatprep.subr.bf16.mxu0 0
        %1564 = vmatpush1.bf16.msra.mxu0 0
        %1565 = vmatprep.subr.bf16.mxu0 0
        %1566 = vmatpush1.bf16.msra.mxu0 0
        %1567 = vmatprep.subr.bf16.mxu0 0
        %1568 = vmatpush1.bf16.msra.mxu0 0
        %1569 = vmatprep.subr.bf16.mxu0 0
        %1570 = vmatpush1.bf16.msra.mxu0 0
        %1571 = vmatprep.subr.bf16.mxu0 0
        %1572 = vmatpush1.bf16.msra.mxu0 0
        %1573 = vmatprep.mubr.bf16.mxu0 0
        %1574 = vmatmul.mubr.bf16.gmra.mrb[0].mxu0 %v1536
        %v1575 = vpop.f32.mrb[0].mxu0
        %v1576 = vadd.f32 0.0, %v1575
        %v1577 = vpop.f32.mrb[0].mxu0
        %v1578 = vpop.f32.mrb[0].mxu0
        %v1579 = vpop.f32.mrb[0].mxu0
        %1580 = vdwg.mxu0
        %1582 = vrot.lane.b32.xlu0 %v1484, 8
        %v1583 = vpop.permute.xlu0 %1582
        %1586 = vrot.lane.b32.xlu0 %v1530, 16
        %v1587 = vpop.permute.xlu0 %1586
        %1590 = vrot.lane.b32.xlu0 %v1576, 24
        %v1591 = vpop.permute.xlu0 %1590
        %v1593 = vsel %vm1159, %v1438, %v1583
        %vm1594 = vcmask 130048
        %v1595 = vsel %vm1594, %v1593, %v1587
        %vm1596 = vcmask 195584
        %v1597 = vsel %vm1596, %v1595, %v1591
        %v1598 = vpack.c.bf16 %v1597, %v1597
        %v1599 = vld [vmem:[#allocation16] sm:$0xf]
        %v1600 = vld [vmem:[#allocation16 + $0x4] sm:$0xf]
        %v1601 = vld [vmem:[#allocation16 + $0x8] sm:$0xf]
        %v1602 = vld [vmem:[#allocation16 + $0xc] sm:$0xf]
        %v1603 = vld [vmem:[#allocation17] sm:$0x1]
        %v1605 = vlaneseq
        %v1606 = vshrl.u32 %v1605, 7
        %v1607 = vsub.s32 0, %v1606
        %v1608 = vrot.slane %v1603, %v1607
        %v1614 = vunpack.c.l.b16 %v1599
        %v1615 = vunpack.c.l.b16 %v1600
        %v1616 = vunpack.c.l.b16 %v1601
        %v1617 = vunpack.c.l.b16 %v1602
        %v1618 = vpack.c.b16 %v1615, %v1614
        %v1619 = vpack.c.b16 %v1617, %v1616
        %v1623 = vsel %vm862, %v1598, 0
        %1625 = vmatprep.subr.bf16.mxu0 0
        %1626 = vmatpush1.bf16.msra.mxu0 %v1618
        %1627 = vmatprep.subr.bf16.mxu0 0
        %1628 = vmatpush1.bf16.msra.mxu0 %v1619
        %1629 = vmatprep.subr.bf16.mxu0 0
        %1630 = vmatpush1.bf16.msra.mxu0 0
        %1631 = vmatprep.subr.bf16.mxu0 0
        %1632 = vmatpush1.bf16.msra.mxu0 0
        %1633 = vmatprep.subr.bf16.mxu0 0
        %1634 = vmatpush1.bf16.msra.mxu0 0
        %1635 = vmatprep.subr.bf16.mxu0 0
        %1636 = vmatpush1.bf16.msra.mxu0 0
        %1637 = vmatprep.subr.bf16.mxu0 0
        %1638 = vmatpush1.bf16.msra.mxu0 0
        %1639 = vmatprep.subr.bf16.mxu0 0
        %1640 = vmatpush1.bf16.msra.mxu0 0
        %1641 = vmatprep.subr.bf16.mxu0 0
        %1642 = vmatpush1.bf16.msra.mxu0 0
        %1643 = vmatprep.subr.bf16.mxu0 0
        %1644 = vmatpush1.bf16.msra.mxu0 0
        %1645 = vmatprep.subr.bf16.mxu0 0
        %1646 = vmatpush1.bf16.msra.mxu0 0
        %1647 = vmatprep.subr.bf16.mxu0 0
        %1648 = vmatpush1.bf16.msra.mxu0 0
        %1649 = vmatprep.subr.bf16.mxu0 0
        %1650 = vmatpush1.bf16.msra.mxu0 0
        %1651 = vmatprep.subr.bf16.mxu0 0
        %1652 = vmatpush1.bf16.msra.mxu0 0
        %1653 = vmatprep.subr.bf16.mxu0 0
        %1654 = vmatpush1.bf16.msra.mxu0 0
        %1655 = vmatprep.subr.bf16.mxu0 0
        %1656 = vmatpush1.bf16.msra.mxu0 0
        %1657 = vmatprep.mubr.bf16.mxu0 0
        %1658 = vmatmul.mubr.bf16.gmra.mrb[0].mxu0 %v1623
        %v1659 = vpop.f32.mrb[0].mxu0
        %v1660 = vadd.f32 %v1608, %v1659
        %v1661 = vpop.f32.mrb[0].mxu0
        %v1662 = vpop.f32.mrb[0].mxu0
        %v1663 = vpop.f32.mrb[0].mxu0
        %1664 = vdwg.mxu0
        %v1665 = vadd.f32 %v858, %v1660
        %v1666 = vld [vmem:[#allocation28] sm:$0x1]
        %v1667 = vld [vmem:[#allocation29] sm:$0x1]
        %v1668 = vsel %vm862, %v1665, 0.0
        %1669 = vadd.xlane.f32.xlu0 %v1668
        %v1670 = vpop.xlane.xlu0 %1669
        %v1671 = vmul.f32 %v1670, %v866
        %v1672 = vsub.f32 %v1665, %v1671
        %v1673 = vmul.f32 %v1672, %v1672
        %v1674 = vsel %vm862, %v1673, 0.0
        %1675 = vadd.xlane.f32.xlu0 %v1674
        %v1676 = vpop.xlane.xlu0 %1675
        %v1677 = vmul.f32 %v1676, 0.032258064
        %v1678 = vrsqrt.pop %v1677
        %v1679 = vmul.f32 %v1677, %v1678
        %vm1680 = vcmp.eq.f32.partialorder %v1677, inf
        %v1681 = vsel %vm1680, %v1677, %v1679
        %vm1682 = vcmp.eq.f32.partialorder %v1677, 0.0
        %v1683 = vand.u32 %v1677, 2147483648
        %v1684 = vsel %vm1682, %v1683, %v1681
        %v1685 = vadd.f32 %v1684, 1e-06
        %v1686 = vrcp.pop %v1685
        %v1688 = vlaneseq
        %v1689 = vshrl.u32 %v1688, 7
        %v1690 = vsub.s32 0, %v1689
        %v1691 = vrot.slane %v1666, %v1690
        %v1693 = vmul.f32 %v1691, %v1672
        %v1694 = vmul.f32 %v1693, %v1686
        %v1696 = vlaneseq
        %v1697 = vshrl.u32 %v1696, 7
        %v1698 = vsub.s32 0, %v1697
        %v1699 = vrot.slane %v1667, %v1698
        %v1701 = vadd.f32 %v1694, %v1699
        %v1702 = vpack.c.bf16 %v1701, %v1701
        %v1703 = vld [vmem:[#allocation22] sm:$0xf]
        %v1704 = vld [vmem:[#allocation22 + $0x4] sm:$0xf]
        %v1705 = vld [vmem:[#allocation22 + $0x8] sm:$0xf]
        %v1706 = vld [vmem:[#allocation22 + $0xc] sm:$0xf]
        %v1707 = vld [vmem:[#allocation23] sm:$0x1]
        %v1709 = vlaneseq
        %v1710 = vshrl.u32 %v1709, 7
        %v1711 = vsub.s32 0, %v1710
        %v1712 = vrot.slane %v1707, %v1711
        %v1718 = vunpack.c.l.b16 %v1703
        %v1719 = vunpack.c.l.b16 %v1704
        %v1720 = vunpack.c.l.b16 %v1705
        %v1721 = vunpack.c.l.b16 %v1706
        %v1722 = vpack.c.b16 %v1719, %v1718
        %v1723 = vpack.c.b16 %v1721, %v1720
        %v1727 = vsel %vm862, %v1702, 0
        %1729 = vmatprep.subr.bf16.mxu0 0
        %1730 = vmatpush1.bf16.msra.mxu0 %v1722
        %1731 = vmatprep.subr.bf16.mxu0 0
        %1732 = vmatpush1.bf16.msra.mxu0 %v1723
        %1733 = vmatprep.subr.bf16.mxu0 0
        %1734 = vmatpush1.bf16.msra.mxu0 0
        %1735 = vmatprep.subr.bf16.mxu0 0
        %1736 = vmatpush1.bf16.msra.mxu0 0
        %1737 = vmatprep.subr.bf16.mxu0 0
        %1738 = vmatpush1.bf16.msra.mxu0 0
        %1739 = vmatprep.subr.bf16.mxu0 0
        %1740 = vmatpush1.bf16.msra.mxu0 0
        %1741 = vmatprep.subr.bf16.mxu0 0
        %1742 = vmatpush1.bf16.msra.mxu0 0
        %1743 = vmatprep.subr.bf16.mxu0 0
        %1744 = vmatpush1.bf16.msra.mxu0 0
        %1745 = vmatprep.subr.bf16.mxu0 0
        %1746 = vmatpush1.bf16.msra.mxu0 0
        %1747 = vmatprep.subr.bf16.mxu0 0
        %1748 = vmatpush1.bf16.msra.mxu0 0
        %1749 = vmatprep.subr.bf16.mxu0 0
        %1750 = vmatpush1.bf16.msra.mxu0 0
        %1751 = vmatprep.subr.bf16.mxu0 0
        %1752 = vmatpush1.bf16.msra.mxu0 0
        %1753 = vmatprep.subr.bf16.mxu0 0
        %1754 = vmatpush1.bf16.msra.mxu0 0
        %1755 = vmatprep.subr.bf16.mxu0 0
        %1756 = vmatpush1.bf16.msra.mxu0 0
        %1757 = vmatprep.subr.bf16.mxu0 0
        %1758 = vmatpush1.bf16.msra.mxu0 0
        %1759 = vmatprep.subr.bf16.mxu0 0
        %1760 = vmatpush1.bf16.msra.mxu0 0
        %1761 = vmatprep.mubr.bf16.mxu0 0
        %1762 = vmatmul.mubr.bf16.gmra.mrb[0].mxu0 %v1727
        %v1763 = vpop.f32.mrb[0].mxu0
        %v1764 = vadd.f32 %v1712, %v1763
        %v1765 = vpop.f32.mrb[0].mxu0
        %v1766 = vpop.f32.mrb[0].mxu0
        %v1767 = vpop.f32.mrb[0].mxu0
        %1768 = vdwg.mxu0
        %v1769 = vmul.f32 %v1764, 0.5
        %v1770 = vmul.f32 %v1764, 0.044715
        %v1771 = vmul.f32 %v1770, %v1764
        %v1772 = vmul.f32 %v1771, %v1764
        %v1773 = vadd.f32 %v1764, %v1772
        %v1774 = vmul.f32 %v1773, 0.7978846
        %v1775 = vtanh.pop %v1774
        %v1776 = vadd.f32 %v1775, 1.0
        %v1777 = vmul.f32 %v1769, %v1776
        %v1778 = vpack.c.bf16 %v1777, %v1777
        %v1779 = vld [vmem:[#allocation25] sm:$0xf]
        %v1780 = vld [vmem:[#allocation25 + $0x4] sm:$0xf]
        %v1781 = vld [vmem:[#allocation25 + $0x8] sm:$0xf]
        %v1782 = vld [vmem:[#allocation25 + $0xc] sm:$0xf]
        %v1783 = vld [vmem:[#allocation25 + $0x10] sm:$0xf]
        %v1784 = vld [vmem:[#allocation25 + $0x14] sm:$0xf]
        %v1785 = vld [vmem:[#allocation25 + $0x18] sm:$0xf]
        %v1786 = vld [vmem:[#allocation25 + $0x1c] sm:$0xf]
        %v1787 = vld [vmem:[#allocation25 + $0x20] sm:$0xf]
        %v1788 = vld [vmem:[#allocation25 + $0x24] sm:$0xf]
        %v1789 = vld [vmem:[#allocation25 + $0x28] sm:$0xf]
        %v1790 = vld [vmem:[#allocation25 + $0x2c] sm:$0xf]
        %v1791 = vld [vmem:[#allocation25 + $0x30] sm:$0xf]
        %v1792 = vld [vmem:[#allocation25 + $0x34] sm:$0xf]
        %v1793 = vld [vmem:[#allocation25 + $0x38] sm:$0xf]
        %v1794 = vld [vmem:[#allocation25 + $0x3c] sm:$0xf]
        %v1795 = vld [vmem:[#allocation26] sm:$0x1]
        %v1797 = vlaneseq
        %v1798 = vshrl.u32 %v1797, 7
        %v1799 = vsub.s32 0, %v1798
        %v1800 = vrot.slane %v1795, %v1799
        %v1818 = vunpack.c.l.b16 %v1779
        %v1819 = vunpack.c.l.b16 %v1780
        %v1820 = vunpack.c.l.b16 %v1781
        %v1821 = vunpack.c.l.b16 %v1782
        %v1822 = vunpack.c.l.b16 %v1783
        %v1823 = vunpack.c.l.b16 %v1784
        %v1824 = vunpack.c.l.b16 %v1785
        %v1825 = vunpack.c.l.b16 %v1786
        %v1826 = vunpack.c.l.b16 %v1787
        %v1827 = vunpack.c.l.b16 %v1788
        %v1828 = vunpack.c.l.b16 %v1789
        %v1829 = vunpack.c.l.b16 %v1790
        %v1830 = vunpack.c.l.b16 %v1791
        %v1831 = vunpack.c.l.b16 %v1792
        %v1832 = vunpack.c.l.b16 %v1793
        %v1833 = vunpack.c.l.b16 %v1794
        %v1834 = vpack.c.b16 %v1819, %v1818
        %v1835 = vpack.c.b16 %v1821, %v1820
        %v1836 = vpack.c.b16 %v1823, %v1822
        %v1837 = vpack.c.b16 %v1825, %v1824
        %v1838 = vpack.c.b16 %v1827, %v1826
        %v1839 = vpack.c.b16 %v1829, %v1828
        %v1840 = vpack.c.b16 %v1831, %v1830
        %v1841 = vpack.c.b16 %v1833, %v1832
        %1850 = vmatprep.subr.bf16.mxu0 0
        %1851 = vmatpush1.bf16.msra.mxu0 %v1834
        %1852 = vmatprep.subr.bf16.mxu0 0
        %1853 = vmatpush1.bf16.msra.mxu0 %v1835
        %1854 = vmatprep.subr.bf16.mxu0 0
        %1855 = vmatpush1.bf16.msra.mxu0 %v1836
        %1856 = vmatprep.subr.bf16.mxu0 0
        %1857 = vmatpush1.bf16.msra.mxu0 %v1837
        %1858 = vmatprep.subr.bf16.mxu0 0
        %1859 = vmatpush1.bf16.msra.mxu0 %v1838
        %1860 = vmatprep.subr.bf16.mxu0 0
        %1861 = vmatpush1.bf16.msra.mxu0 %v1839
        %1862 = vmatprep.subr.bf16.mxu0 0
        %1863 = vmatpush1.bf16.msra.mxu0 %v1840
        %1864 = vmatprep.subr.bf16.mxu0 0
        %1865 = vmatpush1.bf16.msra.mxu0 %v1841
        %1866 = vmatprep.subr.bf16.mxu0 0
        %1867 = vmatpush1.bf16.msra.mxu0 0
        %1868 = vmatprep.subr.bf16.mxu0 0
        %1869 = vmatpush1.bf16.msra.mxu0 0
        %1870 = vmatprep.subr.bf16.mxu0 0
        %1871 = vmatpush1.bf16.msra.mxu0 0
        %1872 = vmatprep.subr.bf16.mxu0 0
        %1873 = vmatpush1.bf16.msra.mxu0 0
        %1874 = vmatprep.subr.bf16.mxu0 0
        %1875 = vmatpush1.bf16.msra.mxu0 0
        %1876 = vmatprep.subr.bf16.mxu0 0
        %1877 = vmatpush1.bf16.msra.mxu0 0
        %1878 = vmatprep.subr.bf16.mxu0 0
        %1879 = vmatpush1.bf16.msra.mxu0 0
        %1880 = vmatprep.subr.bf16.mxu0 0
        %1881 = vmatpush1.bf16.msra.mxu0 0
        %1882 = vmatprep.mubr.bf16.mxu0 0
        %1883 = vmatmul.mubr.bf16.gmra.mrb[0].mxu0 %v1778
        %v1884 = vpop.f32.mrb[0].mxu0
        %v1885 = vadd.f32 %v1800, %v1884
        %v1886 = vpop.f32.mrb[0].mxu0
        %v1887 = vpop.f32.mrb[0].mxu0
        %v1888 = vpop.f32.mrb[0].mxu0
        %1889 = vdwg.mxu0
        %v1890 = vadd.f32 %v1665, %v1885
        %1891 = vst.msk [vmem:[%s856] sm:$0xff] %vm862, %v1890
        %s1892 = sand.u32 %s458, 1
        %s1893 = scalar_lea.sflag [#allocation4], %s1892
        %s1894 = sand.u32 %s458, 1
        %s1895 = smul.addr %s1894, 8
        %s1896 = scalar_lea.vmem [#allocation31], %s1895
        // Predicated region
        $region165: #{tpu_custom_call.1} parent=91 // pred_check
          %p1897 = pneg %p468
        $region166: #{tpu_custom_call.1} parent=91 // pred_check_branch
          %1899 = sbr.rel (%p1897) target = $region168
        $region167: #{tpu_custom_call.1} parent=91 // pred_region
          %s1901 = ssub.s32 128, 128
          %1902 = vsyncadd %s1893, %s1901
          %s1903 = sadd.s32 %s51, %s50
          %s1904 = smul.addr %s1903, 128
          %s1905 = scalar_lea.hbm %s18, %s1904
          %s1907 = sshll.u32 %s1896, 4
          %s1908 = int_to_ptr.vmem [resolvable:$true] %s1907
          %1910 = dma.vmem_to_hbm [thread:$0]  %s1908, 128, %s1905, %s1893
        $region168: #{tpu_custom_call.1} parent=91 // pred_fallthru
          _
      $region92: #{tpu_custom_call.1} parent=5 // pred_fallthru
        _
      %p1911 = scmp.le.s32.totalorder 2, %s41
      // Predicated region
      $region169: #{tpu_custom_call.1} parent=5 // pred_check
        %p1912 = pneg %p1911
      $region170: #{tpu_custom_call.1} parent=5 // pred_check_branch
        %1914 = sbr.rel (%p1912) target = $region172
      $region171: #{tpu_custom_call.1} parent=5 // pred_region
        %s1915 = ssub.s32 %s41, 2
        // Predicated region
        $region173: #{tpu_custom_call.1} parent=171 // pred_check
          %p1916 = pneg %p474
        $region174: #{tpu_custom_call.1} parent=171 // pred_check_branch
          %1918 = sbr.rel (%p1916) target = $region176
        $region175: #{tpu_custom_call.1} parent=171 // pred_region
          %s1919 = sand.u32 %s459, 1
          %s1920 = scalar_lea.sflag [#allocation4], %s1919
          %s1921 = sand.u32 %s459, 1
          %s1922 = smul.addr %s1921, 8
          %s1923 = scalar_lea.vmem [#allocation31], %s1922
          %1924 = dma.done %s1920, 128
        $region176: #{tpu_custom_call.1} parent=171 // pred_fallthru
          _
      $region172: #{tpu_custom_call.1} parent=5 // pred_fallthru
        _
    $region6: #{tpu_custom_call.1} parent=1 // loop_footer
      %s45 = sadd.s32 1, %s41
    $region7: #{tpu_custom_call.1} parent=1 // loop_footer_branch
      %40 = sbr.rel target = $region3
    $region8: #{tpu_custom_call.1} parent=1 // loop_exit
      _
    %1925 = vsyncpa [#allocation3], 1
    %s1926 = scalar_lea.sflag [#allocation3], 1
    %1927 = vsyncpa %s1926, 1
    %1928 = vsyncpa [#allocation6], 1
    %s1929 = scalar_lea.sflag [#allocation6], 1
    %1930 = vsyncpa %s1929, 1
    %1931 = vsyncpa [#allocation9], 1
    %1932 = vsyncpa [#allocation12], 1
    %1933 = vsyncpa [#allocation15], 1
    %1934 = vsyncpa [#allocation18], 1
    %1935 = vsyncpa [#allocation21], 1
    %1936 = vsyncpa [#allocation24], 1
    %1937 = vsyncpa [#allocation27], 1
    %1938 = vsyncpa [#allocation30], 1
    %1939 = vsyncpa [#allocation4], 1
    %s1940 = scalar_lea.sflag [#allocation4], 1
    %1941 = vsyncpa %s1940, 1

</llo_original>
